<compile_context>
chip_gen: v6e
topology: v6e:2x2x1
jax: 0.10.0
libtpu: 0.0.40
codegen_flags: <defaults>
</compile_context>

<pallas_src>
from typing import Dict, List

import numpy as np

import jax
import jax.numpy as jnp
from jax import lax
from jax.experimental import pallas as pl
from jax.experimental.pallas import tpu as pltpu

# -------------------- model configuration (small, deterministic) --------------------
TAG_TO_IX = {'B-PER': 0, 'I-PER': 1, 'O': 2, '<START>': 3, '<STOP>': 4}
VOCAB = list("abcdefghijklmnop")
VOCAB_SIZE = len(VOCAB)
EMBED_DIM = 16
HIDDEN_DIM = 32                 # bidirectional LSTM -> 16 hidden units per direction
H_HALF = HIDDEN_DIM // 2
TAGSET = len(TAG_TO_IX)
START = TAG_TO_IX['<START>']
STOP = TAG_TO_IX['<STOP>']

B_TILE = 8                      # sentences per grid step (batch on sublanes -> 1 vreg gates)

# fused gate-vector lane layout (16 lanes per block):
#   [ i_f | i_b | f_f | f_b | o_f | o_b | g_f | g_b ]
_FWD_BLK = (0, 2, 6, 4)         # lane-block of gates (i, f, g, o), forward direction
_BWD_BLK = (1, 3, 7, 5)         # lane-block of gates (i, f, g, o), backward direction


# ==================== fused Pallas kernel: gather + BiLSTM + hidden2tag + Viterbi ====================
def _bilstm_crf_kernel(idsf_ref, idsr_ref, pfb_ref, pb_ref, wh_ref, h0_ref, c0_ref,
                       wtag_ref, btag_ref, trans_ref,
                       feats_ref, bp_ref, term_ref,
                       xp_ref, hist_ref):
    TB = idsf_ref.shape[0]                      # T * B rows, row index = t*B + b
    V = pfb_ref.shape[0]                        # vocab size
    H2 = wh_ref.shape[0]                        # 2H (both directions)
    H = H2 // 2
    NT = trans_ref.shape[0]
    B = term_ref.shape[0]
    T = TB // B

    # ---- 1) embedding "gather" as one-hot MXU matmuls against projected tables ----------
    # xproj[t*B+b] = Pfb[ids[b,t]] + Pb[ids[b,T-1-t]]   (bias already folded into Pfb)
    lane_v = lax.broadcasted_iota(jnp.int32, (TB, V), 1)
    ohf = (idsf_ref[...] == lane_v).astype(jnp.float32)          # (TB, V) one-hot
    ohr = (idsr_ref[...] == lane_v).astype(jnp.float32)
    xp_ref[...] = (jnp.dot(ohf, pfb_ref[...], preferred_element_type=jnp.float32)
                   + jnp.dot(ohr, pb_ref[...], preferred_element_type=jnp.float32))

    # ---- 2) fused bidirectional recurrence, batched over sublanes ------------------------
    # carry h/c = [fwd|bwd] packed on lanes; ONE (B,2H)x(2H,8H) matmul -> one (8,128) vreg/step.
    # TODO(synk): keep Wh resident in MXU weight registers across the unrolled recurrence
    # (pltpu.matmul_push_rhs / matmul_acc_lhs / matmul_pop) or use VPU broadcast-FMA on
    # v6e/v7x; the portable jnp.dot path is kept for lowering safety.
    wh = wh_ref[...]
    h = jnp.broadcast_to(h0_ref[...], (B, H2))                   # same init for every sentence
    c = jnp.broadcast_to(c0_ref[...], (B, H2))
    for i in range(T):                                           # fully unrolled
        gates = (jnp.dot(h, wh, preferred_element_type=jnp.float32)
                 + xp_ref[i * B:(i + 1) * B, :])                 # (B, 8H)
        sig = jax.nn.sigmoid(gates[:, 0:6 * H])                  # one EUP span: i|f|o both dirs
        i_g = sig[:, 0:2 * H]
        f_g = sig[:, 2 * H:4 * H]
        o_g = sig[:, 4 * H:6 * H]
        g_g = jnp.tanh(gates[:, 6 * H:8 * H])                    # [g_f|g_b]
        c = f_g * c + i_g * g_g
        h = o_g * jnp.tanh(c)
        hist_ref[i * B:(i + 1) * B, 0:H] = h[:, 0:H]             # fwd hidden at time i
        hist_ref[(T - 1 - i) * B:(T - i) * B, H:H2] = h[:, H:H2]  # bwd hidden at time T-1-i

    # ---- 3) hidden2tag: single (TB,2H)x(2H,NT) matmul ------------------------------------
    feats = (jnp.dot(hist_ref[...], wtag_ref[...], preferred_element_type=jnp.float32)
             + btag_ref[...])                                    # (TB, NT)
    feats_ref[...] = feats

    # ---- 4) Viterbi, vectorized over batch (sublanes) x tags (lanes) ---------------------
    # fv stays (B, NT) the whole time -> no per-step reorientation (the old eye-select +
    # sublane-max is gone).  Per next tag: 1 broadcast add, 1 lane max, 1 first-argmax.
    trans = trans_ref[...]                                       # trans[next, prev]
    lane_nt = lax.broadcasted_iota(jnp.int32, (B, NT), 1)
    fv = jnp.where(lane_nt == START, 0.0, -10000.0).astype(jnp.float32)
    for t in range(T):                                           # fully unrolled
        vit = jnp.zeros((B, NT), jnp.float32)
        bp = jnp.zeros((B, NT), jnp.int32)
        for nxt in range(NT):                                    # NT = 5, unrolled
            s = fv + trans[nxt:nxt + 1, :]                       # (B, NT) over prev tags
            m = jnp.max(s, axis=1, keepdims=True)                # (B, 1)
            a = jnp.min(jnp.where(s == m, lane_nt, NT),
                        axis=1, keepdims=True)                   # first argmax (torch.max)
            vit = jnp.where(lane_nt == nxt, m, vit)
            bp = jnp.where(lane_nt == nxt, a, bp)
        fv = vit + feats[t * B:(t + 1) * B, :]
        bp_ref[t * B:(t + 1) * B, :] = bp                        # one (B,NT) tile per step
    term_ref[...] = fv + trans[STOP:STOP + 1, :]


@jax.jit
def _run(idsf, idsr, pfb, pb, wh, h0, c0, wtag, btag, trans):
    G, TB, _ = idsf.shape
    NT = trans.shape[0]
    grid_spec = pltpu.PrefetchScalarGridSpec(
        num_scalar_prefetch=0,
        grid=(G,),
        in_specs=[
            pl.BlockSpec((None, TB, 1), lambda g: (g, 0, 0)),        # ids (fwd time order)
            pl.BlockSpec((None, TB, 1), lambda g: (g, 0, 0)),        # ids (reversed order)
            pl.BlockSpec(pfb.shape, lambda g: (0, 0)),               # weights: constant index
            pl.BlockSpec(pb.shape, lambda g: (0, 0)),                #   maps -> stay resident
            pl.BlockSpec(wh.shape, lambda g: (0, 0)),
            pl.BlockSpec(h0.shape, lambda g: (0, 0)),
            pl.BlockSpec(c0.shape, lambda g: (0, 0)),
            pl.BlockSpec(wtag.shape, lambda g: (0, 0)),
            pl.BlockSpec(btag.shape, lambda g: (0, 0)),
            pl.BlockSpec(trans.shape, lambda g: (0, 0)),
        ],
        out_specs=(
            pl.BlockSpec((None, TB, NT), lambda g: (g, 0, 0)),       # feats
            pl.BlockSpec((None, TB, NT), lambda g: (g, 0, 0)),       # backpointers
            pl.BlockSpec((None, B_TILE, NT), lambda g: (g, 0, 0)),   # terminal scores
        ),
        scratch_shapes=[pltpu.VMEM((TB, 8 * H_HALF), jnp.float32),   # per-step input projections
                        pltpu.VMEM((TB, HIDDEN_DIM), jnp.float32)],  # [hf|hb] hidden history
    )
    return pl.pallas_call(
        _bilstm_crf_kernel,
        out_shape=(jax.ShapeDtypeStruct((G, TB, NT), jnp.float32),
                   jax.ShapeDtypeStruct((G, TB, NT), jnp.int32),
                   jax.ShapeDtypeStruct((G, B_TILE, NT), jnp.float32)),
        grid_spec=grid_spec,
        compiler_params=pltpu.CompilerParams(dimension_semantics=("parallel",)),
    )(idsf, idsr, pfb, pb, wh, h0, c0, wtag, btag, trans)


# ==================== deterministic parameter construction ====================
def init_params(key):
    ks = jax.random.split(key, 12)

    def rn(k, shape, scale=0.1):
        return (scale * jax.random.normal(k, shape)).astype(jnp.float32)

    params = {
        'emb':  rn(ks[0], (VOCAB_SIZE, EMBED_DIM)),
        # per-direction LSTM weights; gate blocks (i, f, g, o) stacked along rows
        'wxf':  rn(ks[1], (4 * EMBED_DIM, H_HALF)),
        'whf':  rn(ks[2], (4 * H_HALF, H_HALF)),
        'bf':   rn(ks[3], (4, H_HALF)),
        'wxb':  rn(ks[4], (4 * EMBED_DIM, H_HALF)),
        'whb':  rn(ks[5], (4 * H_HALF, H_HALF)),
        'bb':   rn(ks[6], (4, H_HALF)),
        # init_hidden() uses randn; fixed deterministically here
        'h0':   rn(ks[7], (2, H_HALF), scale=1.0),
        'c0':   rn(ks[8], (2, H_HALF), scale=1.0),
        'wtag': rn(ks[9], (HIDDEN_DIM, TAGSET)),
        'btag': rn(ks[10], (1, TAGSET)),
    }
    trans = jax.random.normal(ks[11], (TAGSET, TAGSET)).astype(jnp.float32)
    trans = trans.at[START, :].set(-10000.0)
    trans = trans.at[:, STOP].set(-10000.0)
    params['trans'] = trans
    return params


def pack_params(p):
    """Re-layout per-direction (PyTorch-convention) weights into the fused lane layout and
    fold the embedding table into precomputed projected tables."""
    E, H = EMBED_DIM, H_HALF
    GW = H                                    # lanes per gate block
    wxf_big = np.zeros((E, 8 * GW), np.float32)
    wxb_big = np.zeros((E, 8 * GW), np.float32)
    wh_blk = np.zeros((2 * H, 8 * GW), np.float32)
    b_big = np.zeros((1, 8 * GW), np.float32)
    wxf, wxb = np.asarray(p['wxf']), np.asarray(p['wxb'])
    whf, whb = np.asarray(p['whf']), np.asarray(p['whb'])
    bf, bb = np.asarray(p['bf']), np.asarray(p['bb'])
    for g in range(4):                        # original gate order: i, f, g, o
        fb, bbk = _FWD_BLK[g], _BWD_BLK[g]
        wxf_big[:, fb * GW:(fb + 1) * GW] = wxf[g * E:(g + 1) * E]
        wxb_big[:, bbk * GW:(bbk + 1) * GW] = wxb[g * E:(g + 1) * E]
        wh_blk[0:H, fb * GW:(fb + 1) * GW] = whf[g * H:(g + 1) * H]
        wh_blk[H:2 * H, bbk * GW:(bbk + 1) * GW] = whb[g * H:(g + 1) * H]
        b_big[0, fb * GW:(fb + 1) * GW] = bf[g]
        b_big[0, bbk * GW:(bbk + 1) * GW] = bb[g]
    emb_np = np.asarray(p['emb'], np.float32)
    pfb = emb_np @ wxf_big + b_big            # (VOCAB, 8H): forward projection + both biases
    pbb = emb_np @ wxb_big                    # (VOCAB, 8H): backward projection
    return {
        'pfb': jnp.asarray(pfb),
        'pb': jnp.asarray(pbb),
        'wh_blk': jnp.asarray(wh_blk),
        'h0': jnp.asarray(np.asarray(p['h0']).reshape(1, 2 * H)),   # [h0_fwd | h0_bwd]
        'c0': jnp.asarray(np.asarray(p['c0']).reshape(1, 2 * H)),
        'wtag': jnp.asarray(p['wtag']),
        'btag': jnp.asarray(p['btag']),
        'trans': jnp.asarray(p['trans']),
    }


# ==================== host-side glue (string handling, backtrace) ====================
def encode(predict_text, vocab):
    w2id = []
    for w in predict_text:
        w2id.append(vocab.index(str(w)) if str(w) in vocab else -1)
    return np.asarray(w2id, dtype=np.int32)


def id2tag(predict_tag_seq: List[int], tag_to_ix) -> List[str]:
    out: List[str] = []
    for tag_id in predict_tag_seq:
        for tag, i in tag_to_ix.items():
            if tag_id == i:
                out.append(tag)
                break
    return out


def decode(tags: List[str], text) -> Dict[str, List[str]]:
    tag_class: Dict[str, List[str]] = {}
    last_tag = ''
    for tag, w in zip(tags, text):
        w = str(w)
        if tag == 'O':
            if tag not in tag_class:
                tag_class[tag] = [w]
            elif last_tag != tag:
                tag_class[tag].append(w)
            else:
                tag_class[tag][len(tag_class[tag]) - 1] += w
            last_tag = tag
        else:
            s_tag = tag.split('-')
            bi_tag, big_tag = s_tag[0], s_tag[1]
            if big_tag not in tag_class:
                tag_class[big_tag] = [w]
            elif bi_tag == 'B':
                tag_class[big_tag].append(w)
            elif last_tag != big_tag:
                tag_class[big_tag].append(w)
            else:
                tag_class[big_tag][len(tag_class[big_tag]) - 1] += w
            last_tag = big_tag
    return tag_class


def _prep_ids(ids):
    """ids (N, T) -> (idsf, idsr) of shape (G, T*B_TILE, 1) with row t*B+b = ids[b, t]."""
    N, T = ids.shape
    G = -(-N // B_TILE)
    pad = G * B_TILE - N
    if pad:
        ids = np.concatenate([ids, np.repeat(ids[-1:], pad, axis=0)], axis=0)
    ids = ids.reshape(G, B_TILE, T)
    idsf = np.transpose(ids, (0, 2, 1)).reshape(G, T * B_TILE, 1)
    idsr = np.transpose(ids[:, :, ::-1], (0, 2, 1)).reshape(G, T * B_TILE, 1)
    return (jnp.asarray(idsf.astype(np.int32)), jnp.asarray(idsr.astype(np.int32)), G, N)


def forward(texts, kp):
    single = isinstance(texts, str)
    if single:
        texts = [texts]
    T = len(texts[0])
    if any(len(t) != T for t in texts):
        raise ValueError("all sentences in a batch must have the same length")
    ids = np.stack([encode(t, VOCAB) for t in texts])
    # TODO(synk): nn.Embedding with index -1 is undefined in the reference; reject OOV here.
    if (ids < 0).any():
        raise ValueError("out-of-vocabulary character in input text")
    idsf, idsr, G, N = _prep_ids(ids)

    feats, bptr, term = _run(idsf, idsr, kp['pfb'], kp['pb'], kp['wh_blk'],
                             kp['h0'], kp['c0'], kp['wtag'], kp['btag'], kp['trans'])
    feats, bptr, term = jax.block_until_ready((feats, bptr, term))
    feats = np.asarray(feats)
    bptr = np.asarray(bptr)
    term = np.asarray(term)

    results = []
    for n in range(N):
        g, b = divmod(n, B_TILE)
        term_n = term[g, b]
        best = int(np.argmax(term_n))
        path_score = float(term_n[best])
        best_path = [best]
        for t in range(T - 1, -1, -1):          # data-dependent walk stays on the host
            best = int(bptr[g, t * B_TILE + b, best])
            best_path.append(best)
        start = best_path.pop()
        assert start == START
        best_path.reverse()
        feats_n = feats[g].reshape(T, B_TILE, TAGSET)[:, b, :]
        tag_seq = id2tag(best_path, TAG_TO_IX)
        results.append((decode(tag_seq, texts[n]), path_score, feats_n, best_path))
    return results[0] if single else results


# ==================== numpy references (correctness check of the hot path) ====================
def ref_lstm_features(x, p):
    x = np.asarray(x, np.float32)
    E, H = EMBED_DIM, H_HALF

    def sigmoid(z):
        return 1.0 / (1.0 + np.exp(-z))

    def run(wx, wh, b, h, c, reverse):
        T = x.shape[0]
        outs = np.zeros((T, H), np.float32)
        order = range(T - 1, -1, -1) if reverse else range(T)
        for t in order:
            xt = x[t:t + 1]

            def gate(g):
                return xt @ wx[g * E:(g + 1) * E] + h @ wh[g * H:(g + 1) * H] + b[g:g + 1]

            i = sigmoid(gate(0)); f = sigmoid(gate(1))
            gg = np.tanh(gate(2)); o = sigmoid(gate(3))
            c = f * c + i * gg
            h = o * np.tanh(c)
            outs[t] = h[0]
        return outs

    hf = run(np.asarray(p['wxf']), np.asarray(p['whf']), np.asarray(p['bf']),
             np.asarray(p['h0'][0:1]), np.asarray(p['c0'][0:1]), False)
    hb = run(np.asarray(p['wxb']), np.asarray(p['whb']), np.asarray(p['bb']),
             np.asarray(p['h0'][1:2]), np.asarray(p['c0'][1:2]), True)
    wt = np.asarray(p['wtag']); bt = np.asarray(p['btag'])
    return hf @ wt[:H] + hb @ wt[H:] + bt


def ref_viterbi(feats, trans):
    feats = np.asarray(feats, np.float32)
    trans = np.asarray(trans, np.float32)
    NT = trans.shape[0]
    fv = np.full((NT,), -10000.0, dtype=np.float32)
    fv[START] = 0.0
    bps = []
    for t in range(feats.shape[0]):
        scores = trans + fv[None, :]           # [next, prev]
        bps.append(scores.argmax(axis=1))
        fv = scores.max(axis=1) + feats[t]
    term = fv + trans[STOP]
    best = int(np.argmax(term))
    score = float(term[best])
    path = [best]
    for bp in reversed(bps):
        best = int(bp[best])
        path.append(best)
    start = path.pop()
    assert start == START
    path.reverse()
    return score, path


if __name__ == "__main__":
    key = jax.random.PRNGKey(0)
    params = init_params(key)
    kp = pack_params(params)

    # 16 sentences of length 8 (all chars in the vocab) -> 2 grid steps of 8 sentences each
    texts = ["".join(VOCAB[(3 * i + 5 * j + i * j) % VOCAB_SIZE] for j in range(8))
             for i in range(16)]
    results = forward(texts, kp)

    # sanity checks of the fused, batched Pallas kernel against numpy references
    for text, (result, path_score, feats, best_path) in zip(texts, results):
        ids = encode(text, VOCAB)
        embeds_np = np.asarray(params['emb'])[ids]
        ref_feats = ref_lstm_features(embeds_np, params)
        assert np.allclose(feats, ref_feats, atol=1e-2, rtol=1e-2)
        ref_score, ref_path = ref_viterbi(feats, np.asarray(params['trans']))
        assert ref_path == best_path
        assert np.isclose(ref_score, path_score, rtol=1e-5, atol=1e-3)
        assert isinstance(result, dict)

    # original single-string forward() semantics still supported (padded to one batch tile)
    single_result, single_score, _, _ = forward("abcdefab", kp)
    assert isinstance(single_result, dict)

    print("KERNEL_OK")
</pallas_src>

<mosaic_0001>
module attributes {stable_mosaic.version = 11 : i64} {
  func.func @_bilstm_crf_kernel(%arg0: i32, %arg1: memref<1x64x1xi32, #tpu.memory_space<vmem>>, %arg2: memref<1x64x1xi32, #tpu.memory_space<vmem>>, %arg3: memref<16x128xf32, #tpu.memory_space<vmem>>, %arg4: memref<16x128xf32, #tpu.memory_space<vmem>>, %arg5: memref<32x128xf32, #tpu.memory_space<vmem>>, %arg6: memref<1x32xf32, #tpu.memory_space<vmem>>, %arg7: memref<1x32xf32, #tpu.memory_space<vmem>>, %arg8: memref<32x5xf32, #tpu.memory_space<vmem>>, %arg9: memref<1x5xf32, #tpu.memory_space<vmem>>, %arg10: memref<5x5xf32, #tpu.memory_space<vmem>>, %arg11: memref<1x64x5xf32, #tpu.memory_space<vmem>>, %arg12: memref<1x64x5xi32, #tpu.memory_space<vmem>>, %arg13: memref<1x8x5xf32, #tpu.memory_space<vmem>>, %arg14: memref<64x128xf32, #tpu.memory_space<vmem>>, %arg15: memref<64x32xf32, #tpu.memory_space<vmem>>) attributes {dimension_semantics = [#tpu.dimension_semantics<parallel>], iteration_bounds = array<i64: 2>, scalar_prefetch = 0 : i64, scratch_operands = 2 : i64, tpu.core_type = #tpu.core_type<tc>, window_params = [{transform_indices = @transform_0, window_bounds = array<i64: 1, 64, 1>}, {transform_indices = @transform_1, window_bounds = array<i64: 1, 64, 1>}, {pipeline_mode = #tpu.pipeline_mode<synchronous>, transform_indices = @transform_2, window_bounds = array<i64: 16, 128>}, {pipeline_mode = #tpu.pipeline_mode<synchronous>, transform_indices = @transform_3, window_bounds = array<i64: 16, 128>}, {pipeline_mode = #tpu.pipeline_mode<synchronous>, transform_indices = @transform_4, window_bounds = array<i64: 32, 128>}, {pipeline_mode = #tpu.pipeline_mode<synchronous>, transform_indices = @transform_5, window_bounds = array<i64: 1, 32>}, {pipeline_mode = #tpu.pipeline_mode<synchronous>, transform_indices = @transform_6, window_bounds = array<i64: 1, 32>}, {pipeline_mode = #tpu.pipeline_mode<synchronous>, transform_indices = @transform_7, window_bounds = array<i64: 32, 5>}, {pipeline_mode = #tpu.pipeline_mode<synchronous>, transform_indices = @transform_8, window_bounds = array<i64: 1, 5>}, {pipeline_mode = #tpu.pipeline_mode<synchronous>, transform_indices = @transform_9, window_bounds = array<i64: 5, 5>}, {transform_indices = @transform_10, window_bounds = array<i64: 1, 64, 5>}, {transform_indices = @transform_11, window_bounds = array<i64: 1, 64, 5>}, {transform_indices = @transform_12, window_bounds = array<i64: 1, 8, 5>}]} {
    %0 = tpu.iota {dimensions = array<i32: 1>} : vector<64x16xi32>
    %c0 = arith.constant 0 : index
    %c0_0 = arith.constant 0 : index
    %c0_1 = arith.constant 0 : index
    %1 = vector.load %arg1[%c0, %c0_0, %c0_1] : memref<1x64x1xi32, #tpu.memory_space<vmem>>, vector<1x64x1xi32>
    %2 = vector.shape_cast %1 : vector<1x64x1xi32> to vector<64x1xi32>
    %3 = vector.broadcast %2 : vector<64x1xi32> to vector<64x16xi32>
    %4 = arith.cmpi eq, %3, %0 : vector<64x16xi32>
    %5 = arith.extui %4 : vector<64x16xi1> to vector<64x16xi32>
    %6 = arith.sitofp %5 : vector<64x16xi32> to vector<64x16xf32>
    %c0_2 = arith.constant 0 : index
    %c0_3 = arith.constant 0 : index
    %c0_4 = arith.constant 0 : index
    %7 = vector.load %arg2[%c0_2, %c0_3, %c0_4] : memref<1x64x1xi32, #tpu.memory_space<vmem>>, vector<1x64x1xi32>
    %8 = vector.shape_cast %7 : vector<1x64x1xi32> to vector<64x1xi32>
    %9 = vector.broadcast %8 : vector<64x1xi32> to vector<64x16xi32>
    %10 = arith.cmpi eq, %9, %0 : vector<64x16xi32>
    %11 = arith.extui %10 : vector<64x16xi1> to vector<64x16xi32>
    %12 = arith.sitofp %11 : vector<64x16xi32> to vector<64x16xf32>
    %c0_5 = arith.constant 0 : index
    %c0_6 = arith.constant 0 : index
    %13 = vector.load %arg3[%c0_5, %c0_6] : memref<16x128xf32, #tpu.memory_space<vmem>>, vector<16x128xf32>
    %cst = arith.constant dense<0.000000e+00> : vector<64x128xf32>
    %14 = tpu.matmul %6, %13, %cst {dimension_numbers = #tpu.dot_dimension_numbers<[1], [0], [0], [1], [0, 0, 1, 1], [], []>} : vector<64x16xf32>, vector<16x128xf32>, vector<64x128xf32> -> vector<64x128xf32>
    %c0_7 = arith.constant 0 : index
    %c0_8 = arith.constant 0 : index
    %15 = vector.load %arg4[%c0_7, %c0_8] : memref<16x128xf32, #tpu.memory_space<vmem>>, vector<16x128xf32>
    %cst_9 = arith.constant dense<0.000000e+00> : vector<64x128xf32>
    %16 = tpu.matmul %12, %15, %cst_9 {dimension_numbers = #tpu.dot_dimension_numbers<[1], [0], [0], [1], [0, 0, 1, 1], [], []>} : vector<64x16xf32>, vector<16x128xf32>, vector<64x128xf32> -> vector<64x128xf32>
    %17 = arith.addf %14, %16 : vector<64x128xf32>
    %c0_10 = arith.constant 0 : index
    %c0_11 = arith.constant 0 : index
    %18 = vector.load %arg14[%c0_10, %c0_11] : memref<64x128xf32, #tpu.memory_space<vmem>>, vector<64x128xf32>
    tpu.vector_store %arg14[%c0_10, %c0_11], %17 {strides = array<i32>} : memref<64x128xf32, #tpu.memory_space<vmem>>, vector<64x128xf32>,
    %c0_12 = arith.constant 0 : index
    %c0_13 = arith.constant 0 : index
    %19 = vector.load %arg5[%c0_12, %c0_13] : memref<32x128xf32, #tpu.memory_space<vmem>>, vector<32x128xf32>
    %c0_14 = arith.constant 0 : index
    %c0_15 = arith.constant 0 : index
    %20 = vector.load %arg6[%c0_14, %c0_15] : memref<1x32xf32, #tpu.memory_space<vmem>>, vector<1x32xf32>
    %21 = vector.shape_cast %20 : vector<1x32xf32> to vector<1x32xf32>
    %22 = vector.broadcast %21 : vector<1x32xf32> to vector<8x32xf32>
    %c0_16 = arith.constant 0 : index
    %c0_17 = arith.constant 0 : index
    %23 = vector.load %arg7[%c0_16, %c0_17] : memref<1x32xf32, #tpu.memory_space<vmem>>, vector<1x32xf32>
    %24 = vector.shape_cast %23 : vector<1x32xf32> to vector<1x32xf32>
    %25 = vector.broadcast %24 : vector<1x32xf32> to vector<8x32xf32>
    %cst_18 = arith.constant dense<0.000000e+00> : vector<8x128xf32>
    %26 = tpu.matmul %22, %19, %cst_18 {dimension_numbers = #tpu.dot_dimension_numbers<[1], [0], [0], [1], [0, 0, 1, 1], [], []>} : vector<8x32xf32>, vector<32x128xf32>, vector<8x128xf32> -> vector<8x128xf32>
    %c0_19 = arith.constant 0 : index
    %c0_20 = arith.constant 0 : index
    %27 = vector.load %arg14[%c0_19, %c0_20] : memref<64x128xf32, #tpu.memory_space<vmem>>, vector<8x128xf32>
    %28 = arith.addf %26, %27 : vector<8x128xf32>
    %29 = vector.extract_strided_slice %28 {offsets = [0, 0], sizes = [8, 96], strides = [1, 1]} : vector<8x128xf32> to vector<8x96xf32>
    %30 = arith.negf %29 : vector<8x96xf32>
    %31 = math.exp %30 : vector<8x96xf32>
    %cst_21 = arith.constant 1.000000e+00 : f32
    %32 = vector.broadcast %cst_21 : f32 to vector<8x96xf32>
    %33 = arith.addf %32, %31 : vector<8x96xf32>
    %34 = arith.divf %32, %33 : vector<8x96xf32>
    %35 = vector.extract_strided_slice %34 {offsets = [0, 0], sizes = [8, 32], strides = [1, 1]} : vector<8x96xf32> to vector<8x32xf32>
    %36 = vector.extract_strided_slice %34 {offsets = [0, 32], sizes = [8, 32], strides = [1, 1]} : vector<8x96xf32> to vector<8x32xf32>
    %37 = vector.extract_strided_slice %34 {offsets = [0, 64], sizes = [8, 32], strides = [1, 1]} : vector<8x96xf32> to vector<8x32xf32>
    %38 = vector.extract_strided_slice %28 {offsets = [0, 96], sizes = [8, 32], strides = [1, 1]} : vector<8x128xf32> to vector<8x32xf32>
    %39 = math.tanh %38 : vector<8x32xf32>
    %40 = arith.mulf %36, %25 : vector<8x32xf32>
    %41 = arith.mulf %35, %39 : vector<8x32xf32>
    %42 = arith.addf %40, %41 : vector<8x32xf32>
    %43 = math.tanh %42 : vector<8x32xf32>
    %44 = arith.mulf %37, %43 : vector<8x32xf32>
    %45 = vector.extract_strided_slice %44 {offsets = [0, 0], sizes = [8, 16], strides = [1, 1]} : vector<8x32xf32> to vector<8x16xf32>
    %c0_22 = arith.constant 0 : index
    %c0_23 = arith.constant 0 : index
    %46 = vector.load %arg15[%c0_22, %c0_23] : memref<64x32xf32, #tpu.memory_space<vmem>>, vector<8x16xf32>
    tpu.vector_store %arg15[%c0_22, %c0_23], %45 {strides = array<i32>} : memref<64x32xf32, #tpu.memory_space<vmem>>, vector<8x16xf32>,
    %47 = vector.extract_strided_slice %44 {offsets = [0, 16], sizes = [8, 16], strides = [1, 1]} : vector<8x32xf32> to vector<8x16xf32>
    %c56 = arith.constant 56 : index
    %c16 = arith.constant 16 : index
    %48 = vector.load %arg15[%c56, %c16] : memref<64x32xf32, #tpu.memory_space<vmem>>, vector<8x16xf32>
    tpu.vector_store %arg15[%c56, %c16], %47 {strides = array<i32>} : memref<64x32xf32, #tpu.memory_space<vmem>>, vector<8x16xf32>,
    %cst_24 = arith.constant dense<0.000000e+00> : vector<8x128xf32>
    %49 = tpu.matmul %44, %19, %cst_24 {dimension_numbers = #tpu.dot_dimension_numbers<[1], [0], [0], [1], [0, 0, 1, 1], [], []>} : vector<8x32xf32>, vector<32x128xf32>, vector<8x128xf32> -> vector<8x128xf32>
    %c8 = arith.constant 8 : index
    %c0_25 = arith.constant 0 : index
    %50 = vector.load %arg14[%c8, %c0_25] : memref<64x128xf32, #tpu.memory_space<vmem>>, vector<8x128xf32>
    %51 = arith.addf %49, %50 : vector<8x128xf32>
    %52 = vector.extract_strided_slice %51 {offsets = [0, 0], sizes = [8, 96], strides = [1, 1]} : vector<8x128xf32> to vector<8x96xf32>
    %53 = arith.negf %52 : vector<8x96xf32>
    %54 = math.exp %53 : vector<8x96xf32>
    %cst_26 = arith.constant 1.000000e+00 : f32
    %55 = vector.broadcast %cst_26 : f32 to vector<8x96xf32>
    %56 = arith.addf %55, %54 : vector<8x96xf32>
    %57 = arith.divf %55, %56 : vector<8x96xf32>
    %58 = vector.extract_strided_slice %57 {offsets = [0, 0], sizes = [8, 32], strides = [1, 1]} : vector<8x96xf32> to vector<8x32xf32>
    %59 = vector.extract_strided_slice %57 {offsets = [0, 32], sizes = [8, 32], strides = [1, 1]} : vector<8x96xf32> to vector<8x32xf32>
    %60 = vector.extract_strided_slice %57 {offsets = [0, 64], sizes = [8, 32], strides = [1, 1]} : vector<8x96xf32> to vector<8x32xf32>
    %61 = vector.extract_strided_slice %51 {offsets = [0, 96], sizes = [8, 32], strides = [1, 1]} : vector<8x128xf32> to vector<8x32xf32>
    %62 = math.tanh %61 : vector<8x32xf32>
    %63 = arith.mulf %59, %42 : vector<8x32xf32>
    %64 = arith.mulf %58, %62 : vector<8x32xf32>
    %65 = arith.addf %63, %64 : vector<8x32xf32>
    %66 = math.tanh %65 : vector<8x32xf32>
    %67 = arith.mulf %60, %66 : vector<8x32xf32>
    %68 = vector.extract_strided_slice %67 {offsets = [0, 0], sizes = [8, 16], strides = [1, 1]} : vector<8x32xf32> to vector<8x16xf32>
    %c8_27 = arith.constant 8 : index
    %c0_28 = arith.constant 0 : index
    %69 = vector.load %arg15[%c8_27, %c0_28] : memref<64x32xf32, #tpu.memory_space<vmem>>, vector<8x16xf32>
    tpu.vector_store %arg15[%c8_27, %c0_28], %68 {strides = array<i32>} : memref<64x32xf32, #tpu.memory_space<vmem>>, vector<8x16xf32>,
    %70 = vector.extract_strided_slice %67 {offsets = [0, 16], sizes = [8, 16], strides = [1, 1]} : vector<8x32xf32> to vector<8x16xf32>
    %c48 = arith.constant 48 : index
    %c16_29 = arith.constant 16 : index
    %71 = vector.load %arg15[%c48, %c16_29] : memref<64x32xf32, #tpu.memory_space<vmem>>, vector<8x16xf32>
    tpu.vector_store %arg15[%c48, %c16_29], %70 {strides = array<i32>} : memref<64x32xf32, #tpu.memory_space<vmem>>, vector<8x16xf32>,
    %cst_30 = arith.constant dense<0.000000e+00> : vector<8x128xf32>
    %72 = tpu.matmul %67, %19, %cst_30 {dimension_numbers = #tpu.dot_dimension_numbers<[1], [0], [0], [1], [0, 0, 1, 1], [], []>} : vector<8x32xf32>, vector<32x128xf32>, vector<8x128xf32> -> vector<8x128xf32>
    %c16_31 = arith.constant 16 : index
    %c0_32 = arith.constant 0 : index
    %73 = vector.load %arg14[%c16_31, %c0_32] : memref<64x128xf32, #tpu.memory_space<vmem>>, vector<8x128xf32>
    %74 = arith.addf %72, %73 : vector<8x128xf32>
    %75 = vector.extract_strided_slice %74 {offsets = [0, 0], sizes = [8, 96], strides = [1, 1]} : vector<8x128xf32> to vector<8x96xf32>
    %76 = arith.negf %75 : vector<8x96xf32>
    %77 = math.exp %76 : vector<8x96xf32>
    %cst_33 = arith.constant 1.000000e+00 : f32
    %78 = vector.broadcast %cst_33 : f32 to vector<8x96xf32>
    %79 = arith.addf %78, %77 : vector<8x96xf32>
    %80 = arith.divf %78, %79 : vector<8x96xf32>
    %81 = vector.extract_strided_slice %80 {offsets = [0, 0], sizes = [8, 32], strides = [1, 1]} : vector<8x96xf32> to vector<8x32xf32>
    %82 = vector.extract_strided_slice %80 {offsets = [0, 32], sizes = [8, 32], strides = [1, 1]} : vector<8x96xf32> to vector<8x32xf32>
    %83 = vector.extract_strided_slice %80 {offsets = [0, 64], sizes = [8, 32], strides = [1, 1]} : vector<8x96xf32> to vector<8x32xf32>
    %84 = vector.extract_strided_slice %74 {offsets = [0, 96], sizes = [8, 32], strides = [1, 1]} : vector<8x128xf32> to vector<8x32xf32>
    %85 = math.tanh %84 : vector<8x32xf32>
    %86 = arith.mulf %82, %65 : vector<8x32xf32>
    %87 = arith.mulf %81, %85 : vector<8x32xf32>
    %88 = arith.addf %86, %87 : vector<8x32xf32>
    %89 = math.tanh %88 : vector<8x32xf32>
    %90 = arith.mulf %83, %89 : vector<8x32xf32>
    %91 = vector.extract_strided_slice %90 {offsets = [0, 0], sizes = [8, 16], strides = [1, 1]} : vector<8x32xf32> to vector<8x16xf32>
    %c16_34 = arith.constant 16 : index
    %c0_35 = arith.constant 0 : index
    %92 = vector.load %arg15[%c16_34, %c0_35] : memref<64x32xf32, #tpu.memory_space<vmem>>, vector<8x16xf32>
    tpu.vector_store %arg15[%c16_34, %c0_35], %91 {strides = array<i32>} : memref<64x32xf32, #tpu.memory_space<vmem>>, vector<8x16xf32>,
    %93 = vector.extract_strided_slice %90 {offsets = [0, 16], sizes = [8, 16], strides = [1, 1]} : vector<8x32xf32> to vector<8x16xf32>
    %c40 = arith.constant 40 : index
    %c16_36 = arith.constant 16 : index
    %94 = vector.load %arg15[%c40, %c16_36] : memref<64x32xf32, #tpu.memory_space<vmem>>, vector<8x16xf32>
    tpu.vector_store %arg15[%c40, %c16_36], %93 {strides = array<i32>} : memref<64x32xf32, #tpu.memory_space<vmem>>, vector<8x16xf32>,
    %cst_37 = arith.constant dense<0.000000e+00> : vector<8x128xf32>
    %95 = tpu.matmul %90, %19, %cst_37 {dimension_numbers = #tpu.dot_dimension_numbers<[1], [0], [0], [1], [0, 0, 1, 1], [], []>} : vector<8x32xf32>, vector<32x128xf32>, vector<8x128xf32> -> vector<8x128xf32>
    %c24 = arith.constant 24 : index
    %c0_38 = arith.constant 0 : index
    %96 = vector.load %arg14[%c24, %c0_38] : memref<64x128xf32, #tpu.memory_space<vmem>>, vector<8x128xf32>
    %97 = arith.addf %95, %96 : vector<8x128xf32>
    %98 = vector.extract_strided_slice %97 {offsets = [0, 0], sizes = [8, 96], strides = [1, 1]} : vector<8x128xf32> to vector<8x96xf32>
    %99 = arith.negf %98 : vector<8x96xf32>
    %100 = math.exp %99 : vector<8x96xf32>
    %cst_39 = arith.constant 1.000000e+00 : f32
    %101 = vector.broadcast %cst_39 : f32 to vector<8x96xf32>
    %102 = arith.addf %101, %100 : vector<8x96xf32>
    %103 = arith.divf %101, %102 : vector<8x96xf32>
    %104 = vector.extract_strided_slice %103 {offsets = [0, 0], sizes = [8, 32], strides = [1, 1]} : vector<8x96xf32> to vector<8x32xf32>
    %105 = vector.extract_strided_slice %103 {offsets = [0, 32], sizes = [8, 32], strides = [1, 1]} : vector<8x96xf32> to vector<8x32xf32>
    %106 = vector.extract_strided_slice %103 {offsets = [0, 64], sizes = [8, 32], strides = [1, 1]} : vector<8x96xf32> to vector<8x32xf32>
    %107 = vector.extract_strided_slice %97 {offsets = [0, 96], sizes = [8, 32], strides = [1, 1]} : vector<8x128xf32> to vector<8x32xf32>
    %108 = math.tanh %107 : vector<8x32xf32>
    %109 = arith.mulf %105, %88 : vector<8x32xf32>
    %110 = arith.mulf %104, %108 : vector<8x32xf32>
    %111 = arith.addf %109, %110 : vector<8x32xf32>
    %112 = math.tanh %111 : vector<8x32xf32>
    %113 = arith.mulf %106, %112 : vector<8x32xf32>
    %114 = vector.extract_strided_slice %113 {offsets = [0, 0], sizes = [8, 16], strides = [1, 1]} : vector<8x32xf32> to vector<8x16xf32>
    %c24_40 = arith.constant 24 : index
    %c0_41 = arith.constant 0 : index
    %115 = vector.load %arg15[%c24_40, %c0_41] : memref<64x32xf32, #tpu.memory_space<vmem>>, vector<8x16xf32>
    tpu.vector_store %arg15[%c24_40, %c0_41], %114 {strides = array<i32>} : memref<64x32xf32, #tpu.memory_space<vmem>>, vector<8x16xf32>,
    %116 = vector.extract_strided_slice %113 {offsets = [0, 16], sizes = [8, 16], strides = [1, 1]} : vector<8x32xf32> to vector<8x16xf32>
    %c32 = arith.constant 32 : index
    %c16_42 = arith.constant 16 : index
    %117 = vector.load %arg15[%c32, %c16_42] : memref<64x32xf32, #tpu.memory_space<vmem>>, vector<8x16xf32>
    tpu.vector_store %arg15[%c32, %c16_42], %116 {strides = array<i32>} : memref<64x32xf32, #tpu.memory_space<vmem>>, vector<8x16xf32>,
    %cst_43 = arith.constant dense<0.000000e+00> : vector<8x128xf32>
    %118 = tpu.matmul %113, %19, %cst_43 {dimension_numbers = #tpu.dot_dimension_numbers<[1], [0], [0], [1], [0, 0, 1, 1], [], []>} : vector<8x32xf32>, vector<32x128xf32>, vector<8x128xf32> -> vector<8x128xf32>
    %c32_44 = arith.constant 32 : index
    %c0_45 = arith.constant 0 : index
    %119 = vector.load %arg14[%c32_44, %c0_45] : memref<64x128xf32, #tpu.memory_space<vmem>>, vector<8x128xf32>
    %120 = arith.addf %118, %119 : vector<8x128xf32>
    %121 = vector.extract_strided_slice %120 {offsets = [0, 0], sizes = [8, 96], strides = [1, 1]} : vector<8x128xf32> to vector<8x96xf32>
    %122 = arith.negf %121 : vector<8x96xf32>
    %123 = math.exp %122 : vector<8x96xf32>
    %cst_46 = arith.constant 1.000000e+00 : f32
    %124 = vector.broadcast %cst_46 : f32 to vector<8x96xf32>
    %125 = arith.addf %124, %123 : vector<8x96xf32>
    %126 = arith.divf %124, %125 : vector<8x96xf32>
    %127 = vector.extract_strided_slice %126 {offsets = [0, 0], sizes = [8, 32], strides = [1, 1]} : vector<8x96xf32> to vector<8x32xf32>
    %128 = vector.extract_strided_slice %126 {offsets = [0, 32], sizes = [8, 32], strides = [1, 1]} : vector<8x96xf32> to vector<8x32xf32>
    %129 = vector.extract_strided_slice %126 {offsets = [0, 64], sizes = [8, 32], strides = [1, 1]} : vector<8x96xf32> to vector<8x32xf32>
    %130 = vector.extract_strided_slice %120 {offsets = [0, 96], sizes = [8, 32], strides = [1, 1]} : vector<8x128xf32> to vector<8x32xf32>
    %131 = math.tanh %130 : vector<8x32xf32>
    %132 = arith.mulf %128, %111 : vector<8x32xf32>
    %133 = arith.mulf %127, %131 : vector<8x32xf32>
    %134 = arith.addf %132, %133 : vector<8x32xf32>
    %135 = math.tanh %134 : vector<8x32xf32>
    %136 = arith.mulf %129, %135 : vector<8x32xf32>
    %137 = vector.extract_strided_slice %136 {offsets = [0, 0], sizes = [8, 16], strides = [1, 1]} : vector<8x32xf32> to vector<8x16xf32>
    %c32_47 = arith.constant 32 : index
    %c0_48 = arith.constant 0 : index
    %138 = vector.load %arg15[%c32_47, %c0_48] : memref<64x32xf32, #tpu.memory_space<vmem>>, vector<8x16xf32>
    tpu.vector_store %arg15[%c32_47, %c0_48], %137 {strides = array<i32>} : memref<64x32xf32, #tpu.memory_space<vmem>>, vector<8x16xf32>,
    %139 = vector.extract_strided_slice %136 {offsets = [0, 16], sizes = [8, 16], strides = [1, 1]} : vector<8x32xf32> to vector<8x16xf32>
    %c24_49 = arith.constant 24 : index
    %c16_50 = arith.constant 16 : index
    %140 = vector.load %arg15[%c24_49, %c16_50] : memref<64x32xf32, #tpu.memory_space<vmem>>, vector<8x16xf32>
    tpu.vector_store %arg15[%c24_49, %c16_50], %139 {strides = array<i32>} : memref<64x32xf32, #tpu.memory_space<vmem>>, vector<8x16xf32>,
    %cst_51 = arith.constant dense<0.000000e+00> : vector<8x128xf32>
    %141 = tpu.matmul %136, %19, %cst_51 {dimension_numbers = #tpu.dot_dimension_numbers<[1], [0], [0], [1], [0, 0, 1, 1], [], []>} : vector<8x32xf32>, vector<32x128xf32>, vector<8x128xf32> -> vector<8x128xf32>
    %c40_52 = arith.constant 40 : index
    %c0_53 = arith.constant 0 : index
    %142 = vector.load %arg14[%c40_52, %c0_53] : memref<64x128xf32, #tpu.memory_space<vmem>>, vector<8x128xf32>
    %143 = arith.addf %141, %142 : vector<8x128xf32>
    %144 = vector.extract_strided_slice %143 {offsets = [0, 0], sizes = [8, 96], strides = [1, 1]} : vector<8x128xf32> to vector<8x96xf32>
    %145 = arith.negf %144 : vector<8x96xf32>
    %146 = math.exp %145 : vector<8x96xf32>
    %cst_54 = arith.constant 1.000000e+00 : f32
    %147 = vector.broadcast %cst_54 : f32 to vector<8x96xf32>
    %148 = arith.addf %147, %146 : vector<8x96xf32>
    %149 = arith.divf %147, %148 : vector<8x96xf32>
    %150 = vector.extract_strided_slice %149 {offsets = [0, 0], sizes = [8, 32], strides = [1, 1]} : vector<8x96xf32> to vector<8x32xf32>
    %151 = vector.extract_strided_slice %149 {offsets = [0, 32], sizes = [8, 32], strides = [1, 1]} : vector<8x96xf32> to vector<8x32xf32>
    %152 = vector.extract_strided_slice %149 {offsets = [0, 64], sizes = [8, 32], strides = [1, 1]} : vector<8x96xf32> to vector<8x32xf32>
    %153 = vector.extract_strided_slice %143 {offsets = [0, 96], sizes = [8, 32], strides = [1, 1]} : vector<8x128xf32> to vector<8x32xf32>
    %154 = math.tanh %153 : vector<8x32xf32>
    %155 = arith.mulf %151, %134 : vector<8x32xf32>
    %156 = arith.mulf %150, %154 : vector<8x32xf32>
    %157 = arith.addf %155, %156 : vector<8x32xf32>
    %158 = math.tanh %157 : vector<8x32xf32>
    %159 = arith.mulf %152, %158 : vector<8x32xf32>
    %160 = vector.extract_strided_slice %159 {offsets = [0, 0], sizes = [8, 16], strides = [1, 1]} : vector<8x32xf32> to vector<8x16xf32>
    %c40_55 = arith.constant 40 : index
    %c0_56 = arith.constant 0 : index
    %161 = vector.load %arg15[%c40_55, %c0_56] : memref<64x32xf32, #tpu.memory_space<vmem>>, vector<8x16xf32>
    tpu.vector_store %arg15[%c40_55, %c0_56], %160 {strides = array<i32>} : memref<64x32xf32, #tpu.memory_space<vmem>>, vector<8x16xf32>,
    %162 = vector.extract_strided_slice %159 {offsets = [0, 16], sizes = [8, 16], strides = [1, 1]} : vector<8x32xf32> to vector<8x16xf32>
    %c16_57 = arith.constant 16 : index
    %c16_58 = arith.constant 16 : index
    %163 = vector.load %arg15[%c16_57, %c16_58] : memref<64x32xf32, #tpu.memory_space<vmem>>, vector<8x16xf32>
    tpu.vector_store %arg15[%c16_57, %c16_58], %162 {strides = array<i32>} : memref<64x32xf32, #tpu.memory_space<vmem>>, vector<8x16xf32>,
    %cst_59 = arith.constant dense<0.000000e+00> : vector<8x128xf32>
    %164 = tpu.matmul %159, %19, %cst_59 {dimension_numbers = #tpu.dot_dimension_numbers<[1], [0], [0], [1], [0, 0, 1, 1], [], []>} : vector<8x32xf32>, vector<32x128xf32>, vector<8x128xf32> -> vector<8x128xf32>
    %c48_60 = arith.constant 48 : index
    %c0_61 = arith.constant 0 : index
    %165 = vector.load %arg14[%c48_60, %c0_61] : memref<64x128xf32, #tpu.memory_space<vmem>>, vector<8x128xf32>
    %166 = arith.addf %164, %165 : vector<8x128xf32>
    %167 = vector.extract_strided_slice %166 {offsets = [0, 0], sizes = [8, 96], strides = [1, 1]} : vector<8x128xf32> to vector<8x96xf32>
    %168 = arith.negf %167 : vector<8x96xf32>
    %169 = math.exp %168 : vector<8x96xf32>
    %cst_62 = arith.constant 1.000000e+00 : f32
    %170 = vector.broadcast %cst_62 : f32 to vector<8x96xf32>
    %171 = arith.addf %170, %169 : vector<8x96xf32>
    %172 = arith.divf %170, %171 : vector<8x96xf32>
    %173 = vector.extract_strided_slice %172 {offsets = [0, 0], sizes = [8, 32], strides = [1, 1]} : vector<8x96xf32> to vector<8x32xf32>
    %174 = vector.extract_strided_slice %172 {offsets = [0, 32], sizes = [8, 32], strides = [1, 1]} : vector<8x96xf32> to vector<8x32xf32>
    %175 = vector.extract_strided_slice %172 {offsets = [0, 64], sizes = [8, 32], strides = [1, 1]} : vector<8x96xf32> to vector<8x32xf32>
    %176 = vector.extract_strided_slice %166 {offsets = [0, 96], sizes = [8, 32], strides = [1, 1]} : vector<8x128xf32> to vector<8x32xf32>
    %177 = math.tanh %176 : vector<8x32xf32>
    %178 = arith.mulf %174, %157 : vector<8x32xf32>
    %179 = arith.mulf %173, %177 : vector<8x32xf32>
    %180 = arith.addf %178, %179 : vector<8x32xf32>
    %181 = math.tanh %180 : vector<8x32xf32>
    %182 = arith.mulf %175, %181 : vector<8x32xf32>
    %183 = vector.extract_strided_slice %182 {offsets = [0, 0], sizes = [8, 16], strides = [1, 1]} : vector<8x32xf32> to vector<8x16xf32>
    %c48_63 = arith.constant 48 : index
    %c0_64 = arith.constant 0 : index
    %184 = vector.load %arg15[%c48_63, %c0_64] : memref<64x32xf32, #tpu.memory_space<vmem>>, vector<8x16xf32>
    tpu.vector_store %arg15[%c48_63, %c0_64], %183 {strides = array<i32>} : memref<64x32xf32, #tpu.memory_space<vmem>>, vector<8x16xf32>,
    %185 = vector.extract_strided_slice %182 {offsets = [0, 16], sizes = [8, 16], strides = [1, 1]} : vector<8x32xf32> to vector<8x16xf32>
    %c8_65 = arith.constant 8 : index
    %c16_66 = arith.constant 16 : index
    %186 = vector.load %arg15[%c8_65, %c16_66] : memref<64x32xf32, #tpu.memory_space<vmem>>, vector<8x16xf32>
    tpu.vector_store %arg15[%c8_65, %c16_66], %185 {strides = array<i32>} : memref<64x32xf32, #tpu.memory_space<vmem>>, vector<8x16xf32>,
    %cst_67 = arith.constant dense<0.000000e+00> : vector<8x128xf32>
    %187 = tpu.matmul %182, %19, %cst_67 {dimension_numbers = #tpu.dot_dimension_numbers<[1], [0], [0], [1], [0, 0, 1, 1], [], []>} : vector<8x32xf32>, vector<32x128xf32>, vector<8x128xf32> -> vector<8x128xf32>
    %c56_68 = arith.constant 56 : index
    %c0_69 = arith.constant 0 : index
    %188 = vector.load %arg14[%c56_68, %c0_69] : memref<64x128xf32, #tpu.memory_space<vmem>>, vector<8x128xf32>
    %189 = arith.addf %187, %188 : vector<8x128xf32>
    %190 = vector.extract_strided_slice %189 {offsets = [0, 0], sizes = [8, 96], strides = [1, 1]} : vector<8x128xf32> to vector<8x96xf32>
    %191 = arith.negf %190 : vector<8x96xf32>
    %192 = math.exp %191 : vector<8x96xf32>
    %cst_70 = arith.constant 1.000000e+00 : f32
    %193 = vector.broadcast %cst_70 : f32 to vector<8x96xf32>
    %194 = arith.addf %193, %192 : vector<8x96xf32>
    %195 = arith.divf %193, %194 : vector<8x96xf32>
    %196 = vector.extract_strided_slice %195 {offsets = [0, 0], sizes = [8, 32], strides = [1, 1]} : vector<8x96xf32> to vector<8x32xf32>
    %197 = vector.extract_strided_slice %195 {offsets = [0, 32], sizes = [8, 32], strides = [1, 1]} : vector<8x96xf32> to vector<8x32xf32>
    %198 = vector.extract_strided_slice %195 {offsets = [0, 64], sizes = [8, 32], strides = [1, 1]} : vector<8x96xf32> to vector<8x32xf32>
    %199 = vector.extract_strided_slice %189 {offsets = [0, 96], sizes = [8, 32], strides = [1, 1]} : vector<8x128xf32> to vector<8x32xf32>
    %200 = math.tanh %199 : vector<8x32xf32>
    %201 = arith.mulf %197, %180 : vector<8x32xf32>
    %202 = arith.mulf %196, %200 : vector<8x32xf32>
    %203 = arith.addf %201, %202 : vector<8x32xf32>
    %204 = math.tanh %203 : vector<8x32xf32>
    %205 = arith.mulf %198, %204 : vector<8x32xf32>
    %206 = vector.extract_strided_slice %205 {offsets = [0, 0], sizes = [8, 16], strides = [1, 1]} : vector<8x32xf32> to vector<8x16xf32>
    %c56_71 = arith.constant 56 : index
    %c0_72 = arith.constant 0 : index
    %207 = vector.load %arg15[%c56_71, %c0_72] : memref<64x32xf32, #tpu.memory_space<vmem>>, vector<8x16xf32>
    tpu.vector_store %arg15[%c56_71, %c0_72], %206 {strides = array<i32>} : memref<64x32xf32, #tpu.memory_space<vmem>>, vector<8x16xf32>,
    %208 = vector.extract_strided_slice %205 {offsets = [0, 16], sizes = [8, 16], strides = [1, 1]} : vector<8x32xf32> to vector<8x16xf32>
    %c0_73 = arith.constant 0 : index
    %c16_74 = arith.constant 16 : index
    %209 = vector.load %arg15[%c0_73, %c16_74] : memref<64x32xf32, #tpu.memory_space<vmem>>, vector<8x16xf32>
    tpu.vector_store %arg15[%c0_73, %c16_74], %208 {strides = array<i32>} : memref<64x32xf32, #tpu.memory_space<vmem>>, vector<8x16xf32>,
    %c0_75 = arith.constant 0 : index
    %c0_76 = arith.constant 0 : index
    %210 = vector.load %arg15[%c0_75, %c0_76] : memref<64x32xf32, #tpu.memory_space<vmem>>, vector<64x32xf32>
    %c0_77 = arith.constant 0 : index
    %c0_78 = arith.constant 0 : index
    %211 = vector.load %arg8[%c0_77, %c0_78] : memref<32x5xf32, #tpu.memory_space<vmem>>, vector<32x5xf32>
    %cst_79 = arith.constant dense<0.000000e+00> : vector<64x5xf32>
    %212 = tpu.matmul %210, %211, %cst_79 {dimension_numbers = #tpu.dot_dimension_numbers<[1], [0], [0], [1], [0, 0, 1, 1], [], []>} : vector<64x32xf32>, vector<32x5xf32>, vector<64x5xf32> -> vector<64x5xf32>
    %c0_80 = arith.constant 0 : index
    %c0_81 = arith.constant 0 : index
    %213 = vector.load %arg9[%c0_80, %c0_81] : memref<1x5xf32, #tpu.memory_space<vmem>>, vector<1x5xf32>
    %214 = vector.broadcast %213 : vector<1x5xf32> to vector<64x5xf32>
    %215 = arith.addf %212, %214 : vector<64x5xf32>
    %c0_82 = arith.constant 0 : index
    %c0_83 = arith.constant 0 : index
    %c0_84 = arith.constant 0 : index
    %216 = vector.load %arg11[%c0_82, %c0_83, %c0_84] : memref<1x64x5xf32, #tpu.memory_space<vmem>>, vector<1x64x5xf32>
    %217 = vector.shape_cast %216 : vector<1x64x5xf32> to vector<64x5xf32>
    %218 = vector.shape_cast %215 : vector<64x5xf32> to vector<1x64x5xf32>
    tpu.vector_store %arg11[%c0_82, %c0_83, %c0_84], %218 {strides = array<i32>} : memref<1x64x5xf32, #tpu.memory_space<vmem>>, vector<1x64x5xf32>,
    %c0_85 = arith.constant 0 : index
    %c0_86 = arith.constant 0 : index
    %219 = vector.load %arg10[%c0_85, %c0_86] : memref<5x5xf32, #tpu.memory_space<vmem>>, vector<5x5xf32>
    %220 = tpu.iota {dimensions = array<i32: 1>} : vector<8x5xi32>
    %c3_i32 = arith.constant 3 : i32
    %221 = vector.broadcast %c3_i32 : i32 to vector<8x5xi32>
    %222 = arith.cmpi eq, %220, %221 : vector<8x5xi32>
    %cst_87 = arith.constant 0.000000e+00 : f32
    %cst_88 = arith.constant -1.000000e+04 : f32
    %223 = vector.broadcast %cst_87 : f32 to vector<8x5xf32>
    %224 = vector.broadcast %cst_88 : f32 to vector<8x5xf32>
    %225 = arith.select %222, %223, %224 : vector<8x5xi1>, vector<8x5xf32>
    %cst_89 = arith.constant 0.000000e+00 : f32
    %226 = vector.broadcast %cst_89 : f32 to vector<8x5xf32>
    %c0_i32 = arith.constant 0 : i32
    %227 = vector.broadcast %c0_i32 : i32 to vector<8x5xi32>
    %228 = vector.extract_strided_slice %219 {offsets = [0, 0], sizes = [1, 5], strides = [1, 1]} : vector<5x5xf32> to vector<1x5xf32>
    %229 = vector.broadcast %228 : vector<1x5xf32> to vector<8x5xf32>
    %230 = arith.addf %225, %229 : vector<8x5xf32>
    %cst_90 = arith.constant dense<0xFF800000> : vector<8xf32>
    %231 = vector.multi_reduction <maximumf>, %230, %cst_90 [1] : vector<8x5xf32> to vector<8xf32>
    %232 = vector.shape_cast %231 : vector<8xf32> to vector<8x1xf32>
    %233 = vector.broadcast %232 : vector<8x1xf32> to vector<8x5xf32>
    %234 = arith.cmpf oeq, %230, %233 : vector<8x5xf32>
    %c5_i32 = arith.constant 5 : i32
    %235 = vector.broadcast %c5_i32 : i32 to vector<8x5xi32>
    %236 = arith.select %234, %220, %235 : vector<8x5xi1>, vector<8x5xi32>
    %cst_91 = arith.constant dense<2147483647> : vector<8xi32>
    %237 = vector.multi_reduction <minsi>, %236, %cst_91 [1] : vector<8x5xi32> to vector<8xi32>
    %238 = vector.shape_cast %237 : vector<8xi32> to vector<8x1xi32>
    %c0_i32_92 = arith.constant 0 : i32
    %239 = vector.broadcast %c0_i32_92 : i32 to vector<8x5xi32>
    %240 = arith.cmpi eq, %220, %239 : vector<8x5xi32>
    %241 = vector.shape_cast %232 : vector<8x1xf32> to vector<8x1xf32>
    %242 = vector.broadcast %241 : vector<8x1xf32> to vector<8x5xf32>
    %243 = arith.select %240, %242, %226 : vector<8x5xi1>, vector<8x5xf32>
    %c0_i32_93 = arith.constant 0 : i32
    %244 = vector.broadcast %c0_i32_93 : i32 to vector<8x5xi32>
    %245 = arith.cmpi eq, %220, %244 : vector<8x5xi32>
    %246 = vector.shape_cast %238 : vector<8x1xi32> to vector<8x1xi32>
    %247 = vector.broadcast %246 : vector<8x1xi32> to vector<8x5xi32>
    %248 = arith.select %245, %247, %227 : vector<8x5xi1>, vector<8x5xi32>
    %249 = vector.extract_strided_slice %219 {offsets = [1, 0], sizes = [1, 5], strides = [1, 1]} : vector<5x5xf32> to vector<1x5xf32>
    %250 = vector.broadcast %249 : vector<1x5xf32> to vector<8x5xf32>
    %251 = arith.addf %225, %250 : vector<8x5xf32>
    %cst_94 = arith.constant dense<0xFF800000> : vector<8xf32>
    %252 = vector.multi_reduction <maximumf>, %251, %cst_94 [1] : vector<8x5xf32> to vector<8xf32>
    %253 = vector.shape_cast %252 : vector<8xf32> to vector<8x1xf32>
    %254 = vector.broadcast %253 : vector<8x1xf32> to vector<8x5xf32>
    %255 = arith.cmpf oeq, %251, %254 : vector<8x5xf32>
    %c5_i32_95 = arith.constant 5 : i32
    %256 = vector.broadcast %c5_i32_95 : i32 to vector<8x5xi32>
    %257 = arith.select %255, %220, %256 : vector<8x5xi1>, vector<8x5xi32>
    %cst_96 = arith.constant dense<2147483647> : vector<8xi32>
    %258 = vector.multi_reduction <minsi>, %257, %cst_96 [1] : vector<8x5xi32> to vector<8xi32>
    %259 = vector.shape_cast %258 : vector<8xi32> to vector<8x1xi32>
    %c1_i32 = arith.constant 1 : i32
    %260 = vector.broadcast %c1_i32 : i32 to vector<8x5xi32>
    %261 = arith.cmpi eq, %220, %260 : vector<8x5xi32>
    %262 = vector.shape_cast %253 : vector<8x1xf32> to vector<8x1xf32>
    %263 = vector.broadcast %262 : vector<8x1xf32> to vector<8x5xf32>
    %264 = arith.select %261, %263, %243 : vector<8x5xi1>, vector<8x5xf32>
    %c1_i32_97 = arith.constant 1 : i32
    %265 = vector.broadcast %c1_i32_97 : i32 to vector<8x5xi32>
    %266 = arith.cmpi eq, %220, %265 : vector<8x5xi32>
    %267 = vector.shape_cast %259 : vector<8x1xi32> to vector<8x1xi32>
    %268 = vector.broadcast %267 : vector<8x1xi32> to vector<8x5xi32>
    %269 = arith.select %266, %268, %248 : vector<8x5xi1>, vector<8x5xi32>
    %270 = vector.extract_strided_slice %219 {offsets = [2, 0], sizes = [1, 5], strides = [1, 1]} : vector<5x5xf32> to vector<1x5xf32>
    %271 = vector.broadcast %270 : vector<1x5xf32> to vector<8x5xf32>
    %272 = arith.addf %225, %271 : vector<8x5xf32>
    %cst_98 = arith.constant dense<0xFF800000> : vector<8xf32>
    %273 = vector.multi_reduction <maximumf>, %272, %cst_98 [1] : vector<8x5xf32> to vector<8xf32>
    %274 = vector.shape_cast %273 : vector<8xf32> to vector<8x1xf32>
    %275 = vector.broadcast %274 : vector<8x1xf32> to vector<8x5xf32>
    %276 = arith.cmpf oeq, %272, %275 : vector<8x5xf32>
    %c5_i32_99 = arith.constant 5 : i32
    %277 = vector.broadcast %c5_i32_99 : i32 to vector<8x5xi32>
    %278 = arith.select %276, %220, %277 : vector<8x5xi1>, vector<8x5xi32>
    %cst_100 = arith.constant dense<2147483647> : vector<8xi32>
    %279 = vector.multi_reduction <minsi>, %278, %cst_100 [1] : vector<8x5xi32> to vector<8xi32>
    %280 = vector.shape_cast %279 : vector<8xi32> to vector<8x1xi32>
    %c2_i32 = arith.constant 2 : i32
    %281 = vector.broadcast %c2_i32 : i32 to vector<8x5xi32>
    %282 = arith.cmpi eq, %220, %281 : vector<8x5xi32>
    %283 = vector.shape_cast %274 : vector<8x1xf32> to vector<8x1xf32>
    %284 = vector.broadcast %283 : vector<8x1xf32> to vector<8x5xf32>
    %285 = arith.select %282, %284, %264 : vector<8x5xi1>, vector<8x5xf32>
    %c2_i32_101 = arith.constant 2 : i32
    %286 = vector.broadcast %c2_i32_101 : i32 to vector<8x5xi32>
    %287 = arith.cmpi eq, %220, %286 : vector<8x5xi32>
    %288 = vector.shape_cast %280 : vector<8x1xi32> to vector<8x1xi32>
    %289 = vector.broadcast %288 : vector<8x1xi32> to vector<8x5xi32>
    %290 = arith.select %287, %289, %269 : vector<8x5xi1>, vector<8x5xi32>
    %291 = vector.extract_strided_slice %219 {offsets = [3, 0], sizes = [1, 5], strides = [1, 1]} : vector<5x5xf32> to vector<1x5xf32>
    %292 = vector.broadcast %291 : vector<1x5xf32> to vector<8x5xf32>
    %293 = arith.addf %225, %292 : vector<8x5xf32>
    %cst_102 = arith.constant dense<0xFF800000> : vector<8xf32>
    %294 = vector.multi_reduction <maximumf>, %293, %cst_102 [1] : vector<8x5xf32> to vector<8xf32>
    %295 = vector.shape_cast %294 : vector<8xf32> to vector<8x1xf32>
    %296 = vector.broadcast %295 : vector<8x1xf32> to vector<8x5xf32>
    %297 = arith.cmpf oeq, %293, %296 : vector<8x5xf32>
    %c5_i32_103 = arith.constant 5 : i32
    %298 = vector.broadcast %c5_i32_103 : i32 to vector<8x5xi32>
    %299 = arith.select %297, %220, %298 : vector<8x5xi1>, vector<8x5xi32>
    %cst_104 = arith.constant dense<2147483647> : vector<8xi32>
    %300 = vector.multi_reduction <minsi>, %299, %cst_104 [1] : vector<8x5xi32> to vector<8xi32>
    %301 = vector.shape_cast %300 : vector<8xi32> to vector<8x1xi32>
    %c3_i32_105 = arith.constant 3 : i32
    %302 = vector.broadcast %c3_i32_105 : i32 to vector<8x5xi32>
    %303 = arith.cmpi eq, %220, %302 : vector<8x5xi32>
    %304 = vector.shape_cast %295 : vector<8x1xf32> to vector<8x1xf32>
    %305 = vector.broadcast %304 : vector<8x1xf32> to vector<8x5xf32>
    %306 = arith.select %303, %305, %285 : vector<8x5xi1>, vector<8x5xf32>
    %c3_i32_106 = arith.constant 3 : i32
    %307 = vector.broadcast %c3_i32_106 : i32 to vector<8x5xi32>
    %308 = arith.cmpi eq, %220, %307 : vector<8x5xi32>
    %309 = vector.shape_cast %301 : vector<8x1xi32> to vector<8x1xi32>
    %310 = vector.broadcast %309 : vector<8x1xi32> to vector<8x5xi32>
    %311 = arith.select %308, %310, %290 : vector<8x5xi1>, vector<8x5xi32>
    %312 = vector.extract_strided_slice %219 {offsets = [4, 0], sizes = [1, 5], strides = [1, 1]} : vector<5x5xf32> to vector<1x5xf32>
    %313 = vector.broadcast %312 : vector<1x5xf32> to vector<8x5xf32>
    %314 = arith.addf %225, %313 : vector<8x5xf32>
    %cst_107 = arith.constant dense<0xFF800000> : vector<8xf32>
    %315 = vector.multi_reduction <maximumf>, %314, %cst_107 [1] : vector<8x5xf32> to vector<8xf32>
    %316 = vector.shape_cast %315 : vector<8xf32> to vector<8x1xf32>
    %317 = vector.broadcast %316 : vector<8x1xf32> to vector<8x5xf32>
    %318 = arith.cmpf oeq, %314, %317 : vector<8x5xf32>
    %c5_i32_108 = arith.constant 5 : i32
    %319 = vector.broadcast %c5_i32_108 : i32 to vector<8x5xi32>
    %320 = arith.select %318, %220, %319 : vector<8x5xi1>, vector<8x5xi32>
    %cst_109 = arith.constant dense<2147483647> : vector<8xi32>
    %321 = vector.multi_reduction <minsi>, %320, %cst_109 [1] : vector<8x5xi32> to vector<8xi32>
    %322 = vector.shape_cast %321 : vector<8xi32> to vector<8x1xi32>
    %c4_i32 = arith.constant 4 : i32
    %323 = vector.broadcast %c4_i32 : i32 to vector<8x5xi32>
    %324 = arith.cmpi eq, %220, %323 : vector<8x5xi32>
    %325 = vector.shape_cast %316 : vector<8x1xf32> to vector<8x1xf32>
    %326 = vector.broadcast %325 : vector<8x1xf32> to vector<8x5xf32>
    %327 = arith.select %324, %326, %306 : vector<8x5xi1>, vector<8x5xf32>
    %c4_i32_110 = arith.constant 4 : i32
    %328 = vector.broadcast %c4_i32_110 : i32 to vector<8x5xi32>
    %329 = arith.cmpi eq, %220, %328 : vector<8x5xi32>
    %330 = vector.shape_cast %322 : vector<8x1xi32> to vector<8x1xi32>
    %331 = vector.broadcast %330 : vector<8x1xi32> to vector<8x5xi32>
    %332 = arith.select %329, %331, %311 : vector<8x5xi1>, vector<8x5xi32>
    %333 = vector.extract_strided_slice %215 {offsets = [0, 0], sizes = [8, 5], strides = [1, 1]} : vector<64x5xf32> to vector<8x5xf32>
    %334 = arith.addf %327, %333 : vector<8x5xf32>
    %c0_111 = arith.constant 0 : index
    %c0_112 = arith.constant 0 : index
    %c0_113 = arith.constant 0 : index
    %335 = vector.load %arg12[%c0_111, %c0_112, %c0_113] : memref<1x64x5xi32, #tpu.memory_space<vmem>>, vector<1x8x5xi32>
    %336 = vector.shape_cast %335 : vector<1x8x5xi32> to vector<8x5xi32>
    %337 = vector.shape_cast %332 : vector<8x5xi32> to vector<1x8x5xi32>
    tpu.vector_store %arg12[%c0_111, %c0_112, %c0_113], %337 {strides = array<i32>} : memref<1x64x5xi32, #tpu.memory_space<vmem>>, vector<1x8x5xi32>,
    %cst_114 = arith.constant 0.000000e+00 : f32
    %338 = vector.broadcast %cst_114 : f32 to vector<8x5xf32>
    %c0_i32_115 = arith.constant 0 : i32
    %339 = vector.broadcast %c0_i32_115 : i32 to vector<8x5xi32>
    %340 = vector.extract_strided_slice %219 {offsets = [0, 0], sizes = [1, 5], strides = [1, 1]} : vector<5x5xf32> to vector<1x5xf32>
    %341 = vector.broadcast %340 : vector<1x5xf32> to vector<8x5xf32>
    %342 = arith.addf %334, %341 : vector<8x5xf32>
    %cst_116 = arith.constant dense<0xFF800000> : vector<8xf32>
    %343 = vector.multi_reduction <maximumf>, %342, %cst_116 [1] : vector<8x5xf32> to vector<8xf32>
    %344 = vector.shape_cast %343 : vector<8xf32> to vector<8x1xf32>
    %345 = vector.broadcast %344 : vector<8x1xf32> to vector<8x5xf32>
    %346 = arith.cmpf oeq, %342, %345 : vector<8x5xf32>
    %c5_i32_117 = arith.constant 5 : i32
    %347 = vector.broadcast %c5_i32_117 : i32 to vector<8x5xi32>
    %348 = arith.select %346, %220, %347 : vector<8x5xi1>, vector<8x5xi32>
    %cst_118 = arith.constant dense<2147483647> : vector<8xi32>
    %349 = vector.multi_reduction <minsi>, %348, %cst_118 [1] : vector<8x5xi32> to vector<8xi32>
    %350 = vector.shape_cast %349 : vector<8xi32> to vector<8x1xi32>
    %c0_i32_119 = arith.constant 0 : i32
    %351 = vector.broadcast %c0_i32_119 : i32 to vector<8x5xi32>
    %352 = arith.cmpi eq, %220, %351 : vector<8x5xi32>
    %353 = vector.shape_cast %344 : vector<8x1xf32> to vector<8x1xf32>
    %354 = vector.broadcast %353 : vector<8x1xf32> to vector<8x5xf32>
    %355 = arith.select %352, %354, %338 : vector<8x5xi1>, vector<8x5xf32>
    %c0_i32_120 = arith.constant 0 : i32
    %356 = vector.broadcast %c0_i32_120 : i32 to vector<8x5xi32>
    %357 = arith.cmpi eq, %220, %356 : vector<8x5xi32>
    %358 = vector.shape_cast %350 : vector<8x1xi32> to vector<8x1xi32>
    %359 = vector.broadcast %358 : vector<8x1xi32> to vector<8x5xi32>
    %360 = arith.select %357, %359, %339 : vector<8x5xi1>, vector<8x5xi32>
    %361 = vector.extract_strided_slice %219 {offsets = [1, 0], sizes = [1, 5], strides = [1, 1]} : vector<5x5xf32> to vector<1x5xf32>
    %362 = vector.broadcast %361 : vector<1x5xf32> to vector<8x5xf32>
    %363 = arith.addf %334, %362 : vector<8x5xf32>
    %cst_121 = arith.constant dense<0xFF800000> : vector<8xf32>
    %364 = vector.multi_reduction <maximumf>, %363, %cst_121 [1] : vector<8x5xf32> to vector<8xf32>
    %365 = vector.shape_cast %364 : vector<8xf32> to vector<8x1xf32>
    %366 = vector.broadcast %365 : vector<8x1xf32> to vector<8x5xf32>
    %367 = arith.cmpf oeq, %363, %366 : vector<8x5xf32>
    %c5_i32_122 = arith.constant 5 : i32
    %368 = vector.broadcast %c5_i32_122 : i32 to vector<8x5xi32>
    %369 = arith.select %367, %220, %368 : vector<8x5xi1>, vector<8x5xi32>
    %cst_123 = arith.constant dense<2147483647> : vector<8xi32>
    %370 = vector.multi_reduction <minsi>, %369, %cst_123 [1] : vector<8x5xi32> to vector<8xi32>
    %371 = vector.shape_cast %370 : vector<8xi32> to vector<8x1xi32>
    %c1_i32_124 = arith.constant 1 : i32
    %372 = vector.broadcast %c1_i32_124 : i32 to vector<8x5xi32>
    %373 = arith.cmpi eq, %220, %372 : vector<8x5xi32>
    %374 = vector.shape_cast %365 : vector<8x1xf32> to vector<8x1xf32>
    %375 = vector.broadcast %374 : vector<8x1xf32> to vector<8x5xf32>
    %376 = arith.select %373, %375, %355 : vector<8x5xi1>, vector<8x5xf32>
    %c1_i32_125 = arith.constant 1 : i32
    %377 = vector.broadcast %c1_i32_125 : i32 to vector<8x5xi32>
    %378 = arith.cmpi eq, %220, %377 : vector<8x5xi32>
    %379 = vector.shape_cast %371 : vector<8x1xi32> to vector<8x1xi32>
    %380 = vector.broadcast %379 : vector<8x1xi32> to vector<8x5xi32>
    %381 = arith.select %378, %380, %360 : vector<8x5xi1>, vector<8x5xi32>
    %382 = vector.extract_strided_slice %219 {offsets = [2, 0], sizes = [1, 5], strides = [1, 1]} : vector<5x5xf32> to vector<1x5xf32>
    %383 = vector.broadcast %382 : vector<1x5xf32> to vector<8x5xf32>
    %384 = arith.addf %334, %383 : vector<8x5xf32>
    %cst_126 = arith.constant dense<0xFF800000> : vector<8xf32>
    %385 = vector.multi_reduction <maximumf>, %384, %cst_126 [1] : vector<8x5xf32> to vector<8xf32>
    %386 = vector.shape_cast %385 : vector<8xf32> to vector<8x1xf32>
    %387 = vector.broadcast %386 : vector<8x1xf32> to vector<8x5xf32>
    %388 = arith.cmpf oeq, %384, %387 : vector<8x5xf32>
    %c5_i32_127 = arith.constant 5 : i32
    %389 = vector.broadcast %c5_i32_127 : i32 to vector<8x5xi32>
    %390 = arith.select %388, %220, %389 : vector<8x5xi1>, vector<8x5xi32>
    %cst_128 = arith.constant dense<2147483647> : vector<8xi32>
    %391 = vector.multi_reduction <minsi>, %390, %cst_128 [1] : vector<8x5xi32> to vector<8xi32>
    %392 = vector.shape_cast %391 : vector<8xi32> to vector<8x1xi32>
    %c2_i32_129 = arith.constant 2 : i32
    %393 = vector.broadcast %c2_i32_129 : i32 to vector<8x5xi32>
    %394 = arith.cmpi eq, %220, %393 : vector<8x5xi32>
    %395 = vector.shape_cast %386 : vector<8x1xf32> to vector<8x1xf32>
    %396 = vector.broadcast %395 : vector<8x1xf32> to vector<8x5xf32>
    %397 = arith.select %394, %396, %376 : vector<8x5xi1>, vector<8x5xf32>
    %c2_i32_130 = arith.constant 2 : i32
    %398 = vector.broadcast %c2_i32_130 : i32 to vector<8x5xi32>
    %399 = arith.cmpi eq, %220, %398 : vector<8x5xi32>
    %400 = vector.shape_cast %392 : vector<8x1xi32> to vector<8x1xi32>
    %401 = vector.broadcast %400 : vector<8x1xi32> to vector<8x5xi32>
    %402 = arith.select %399, %401, %381 : vector<8x5xi1>, vector<8x5xi32>
    %403 = vector.extract_strided_slice %219 {offsets = [3, 0], sizes = [1, 5], strides = [1, 1]} : vector<5x5xf32> to vector<1x5xf32>
    %404 = vector.broadcast %403 : vector<1x5xf32> to vector<8x5xf32>
    %405 = arith.addf %334, %404 : vector<8x5xf32>
    %cst_131 = arith.constant dense<0xFF800000> : vector<8xf32>
    %406 = vector.multi_reduction <maximumf>, %405, %cst_131 [1] : vector<8x5xf32> to vector<8xf32>
    %407 = vector.shape_cast %406 : vector<8xf32> to vector<8x1xf32>
    %408 = vector.broadcast %407 : vector<8x1xf32> to vector<8x5xf32>
    %409 = arith.cmpf oeq, %405, %408 : vector<8x5xf32>
    %c5_i32_132 = arith.constant 5 : i32
    %410 = vector.broadcast %c5_i32_132 : i32 to vector<8x5xi32>
    %411 = arith.select %409, %220, %410 : vector<8x5xi1>, vector<8x5xi32>
    %cst_133 = arith.constant dense<2147483647> : vector<8xi32>
    %412 = vector.multi_reduction <minsi>, %411, %cst_133 [1] : vector<8x5xi32> to vector<8xi32>
    %413 = vector.shape_cast %412 : vector<8xi32> to vector<8x1xi32>
    %c3_i32_134 = arith.constant 3 : i32
    %414 = vector.broadcast %c3_i32_134 : i32 to vector<8x5xi32>
    %415 = arith.cmpi eq, %220, %414 : vector<8x5xi32>
    %416 = vector.shape_cast %407 : vector<8x1xf32> to vector<8x1xf32>
    %417 = vector.broadcast %416 : vector<8x1xf32> to vector<8x5xf32>
    %418 = arith.select %415, %417, %397 : vector<8x5xi1>, vector<8x5xf32>
    %c3_i32_135 = arith.constant 3 : i32
    %419 = vector.broadcast %c3_i32_135 : i32 to vector<8x5xi32>
    %420 = arith.cmpi eq, %220, %419 : vector<8x5xi32>
    %421 = vector.shape_cast %413 : vector<8x1xi32> to vector<8x1xi32>
    %422 = vector.broadcast %421 : vector<8x1xi32> to vector<8x5xi32>
    %423 = arith.select %420, %422, %402 : vector<8x5xi1>, vector<8x5xi32>
    %424 = vector.extract_strided_slice %219 {offsets = [4, 0], sizes = [1, 5], strides = [1, 1]} : vector<5x5xf32> to vector<1x5xf32>
    %425 = vector.broadcast %424 : vector<1x5xf32> to vector<8x5xf32>
    %426 = arith.addf %334, %425 : vector<8x5xf32>
    %cst_136 = arith.constant dense<0xFF800000> : vector<8xf32>
    %427 = vector.multi_reduction <maximumf>, %426, %cst_136 [1] : vector<8x5xf32> to vector<8xf32>
    %428 = vector.shape_cast %427 : vector<8xf32> to vector<8x1xf32>
    %429 = vector.broadcast %428 : vector<8x1xf32> to vector<8x5xf32>
    %430 = arith.cmpf oeq, %426, %429 : vector<8x5xf32>
    %c5_i32_137 = arith.constant 5 : i32
    %431 = vector.broadcast %c5_i32_137 : i32 to vector<8x5xi32>
    %432 = arith.select %430, %220, %431 : vector<8x5xi1>, vector<8x5xi32>
    %cst_138 = arith.constant dense<2147483647> : vector<8xi32>
    %433 = vector.multi_reduction <minsi>, %432, %cst_138 [1] : vector<8x5xi32> to vector<8xi32>
    %434 = vector.shape_cast %433 : vector<8xi32> to vector<8x1xi32>
    %c4_i32_139 = arith.constant 4 : i32
    %435 = vector.broadcast %c4_i32_139 : i32 to vector<8x5xi32>
    %436 = arith.cmpi eq, %220, %435 : vector<8x5xi32>
    %437 = vector.shape_cast %428 : vector<8x1xf32> to vector<8x1xf32>
    %438 = vector.broadcast %437 : vector<8x1xf32> to vector<8x5xf32>
    %439 = arith.select %436, %438, %418 : vector<8x5xi1>, vector<8x5xf32>
    %c4_i32_140 = arith.constant 4 : i32
    %440 = vector.broadcast %c4_i32_140 : i32 to vector<8x5xi32>
    %441 = arith.cmpi eq, %220, %440 : vector<8x5xi32>
    %442 = vector.shape_cast %434 : vector<8x1xi32> to vector<8x1xi32>
    %443 = vector.broadcast %442 : vector<8x1xi32> to vector<8x5xi32>
    %444 = arith.select %441, %443, %423 : vector<8x5xi1>, vector<8x5xi32>
    %445 = vector.extract_strided_slice %215 {offsets = [8, 0], sizes = [8, 5], strides = [1, 1]} : vector<64x5xf32> to vector<8x5xf32>
    %446 = arith.addf %439, %445 : vector<8x5xf32>
    %c0_141 = arith.constant 0 : index
    %c8_142 = arith.constant 8 : index
    %c0_143 = arith.constant 0 : index
    %447 = vector.load %arg12[%c0_141, %c8_142, %c0_143] : memref<1x64x5xi32, #tpu.memory_space<vmem>>, vector<1x8x5xi32>
    %448 = vector.shape_cast %447 : vector<1x8x5xi32> to vector<8x5xi32>
    %449 = vector.shape_cast %444 : vector<8x5xi32> to vector<1x8x5xi32>
    tpu.vector_store %arg12[%c0_141, %c8_142, %c0_143], %449 {strides = array<i32>} : memref<1x64x5xi32, #tpu.memory_space<vmem>>, vector<1x8x5xi32>,
    %cst_144 = arith.constant 0.000000e+00 : f32
    %450 = vector.broadcast %cst_144 : f32 to vector<8x5xf32>
    %c0_i32_145 = arith.constant 0 : i32
    %451 = vector.broadcast %c0_i32_145 : i32 to vector<8x5xi32>
    %452 = vector.extract_strided_slice %219 {offsets = [0, 0], sizes = [1, 5], strides = [1, 1]} : vector<5x5xf32> to vector<1x5xf32>
    %453 = vector.broadcast %452 : vector<1x5xf32> to vector<8x5xf32>
    %454 = arith.addf %446, %453 : vector<8x5xf32>
    %cst_146 = arith.constant dense<0xFF800000> : vector<8xf32>
    %455 = vector.multi_reduction <maximumf>, %454, %cst_146 [1] : vector<8x5xf32> to vector<8xf32>
    %456 = vector.shape_cast %455 : vector<8xf32> to vector<8x1xf32>
    %457 = vector.broadcast %456 : vector<8x1xf32> to vector<8x5xf32>
    %458 = arith.cmpf oeq, %454, %457 : vector<8x5xf32>
    %c5_i32_147 = arith.constant 5 : i32
    %459 = vector.broadcast %c5_i32_147 : i32 to vector<8x5xi32>
    %460 = arith.select %458, %220, %459 : vector<8x5xi1>, vector<8x5xi32>
    %cst_148 = arith.constant dense<2147483647> : vector<8xi32>
    %461 = vector.multi_reduction <minsi>, %460, %cst_148 [1] : vector<8x5xi32> to vector<8xi32>
    %462 = vector.shape_cast %461 : vector<8xi32> to vector<8x1xi32>
    %c0_i32_149 = arith.constant 0 : i32
    %463 = vector.broadcast %c0_i32_149 : i32 to vector<8x5xi32>
    %464 = arith.cmpi eq, %220, %463 : vector<8x5xi32>
    %465 = vector.shape_cast %456 : vector<8x1xf32> to vector<8x1xf32>
    %466 = vector.broadcast %465 : vector<8x1xf32> to vector<8x5xf32>
    %467 = arith.select %464, %466, %450 : vector<8x5xi1>, vector<8x5xf32>
    %c0_i32_150 = arith.constant 0 : i32
    %468 = vector.broadcast %c0_i32_150 : i32 to vector<8x5xi32>
    %469 = arith.cmpi eq, %220, %468 : vector<8x5xi32>
    %470 = vector.shape_cast %462 : vector<8x1xi32> to vector<8x1xi32>
    %471 = vector.broadcast %470 : vector<8x1xi32> to vector<8x5xi32>
    %472 = arith.select %469, %471, %451 : vector<8x5xi1>, vector<8x5xi32>
    %473 = vector.extract_strided_slice %219 {offsets = [1, 0], sizes = [1, 5], strides = [1, 1]} : vector<5x5xf32> to vector<1x5xf32>
    %474 = vector.broadcast %473 : vector<1x5xf32> to vector<8x5xf32>
    %475 = arith.addf %446, %474 : vector<8x5xf32>
    %cst_151 = arith.constant dense<0xFF800000> : vector<8xf32>
    %476 = vector.multi_reduction <maximumf>, %475, %cst_151 [1] : vector<8x5xf32> to vector<8xf32>
    %477 = vector.shape_cast %476 : vector<8xf32> to vector<8x1xf32>
    %478 = vector.broadcast %477 : vector<8x1xf32> to vector<8x5xf32>
    %479 = arith.cmpf oeq, %475, %478 : vector<8x5xf32>
    %c5_i32_152 = arith.constant 5 : i32
    %480 = vector.broadcast %c5_i32_152 : i32 to vector<8x5xi32>
    %481 = arith.select %479, %220, %480 : vector<8x5xi1>, vector<8x5xi32>
    %cst_153 = arith.constant dense<2147483647> : vector<8xi32>
    %482 = vector.multi_reduction <minsi>, %481, %cst_153 [1] : vector<8x5xi32> to vector<8xi32>
    %483 = vector.shape_cast %482 : vector<8xi32> to vector<8x1xi32>
    %c1_i32_154 = arith.constant 1 : i32
    %484 = vector.broadcast %c1_i32_154 : i32 to vector<8x5xi32>
    %485 = arith.cmpi eq, %220, %484 : vector<8x5xi32>
    %486 = vector.shape_cast %477 : vector<8x1xf32> to vector<8x1xf32>
    %487 = vector.broadcast %486 : vector<8x1xf32> to vector<8x5xf32>
    %488 = arith.select %485, %487, %467 : vector<8x5xi1>, vector<8x5xf32>
    %c1_i32_155 = arith.constant 1 : i32
    %489 = vector.broadcast %c1_i32_155 : i32 to vector<8x5xi32>
    %490 = arith.cmpi eq, %220, %489 : vector<8x5xi32>
    %491 = vector.shape_cast %483 : vector<8x1xi32> to vector<8x1xi32>
    %492 = vector.broadcast %491 : vector<8x1xi32> to vector<8x5xi32>
    %493 = arith.select %490, %492, %472 : vector<8x5xi1>, vector<8x5xi32>
    %494 = vector.extract_strided_slice %219 {offsets = [2, 0], sizes = [1, 5], strides = [1, 1]} : vector<5x5xf32> to vector<1x5xf32>
    %495 = vector.broadcast %494 : vector<1x5xf32> to vector<8x5xf32>
    %496 = arith.addf %446, %495 : vector<8x5xf32>
    %cst_156 = arith.constant dense<0xFF800000> : vector<8xf32>
    %497 = vector.multi_reduction <maximumf>, %496, %cst_156 [1] : vector<8x5xf32> to vector<8xf32>
    %498 = vector.shape_cast %497 : vector<8xf32> to vector<8x1xf32>
    %499 = vector.broadcast %498 : vector<8x1xf32> to vector<8x5xf32>
    %500 = arith.cmpf oeq, %496, %499 : vector<8x5xf32>
    %c5_i32_157 = arith.constant 5 : i32
    %501 = vector.broadcast %c5_i32_157 : i32 to vector<8x5xi32>
    %502 = arith.select %500, %220, %501 : vector<8x5xi1>, vector<8x5xi32>
    %cst_158 = arith.constant dense<2147483647> : vector<8xi32>
    %503 = vector.multi_reduction <minsi>, %502, %cst_158 [1] : vector<8x5xi32> to vector<8xi32>
    %504 = vector.shape_cast %503 : vector<8xi32> to vector<8x1xi32>
    %c2_i32_159 = arith.constant 2 : i32
    %505 = vector.broadcast %c2_i32_159 : i32 to vector<8x5xi32>
    %506 = arith.cmpi eq, %220, %505 : vector<8x5xi32>
    %507 = vector.shape_cast %498 : vector<8x1xf32> to vector<8x1xf32>
    %508 = vector.broadcast %507 : vector<8x1xf32> to vector<8x5xf32>
    %509 = arith.select %506, %508, %488 : vector<8x5xi1>, vector<8x5xf32>
    %c2_i32_160 = arith.constant 2 : i32
    %510 = vector.broadcast %c2_i32_160 : i32 to vector<8x5xi32>
    %511 = arith.cmpi eq, %220, %510 : vector<8x5xi32>
    %512 = vector.shape_cast %504 : vector<8x1xi32> to vector<8x1xi32>
    %513 = vector.broadcast %512 : vector<8x1xi32> to vector<8x5xi32>
    %514 = arith.select %511, %513, %493 : vector<8x5xi1>, vector<8x5xi32>
    %515 = vector.extract_strided_slice %219 {offsets = [3, 0], sizes = [1, 5], strides = [1, 1]} : vector<5x5xf32> to vector<1x5xf32>
    %516 = vector.broadcast %515 : vector<1x5xf32> to vector<8x5xf32>
    %517 = arith.addf %446, %516 : vector<8x5xf32>
    %cst_161 = arith.constant dense<0xFF800000> : vector<8xf32>
    %518 = vector.multi_reduction <maximumf>, %517, %cst_161 [1] : vector<8x5xf32> to vector<8xf32>
    %519 = vector.shape_cast %518 : vector<8xf32> to vector<8x1xf32>
    %520 = vector.broadcast %519 : vector<8x1xf32> to vector<8x5xf32>
    %521 = arith.cmpf oeq, %517, %520 : vector<8x5xf32>
    %c5_i32_162 = arith.constant 5 : i32
    %522 = vector.broadcast %c5_i32_162 : i32 to vector<8x5xi32>
    %523 = arith.select %521, %220, %522 : vector<8x5xi1>, vector<8x5xi32>
    %cst_163 = arith.constant dense<2147483647> : vector<8xi32>
    %524 = vector.multi_reduction <minsi>, %523, %cst_163 [1] : vector<8x5xi32> to vector<8xi32>
    %525 = vector.shape_cast %524 : vector<8xi32> to vector<8x1xi32>
    %c3_i32_164 = arith.constant 3 : i32
    %526 = vector.broadcast %c3_i32_164 : i32 to vector<8x5xi32>
    %527 = arith.cmpi eq, %220, %526 : vector<8x5xi32>
    %528 = vector.shape_cast %519 : vector<8x1xf32> to vector<8x1xf32>
    %529 = vector.broadcast %528 : vector<8x1xf32> to vector<8x5xf32>
    %530 = arith.select %527, %529, %509 : vector<8x5xi1>, vector<8x5xf32>
    %c3_i32_165 = arith.constant 3 : i32
    %531 = vector.broadcast %c3_i32_165 : i32 to vector<8x5xi32>
    %532 = arith.cmpi eq, %220, %531 : vector<8x5xi32>
    %533 = vector.shape_cast %525 : vector<8x1xi32> to vector<8x1xi32>
    %534 = vector.broadcast %533 : vector<8x1xi32> to vector<8x5xi32>
    %535 = arith.select %532, %534, %514 : vector<8x5xi1>, vector<8x5xi32>
    %536 = vector.extract_strided_slice %219 {offsets = [4, 0], sizes = [1, 5], strides = [1, 1]} : vector<5x5xf32> to vector<1x5xf32>
    %537 = vector.broadcast %536 : vector<1x5xf32> to vector<8x5xf32>
    %538 = arith.addf %446, %537 : vector<8x5xf32>
    %cst_166 = arith.constant dense<0xFF800000> : vector<8xf32>
    %539 = vector.multi_reduction <maximumf>, %538, %cst_166 [1] : vector<8x5xf32> to vector<8xf32>
    %540 = vector.shape_cast %539 : vector<8xf32> to vector<8x1xf32>
    %541 = vector.broadcast %540 : vector<8x1xf32> to vector<8x5xf32>
    %542 = arith.cmpf oeq, %538, %541 : vector<8x5xf32>
    %c5_i32_167 = arith.constant 5 : i32
    %543 = vector.broadcast %c5_i32_167 : i32 to vector<8x5xi32>
    %544 = arith.select %542, %220, %543 : vector<8x5xi1>, vector<8x5xi32>
    %cst_168 = arith.constant dense<2147483647> : vector<8xi32>
    %545 = vector.multi_reduction <minsi>, %544, %cst_168 [1] : vector<8x5xi32> to vector<8xi32>
    %546 = vector.shape_cast %545 : vector<8xi32> to vector<8x1xi32>
    %c4_i32_169 = arith.constant 4 : i32
    %547 = vector.broadcast %c4_i32_169 : i32 to vector<8x5xi32>
    %548 = arith.cmpi eq, %220, %547 : vector<8x5xi32>
    %549 = vector.shape_cast %540 : vector<8x1xf32> to vector<8x1xf32>
    %550 = vector.broadcast %549 : vector<8x1xf32> to vector<8x5xf32>
    %551 = arith.select %548, %550, %530 : vector<8x5xi1>, vector<8x5xf32>
    %c4_i32_170 = arith.constant 4 : i32
    %552 = vector.broadcast %c4_i32_170 : i32 to vector<8x5xi32>
    %553 = arith.cmpi eq, %220, %552 : vector<8x5xi32>
    %554 = vector.shape_cast %546 : vector<8x1xi32> to vector<8x1xi32>
    %555 = vector.broadcast %554 : vector<8x1xi32> to vector<8x5xi32>
    %556 = arith.select %553, %555, %535 : vector<8x5xi1>, vector<8x5xi32>
    %557 = vector.extract_strided_slice %215 {offsets = [16, 0], sizes = [8, 5], strides = [1, 1]} : vector<64x5xf32> to vector<8x5xf32>
    %558 = arith.addf %551, %557 : vector<8x5xf32>
    %c0_171 = arith.constant 0 : index
    %c16_172 = arith.constant 16 : index
    %c0_173 = arith.constant 0 : index
    %559 = vector.load %arg12[%c0_171, %c16_172, %c0_173] : memref<1x64x5xi32, #tpu.memory_space<vmem>>, vector<1x8x5xi32>
    %560 = vector.shape_cast %559 : vector<1x8x5xi32> to vector<8x5xi32>
    %561 = vector.shape_cast %556 : vector<8x5xi32> to vector<1x8x5xi32>
    tpu.vector_store %arg12[%c0_171, %c16_172, %c0_173], %561 {strides = array<i32>} : memref<1x64x5xi32, #tpu.memory_space<vmem>>, vector<1x8x5xi32>,
    %cst_174 = arith.constant 0.000000e+00 : f32
    %562 = vector.broadcast %cst_174 : f32 to vector<8x5xf32>
    %c0_i32_175 = arith.constant 0 : i32
    %563 = vector.broadcast %c0_i32_175 : i32 to vector<8x5xi32>
    %564 = vector.extract_strided_slice %219 {offsets = [0, 0], sizes = [1, 5], strides = [1, 1]} : vector<5x5xf32> to vector<1x5xf32>
    %565 = vector.broadcast %564 : vector<1x5xf32> to vector<8x5xf32>
    %566 = arith.addf %558, %565 : vector<8x5xf32>
    %cst_176 = arith.constant dense<0xFF800000> : vector<8xf32>
    %567 = vector.multi_reduction <maximumf>, %566, %cst_176 [1] : vector<8x5xf32> to vector<8xf32>
    %568 = vector.shape_cast %567 : vector<8xf32> to vector<8x1xf32>
    %569 = vector.broadcast %568 : vector<8x1xf32> to vector<8x5xf32>
    %570 = arith.cmpf oeq, %566, %569 : vector<8x5xf32>
    %c5_i32_177 = arith.constant 5 : i32
    %571 = vector.broadcast %c5_i32_177 : i32 to vector<8x5xi32>
    %572 = arith.select %570, %220, %571 : vector<8x5xi1>, vector<8x5xi32>
    %cst_178 = arith.constant dense<2147483647> : vector<8xi32>
    %573 = vector.multi_reduction <minsi>, %572, %cst_178 [1] : vector<8x5xi32> to vector<8xi32>
    %574 = vector.shape_cast %573 : vector<8xi32> to vector<8x1xi32>
    %c0_i32_179 = arith.constant 0 : i32
    %575 = vector.broadcast %c0_i32_179 : i32 to vector<8x5xi32>
    %576 = arith.cmpi eq, %220, %575 : vector<8x5xi32>
    %577 = vector.shape_cast %568 : vector<8x1xf32> to vector<8x1xf32>
    %578 = vector.broadcast %577 : vector<8x1xf32> to vector<8x5xf32>
    %579 = arith.select %576, %578, %562 : vector<8x5xi1>, vector<8x5xf32>
    %c0_i32_180 = arith.constant 0 : i32
    %580 = vector.broadcast %c0_i32_180 : i32 to vector<8x5xi32>
    %581 = arith.cmpi eq, %220, %580 : vector<8x5xi32>
    %582 = vector.shape_cast %574 : vector<8x1xi32> to vector<8x1xi32>
    %583 = vector.broadcast %582 : vector<8x1xi32> to vector<8x5xi32>
    %584 = arith.select %581, %583, %563 : vector<8x5xi1>, vector<8x5xi32>
    %585 = vector.extract_strided_slice %219 {offsets = [1, 0], sizes = [1, 5], strides = [1, 1]} : vector<5x5xf32> to vector<1x5xf32>
    %586 = vector.broadcast %585 : vector<1x5xf32> to vector<8x5xf32>
    %587 = arith.addf %558, %586 : vector<8x5xf32>
    %cst_181 = arith.constant dense<0xFF800000> : vector<8xf32>
    %588 = vector.multi_reduction <maximumf>, %587, %cst_181 [1] : vector<8x5xf32> to vector<8xf32>
    %589 = vector.shape_cast %588 : vector<8xf32> to vector<8x1xf32>
    %590 = vector.broadcast %589 : vector<8x1xf32> to vector<8x5xf32>
    %591 = arith.cmpf oeq, %587, %590 : vector<8x5xf32>
    %c5_i32_182 = arith.constant 5 : i32
    %592 = vector.broadcast %c5_i32_182 : i32 to vector<8x5xi32>
    %593 = arith.select %591, %220, %592 : vector<8x5xi1>, vector<8x5xi32>
    %cst_183 = arith.constant dense<2147483647> : vector<8xi32>
    %594 = vector.multi_reduction <minsi>, %593, %cst_183 [1] : vector<8x5xi32> to vector<8xi32>
    %595 = vector.shape_cast %594 : vector<8xi32> to vector<8x1xi32>
    %c1_i32_184 = arith.constant 1 : i32
    %596 = vector.broadcast %c1_i32_184 : i32 to vector<8x5xi32>
    %597 = arith.cmpi eq, %220, %596 : vector<8x5xi32>
    %598 = vector.shape_cast %589 : vector<8x1xf32> to vector<8x1xf32>
    %599 = vector.broadcast %598 : vector<8x1xf32> to vector<8x5xf32>
    %600 = arith.select %597, %599, %579 : vector<8x5xi1>, vector<8x5xf32>
    %c1_i32_185 = arith.constant 1 : i32
    %601 = vector.broadcast %c1_i32_185 : i32 to vector<8x5xi32>
    %602 = arith.cmpi eq, %220, %601 : vector<8x5xi32>
    %603 = vector.shape_cast %595 : vector<8x1xi32> to vector<8x1xi32>
    %604 = vector.broadcast %603 : vector<8x1xi32> to vector<8x5xi32>
    %605 = arith.select %602, %604, %584 : vector<8x5xi1>, vector<8x5xi32>
    %606 = vector.extract_strided_slice %219 {offsets = [2, 0], sizes = [1, 5], strides = [1, 1]} : vector<5x5xf32> to vector<1x5xf32>
    %607 = vector.broadcast %606 : vector<1x5xf32> to vector<8x5xf32>
    %608 = arith.addf %558, %607 : vector<8x5xf32>
    %cst_186 = arith.constant dense<0xFF800000> : vector<8xf32>
    %609 = vector.multi_reduction <maximumf>, %608, %cst_186 [1] : vector<8x5xf32> to vector<8xf32>
    %610 = vector.shape_cast %609 : vector<8xf32> to vector<8x1xf32>
    %611 = vector.broadcast %610 : vector<8x1xf32> to vector<8x5xf32>
    %612 = arith.cmpf oeq, %608, %611 : vector<8x5xf32>
    %c5_i32_187 = arith.constant 5 : i32
    %613 = vector.broadcast %c5_i32_187 : i32 to vector<8x5xi32>
    %614 = arith.select %612, %220, %613 : vector<8x5xi1>, vector<8x5xi32>
    %cst_188 = arith.constant dense<2147483647> : vector<8xi32>
    %615 = vector.multi_reduction <minsi>, %614, %cst_188 [1] : vector<8x5xi32> to vector<8xi32>
    %616 = vector.shape_cast %615 : vector<8xi32> to vector<8x1xi32>
    %c2_i32_189 = arith.constant 2 : i32
    %617 = vector.broadcast %c2_i32_189 : i32 to vector<8x5xi32>
    %618 = arith.cmpi eq, %220, %617 : vector<8x5xi32>
    %619 = vector.shape_cast %610 : vector<8x1xf32> to vector<8x1xf32>
    %620 = vector.broadcast %619 : vector<8x1xf32> to vector<8x5xf32>
    %621 = arith.select %618, %620, %600 : vector<8x5xi1>, vector<8x5xf32>
    %c2_i32_190 = arith.constant 2 : i32
    %622 = vector.broadcast %c2_i32_190 : i32 to vector<8x5xi32>
    %623 = arith.cmpi eq, %220, %622 : vector<8x5xi32>
    %624 = vector.shape_cast %616 : vector<8x1xi32> to vector<8x1xi32>
    %625 = vector.broadcast %624 : vector<8x1xi32> to vector<8x5xi32>
    %626 = arith.select %623, %625, %605 : vector<8x5xi1>, vector<8x5xi32>
    %627 = vector.extract_strided_slice %219 {offsets = [3, 0], sizes = [1, 5], strides = [1, 1]} : vector<5x5xf32> to vector<1x5xf32>
    %628 = vector.broadcast %627 : vector<1x5xf32> to vector<8x5xf32>
    %629 = arith.addf %558, %628 : vector<8x5xf32>
    %cst_191 = arith.constant dense<0xFF800000> : vector<8xf32>
    %630 = vector.multi_reduction <maximumf>, %629, %cst_191 [1] : vector<8x5xf32> to vector<8xf32>
    %631 = vector.shape_cast %630 : vector<8xf32> to vector<8x1xf32>
    %632 = vector.broadcast %631 : vector<8x1xf32> to vector<8x5xf32>
    %633 = arith.cmpf oeq, %629, %632 : vector<8x5xf32>
    %c5_i32_192 = arith.constant 5 : i32
    %634 = vector.broadcast %c5_i32_192 : i32 to vector<8x5xi32>
    %635 = arith.select %633, %220, %634 : vector<8x5xi1>, vector<8x5xi32>
    %cst_193 = arith.constant dense<2147483647> : vector<8xi32>
    %636 = vector.multi_reduction <minsi>, %635, %cst_193 [1] : vector<8x5xi32> to vector<8xi32>
    %637 = vector.shape_cast %636 : vector<8xi32> to vector<8x1xi32>
    %c3_i32_194 = arith.constant 3 : i32
    %638 = vector.broadcast %c3_i32_194 : i32 to vector<8x5xi32>
    %639 = arith.cmpi eq, %220, %638 : vector<8x5xi32>
    %640 = vector.shape_cast %631 : vector<8x1xf32> to vector<8x1xf32>
    %641 = vector.broadcast %640 : vector<8x1xf32> to vector<8x5xf32>
    %642 = arith.select %639, %641, %621 : vector<8x5xi1>, vector<8x5xf32>
    %c3_i32_195 = arith.constant 3 : i32
    %643 = vector.broadcast %c3_i32_195 : i32 to vector<8x5xi32>
    %644 = arith.cmpi eq, %220, %643 : vector<8x5xi32>
    %645 = vector.shape_cast %637 : vector<8x1xi32> to vector<8x1xi32>
    %646 = vector.broadcast %645 : vector<8x1xi32> to vector<8x5xi32>
    %647 = arith.select %644, %646, %626 : vector<8x5xi1>, vector<8x5xi32>
    %648 = vector.extract_strided_slice %219 {offsets = [4, 0], sizes = [1, 5], strides = [1, 1]} : vector<5x5xf32> to vector<1x5xf32>
    %649 = vector.broadcast %648 : vector<1x5xf32> to vector<8x5xf32>
    %650 = arith.addf %558, %649 : vector<8x5xf32>
    %cst_196 = arith.constant dense<0xFF800000> : vector<8xf32>
    %651 = vector.multi_reduction <maximumf>, %650, %cst_196 [1] : vector<8x5xf32> to vector<8xf32>
    %652 = vector.shape_cast %651 : vector<8xf32> to vector<8x1xf32>
    %653 = vector.broadcast %652 : vector<8x1xf32> to vector<8x5xf32>
    %654 = arith.cmpf oeq, %650, %653 : vector<8x5xf32>
    %c5_i32_197 = arith.constant 5 : i32
    %655 = vector.broadcast %c5_i32_197 : i32 to vector<8x5xi32>
    %656 = arith.select %654, %220, %655 : vector<8x5xi1>, vector<8x5xi32>
    %cst_198 = arith.constant dense<2147483647> : vector<8xi32>
    %657 = vector.multi_reduction <minsi>, %656, %cst_198 [1] : vector<8x5xi32> to vector<8xi32>
    %658 = vector.shape_cast %657 : vector<8xi32> to vector<8x1xi32>
    %c4_i32_199 = arith.constant 4 : i32
    %659 = vector.broadcast %c4_i32_199 : i32 to vector<8x5xi32>
    %660 = arith.cmpi eq, %220, %659 : vector<8x5xi32>
    %661 = vector.shape_cast %652 : vector<8x1xf32> to vector<8x1xf32>
    %662 = vector.broadcast %661 : vector<8x1xf32> to vector<8x5xf32>
    %663 = arith.select %660, %662, %642 : vector<8x5xi1>, vector<8x5xf32>
    %c4_i32_200 = arith.constant 4 : i32
    %664 = vector.broadcast %c4_i32_200 : i32 to vector<8x5xi32>
    %665 = arith.cmpi eq, %220, %664 : vector<8x5xi32>
    %666 = vector.shape_cast %658 : vector<8x1xi32> to vector<8x1xi32>
    %667 = vector.broadcast %666 : vector<8x1xi32> to vector<8x5xi32>
    %668 = arith.select %665, %667, %647 : vector<8x5xi1>, vector<8x5xi32>
    %669 = vector.extract_strided_slice %215 {offsets = [24, 0], sizes = [8, 5], strides = [1, 1]} : vector<64x5xf32> to vector<8x5xf32>
    %670 = arith.addf %663, %669 : vector<8x5xf32>
    %c0_201 = arith.constant 0 : index
    %c24_202 = arith.constant 24 : index
    %c0_203 = arith.constant 0 : index
    %671 = vector.load %arg12[%c0_201, %c24_202, %c0_203] : memref<1x64x5xi32, #tpu.memory_space<vmem>>, vector<1x8x5xi32>
    %672 = vector.shape_cast %671 : vector<1x8x5xi32> to vector<8x5xi32>
    %673 = vector.shape_cast %668 : vector<8x5xi32> to vector<1x8x5xi32>
    tpu.vector_store %arg12[%c0_201, %c24_202, %c0_203], %673 {strides = array<i32>} : memref<1x64x5xi32, #tpu.memory_space<vmem>>, vector<1x8x5xi32>,
    %cst_204 = arith.constant 0.000000e+00 : f32
    %674 = vector.broadcast %cst_204 : f32 to vector<8x5xf32>
    %c0_i32_205 = arith.constant 0 : i32
    %675 = vector.broadcast %c0_i32_205 : i32 to vector<8x5xi32>
    %676 = vector.extract_strided_slice %219 {offsets = [0, 0], sizes = [1, 5], strides = [1, 1]} : vector<5x5xf32> to vector<1x5xf32>
    %677 = vector.broadcast %676 : vector<1x5xf32> to vector<8x5xf32>
    %678 = arith.addf %670, %677 : vector<8x5xf32>
    %cst_206 = arith.constant dense<0xFF800000> : vector<8xf32>
    %679 = vector.multi_reduction <maximumf>, %678, %cst_206 [1] : vector<8x5xf32> to vector<8xf32>
    %680 = vector.shape_cast %679 : vector<8xf32> to vector<8x1xf32>
    %681 = vector.broadcast %680 : vector<8x1xf32> to vector<8x5xf32>
    %682 = arith.cmpf oeq, %678, %681 : vector<8x5xf32>
    %c5_i32_207 = arith.constant 5 : i32
    %683 = vector.broadcast %c5_i32_207 : i32 to vector<8x5xi32>
    %684 = arith.select %682, %220, %683 : vector<8x5xi1>, vector<8x5xi32>
    %cst_208 = arith.constant dense<2147483647> : vector<8xi32>
    %685 = vector.multi_reduction <minsi>, %684, %cst_208 [1] : vector<8x5xi32> to vector<8xi32>
    %686 = vector.shape_cast %685 : vector<8xi32> to vector<8x1xi32>
    %c0_i32_209 = arith.constant 0 : i32
    %687 = vector.broadcast %c0_i32_209 : i32 to vector<8x5xi32>
    %688 = arith.cmpi eq, %220, %687 : vector<8x5xi32>
    %689 = vector.shape_cast %680 : vector<8x1xf32> to vector<8x1xf32>
    %690 = vector.broadcast %689 : vector<8x1xf32> to vector<8x5xf32>
    %691 = arith.select %688, %690, %674 : vector<8x5xi1>, vector<8x5xf32>
    %c0_i32_210 = arith.constant 0 : i32
    %692 = vector.broadcast %c0_i32_210 : i32 to vector<8x5xi32>
    %693 = arith.cmpi eq, %220, %692 : vector<8x5xi32>
    %694 = vector.shape_cast %686 : vector<8x1xi32> to vector<8x1xi32>
    %695 = vector.broadcast %694 : vector<8x1xi32> to vector<8x5xi32>
    %696 = arith.select %693, %695, %675 : vector<8x5xi1>, vector<8x5xi32>
    %697 = vector.extract_strided_slice %219 {offsets = [1, 0], sizes = [1, 5], strides = [1, 1]} : vector<5x5xf32> to vector<1x5xf32>
    %698 = vector.broadcast %697 : vector<1x5xf32> to vector<8x5xf32>
    %699 = arith.addf %670, %698 : vector<8x5xf32>
    %cst_211 = arith.constant dense<0xFF800000> : vector<8xf32>
    %700 = vector.multi_reduction <maximumf>, %699, %cst_211 [1] : vector<8x5xf32> to vector<8xf32>
    %701 = vector.shape_cast %700 : vector<8xf32> to vector<8x1xf32>
    %702 = vector.broadcast %701 : vector<8x1xf32> to vector<8x5xf32>
    %703 = arith.cmpf oeq, %699, %702 : vector<8x5xf32>
    %c5_i32_212 = arith.constant 5 : i32
    %704 = vector.broadcast %c5_i32_212 : i32 to vector<8x5xi32>
    %705 = arith.select %703, %220, %704 : vector<8x5xi1>, vector<8x5xi32>
    %cst_213 = arith.constant dense<2147483647> : vector<8xi32>
    %706 = vector.multi_reduction <minsi>, %705, %cst_213 [1] : vector<8x5xi32> to vector<8xi32>
    %707 = vector.shape_cast %706 : vector<8xi32> to vector<8x1xi32>
    %c1_i32_214 = arith.constant 1 : i32
    %708 = vector.broadcast %c1_i32_214 : i32 to vector<8x5xi32>
    %709 = arith.cmpi eq, %220, %708 : vector<8x5xi32>
    %710 = vector.shape_cast %701 : vector<8x1xf32> to vector<8x1xf32>
    %711 = vector.broadcast %710 : vector<8x1xf32> to vector<8x5xf32>
    %712 = arith.select %709, %711, %691 : vector<8x5xi1>, vector<8x5xf32>
    %c1_i32_215 = arith.constant 1 : i32
    %713 = vector.broadcast %c1_i32_215 : i32 to vector<8x5xi32>
    %714 = arith.cmpi eq, %220, %713 : vector<8x5xi32>
    %715 = vector.shape_cast %707 : vector<8x1xi32> to vector<8x1xi32>
    %716 = vector.broadcast %715 : vector<8x1xi32> to vector<8x5xi32>
    %717 = arith.select %714, %716, %696 : vector<8x5xi1>, vector<8x5xi32>
    %718 = vector.extract_strided_slice %219 {offsets = [2, 0], sizes = [1, 5], strides = [1, 1]} : vector<5x5xf32> to vector<1x5xf32>
    %719 = vector.broadcast %718 : vector<1x5xf32> to vector<8x5xf32>
    %720 = arith.addf %670, %719 : vector<8x5xf32>
    %cst_216 = arith.constant dense<0xFF800000> : vector<8xf32>
    %721 = vector.multi_reduction <maximumf>, %720, %cst_216 [1] : vector<8x5xf32> to vector<8xf32>
    %722 = vector.shape_cast %721 : vector<8xf32> to vector<8x1xf32>
    %723 = vector.broadcast %722 : vector<8x1xf32> to vector<8x5xf32>
    %724 = arith.cmpf oeq, %720, %723 : vector<8x5xf32>
    %c5_i32_217 = arith.constant 5 : i32
    %725 = vector.broadcast %c5_i32_217 : i32 to vector<8x5xi32>
    %726 = arith.select %724, %220, %725 : vector<8x5xi1>, vector<8x5xi32>
    %cst_218 = arith.constant dense<2147483647> : vector<8xi32>
    %727 = vector.multi_reduction <minsi>, %726, %cst_218 [1] : vector<8x5xi32> to vector<8xi32>
    %728 = vector.shape_cast %727 : vector<8xi32> to vector<8x1xi32>
    %c2_i32_219 = arith.constant 2 : i32
    %729 = vector.broadcast %c2_i32_219 : i32 to vector<8x5xi32>
    %730 = arith.cmpi eq, %220, %729 : vector<8x5xi32>
    %731 = vector.shape_cast %722 : vector<8x1xf32> to vector<8x1xf32>
    %732 = vector.broadcast %731 : vector<8x1xf32> to vector<8x5xf32>
    %733 = arith.select %730, %732, %712 : vector<8x5xi1>, vector<8x5xf32>
    %c2_i32_220 = arith.constant 2 : i32
    %734 = vector.broadcast %c2_i32_220 : i32 to vector<8x5xi32>
    %735 = arith.cmpi eq, %220, %734 : vector<8x5xi32>
    %736 = vector.shape_cast %728 : vector<8x1xi32> to vector<8x1xi32>
    %737 = vector.broadcast %736 : vector<8x1xi32> to vector<8x5xi32>
    %738 = arith.select %735, %737, %717 : vector<8x5xi1>, vector<8x5xi32>
    %739 = vector.extract_strided_slice %219 {offsets = [3, 0], sizes = [1, 5], strides = [1, 1]} : vector<5x5xf32> to vector<1x5xf32>
    %740 = vector.broadcast %739 : vector<1x5xf32> to vector<8x5xf32>
    %741 = arith.addf %670, %740 : vector<8x5xf32>
    %cst_221 = arith.constant dense<0xFF800000> : vector<8xf32>
    %742 = vector.multi_reduction <maximumf>, %741, %cst_221 [1] : vector<8x5xf32> to vector<8xf32>
    %743 = vector.shape_cast %742 : vector<8xf32> to vector<8x1xf32>
    %744 = vector.broadcast %743 : vector<8x1xf32> to vector<8x5xf32>
    %745 = arith.cmpf oeq, %741, %744 : vector<8x5xf32>
    %c5_i32_222 = arith.constant 5 : i32
    %746 = vector.broadcast %c5_i32_222 : i32 to vector<8x5xi32>
    %747 = arith.select %745, %220, %746 : vector<8x5xi1>, vector<8x5xi32>
    %cst_223 = arith.constant dense<2147483647> : vector<8xi32>
    %748 = vector.multi_reduction <minsi>, %747, %cst_223 [1] : vector<8x5xi32> to vector<8xi32>
    %749 = vector.shape_cast %748 : vector<8xi32> to vector<8x1xi32>
    %c3_i32_224 = arith.constant 3 : i32
    %750 = vector.broadcast %c3_i32_224 : i32 to vector<8x5xi32>
    %751 = arith.cmpi eq, %220, %750 : vector<8x5xi32>
    %752 = vector.shape_cast %743 : vector<8x1xf32> to vector<8x1xf32>
    %753 = vector.broadcast %752 : vector<8x1xf32> to vector<8x5xf32>
    %754 = arith.select %751, %753, %733 : vector<8x5xi1>, vector<8x5xf32>
    %c3_i32_225 = arith.constant 3 : i32
    %755 = vector.broadcast %c3_i32_225 : i32 to vector<8x5xi32>
    %756 = arith.cmpi eq, %220, %755 : vector<8x5xi32>
    %757 = vector.shape_cast %749 : vector<8x1xi32> to vector<8x1xi32>
    %758 = vector.broadcast %757 : vector<8x1xi32> to vector<8x5xi32>
    %759 = arith.select %756, %758, %738 : vector<8x5xi1>, vector<8x5xi32>
    %760 = vector.extract_strided_slice %219 {offsets = [4, 0], sizes = [1, 5], strides = [1, 1]} : vector<5x5xf32> to vector<1x5xf32>
    %761 = vector.broadcast %760 : vector<1x5xf32> to vector<8x5xf32>
    %762 = arith.addf %670, %761 : vector<8x5xf32>
    %cst_226 = arith.constant dense<0xFF800000> : vector<8xf32>
    %763 = vector.multi_reduction <maximumf>, %762, %cst_226 [1] : vector<8x5xf32> to vector<8xf32>
    %764 = vector.shape_cast %763 : vector<8xf32> to vector<8x1xf32>
    %765 = vector.broadcast %764 : vector<8x1xf32> to vector<8x5xf32>
    %766 = arith.cmpf oeq, %762, %765 : vector<8x5xf32>
    %c5_i32_227 = arith.constant 5 : i32
    %767 = vector.broadcast %c5_i32_227 : i32 to vector<8x5xi32>
    %768 = arith.select %766, %220, %767 : vector<8x5xi1>, vector<8x5xi32>
    %cst_228 = arith.constant dense<2147483647> : vector<8xi32>
    %769 = vector.multi_reduction <minsi>, %768, %cst_228 [1] : vector<8x5xi32> to vector<8xi32>
    %770 = vector.shape_cast %769 : vector<8xi32> to vector<8x1xi32>
    %c4_i32_229 = arith.constant 4 : i32
    %771 = vector.broadcast %c4_i32_229 : i32 to vector<8x5xi32>
    %772 = arith.cmpi eq, %220, %771 : vector<8x5xi32>
    %773 = vector.shape_cast %764 : vector<8x1xf32> to vector<8x1xf32>
    %774 = vector.broadcast %773 : vector<8x1xf32> to vector<8x5xf32>
    %775 = arith.select %772, %774, %754 : vector<8x5xi1>, vector<8x5xf32>
    %c4_i32_230 = arith.constant 4 : i32
    %776 = vector.broadcast %c4_i32_230 : i32 to vector<8x5xi32>
    %777 = arith.cmpi eq, %220, %776 : vector<8x5xi32>
    %778 = vector.shape_cast %770 : vector<8x1xi32> to vector<8x1xi32>
    %779 = vector.broadcast %778 : vector<8x1xi32> to vector<8x5xi32>
    %780 = arith.select %777, %779, %759 : vector<8x5xi1>, vector<8x5xi32>
    %781 = vector.extract_strided_slice %215 {offsets = [32, 0], sizes = [8, 5], strides = [1, 1]} : vector<64x5xf32> to vector<8x5xf32>
    %782 = arith.addf %775, %781 : vector<8x5xf32>
    %c0_231 = arith.constant 0 : index
    %c32_232 = arith.constant 32 : index
    %c0_233 = arith.constant 0 : index
    %783 = vector.load %arg12[%c0_231, %c32_232, %c0_233] : memref<1x64x5xi32, #tpu.memory_space<vmem>>, vector<1x8x5xi32>
    %784 = vector.shape_cast %783 : vector<1x8x5xi32> to vector<8x5xi32>
    %785 = vector.shape_cast %780 : vector<8x5xi32> to vector<1x8x5xi32>
    tpu.vector_store %arg12[%c0_231, %c32_232, %c0_233], %785 {strides = array<i32>} : memref<1x64x5xi32, #tpu.memory_space<vmem>>, vector<1x8x5xi32>,
    %cst_234 = arith.constant 0.000000e+00 : f32
    %786 = vector.broadcast %cst_234 : f32 to vector<8x5xf32>
    %c0_i32_235 = arith.constant 0 : i32
    %787 = vector.broadcast %c0_i32_235 : i32 to vector<8x5xi32>
    %788 = vector.extract_strided_slice %219 {offsets = [0, 0], sizes = [1, 5], strides = [1, 1]} : vector<5x5xf32> to vector<1x5xf32>
    %789 = vector.broadcast %788 : vector<1x5xf32> to vector<8x5xf32>
    %790 = arith.addf %782, %789 : vector<8x5xf32>
    %cst_236 = arith.constant dense<0xFF800000> : vector<8xf32>
    %791 = vector.multi_reduction <maximumf>, %790, %cst_236 [1] : vector<8x5xf32> to vector<8xf32>
    %792 = vector.shape_cast %791 : vector<8xf32> to vector<8x1xf32>
    %793 = vector.broadcast %792 : vector<8x1xf32> to vector<8x5xf32>
    %794 = arith.cmpf oeq, %790, %793 : vector<8x5xf32>
    %c5_i32_237 = arith.constant 5 : i32
    %795 = vector.broadcast %c5_i32_237 : i32 to vector<8x5xi32>
    %796 = arith.select %794, %220, %795 : vector<8x5xi1>, vector<8x5xi32>
    %cst_238 = arith.constant dense<2147483647> : vector<8xi32>
    %797 = vector.multi_reduction <minsi>, %796, %cst_238 [1] : vector<8x5xi32> to vector<8xi32>
    %798 = vector.shape_cast %797 : vector<8xi32> to vector<8x1xi32>
    %c0_i32_239 = arith.constant 0 : i32
    %799 = vector.broadcast %c0_i32_239 : i32 to vector<8x5xi32>
    %800 = arith.cmpi eq, %220, %799 : vector<8x5xi32>
    %801 = vector.shape_cast %792 : vector<8x1xf32> to vector<8x1xf32>
    %802 = vector.broadcast %801 : vector<8x1xf32> to vector<8x5xf32>
    %803 = arith.select %800, %802, %786 : vector<8x5xi1>, vector<8x5xf32>
    %c0_i32_240 = arith.constant 0 : i32
    %804 = vector.broadcast %c0_i32_240 : i32 to vector<8x5xi32>
    %805 = arith.cmpi eq, %220, %804 : vector<8x5xi32>
    %806 = vector.shape_cast %798 : vector<8x1xi32> to vector<8x1xi32>
    %807 = vector.broadcast %806 : vector<8x1xi32> to vector<8x5xi32>
    %808 = arith.select %805, %807, %787 : vector<8x5xi1>, vector<8x5xi32>
    %809 = vector.extract_strided_slice %219 {offsets = [1, 0], sizes = [1, 5], strides = [1, 1]} : vector<5x5xf32> to vector<1x5xf32>
    %810 = vector.broadcast %809 : vector<1x5xf32> to vector<8x5xf32>
    %811 = arith.addf %782, %810 : vector<8x5xf32>
    %cst_241 = arith.constant dense<0xFF800000> : vector<8xf32>
    %812 = vector.multi_reduction <maximumf>, %811, %cst_241 [1] : vector<8x5xf32> to vector<8xf32>
    %813 = vector.shape_cast %812 : vector<8xf32> to vector<8x1xf32>
    %814 = vector.broadcast %813 : vector<8x1xf32> to vector<8x5xf32>
    %815 = arith.cmpf oeq, %811, %814 : vector<8x5xf32>
    %c5_i32_242 = arith.constant 5 : i32
    %816 = vector.broadcast %c5_i32_242 : i32 to vector<8x5xi32>
    %817 = arith.select %815, %220, %816 : vector<8x5xi1>, vector<8x5xi32>
    %cst_243 = arith.constant dense<2147483647> : vector<8xi32>
    %818 = vector.multi_reduction <minsi>, %817, %cst_243 [1] : vector<8x5xi32> to vector<8xi32>
    %819 = vector.shape_cast %818 : vector<8xi32> to vector<8x1xi32>
    %c1_i32_244 = arith.constant 1 : i32
    %820 = vector.broadcast %c1_i32_244 : i32 to vector<8x5xi32>
    %821 = arith.cmpi eq, %220, %820 : vector<8x5xi32>
    %822 = vector.shape_cast %813 : vector<8x1xf32> to vector<8x1xf32>
    %823 = vector.broadcast %822 : vector<8x1xf32> to vector<8x5xf32>
    %824 = arith.select %821, %823, %803 : vector<8x5xi1>, vector<8x5xf32>
    %c1_i32_245 = arith.constant 1 : i32
    %825 = vector.broadcast %c1_i32_245 : i32 to vector<8x5xi32>
    %826 = arith.cmpi eq, %220, %825 : vector<8x5xi32>
    %827 = vector.shape_cast %819 : vector<8x1xi32> to vector<8x1xi32>
    %828 = vector.broadcast %827 : vector<8x1xi32> to vector<8x5xi32>
    %829 = arith.select %826, %828, %808 : vector<8x5xi1>, vector<8x5xi32>
    %830 = vector.extract_strided_slice %219 {offsets = [2, 0], sizes = [1, 5], strides = [1, 1]} : vector<5x5xf32> to vector<1x5xf32>
    %831 = vector.broadcast %830 : vector<1x5xf32> to vector<8x5xf32>
    %832 = arith.addf %782, %831 : vector<8x5xf32>
    %cst_246 = arith.constant dense<0xFF800000> : vector<8xf32>
    %833 = vector.multi_reduction <maximumf>, %832, %cst_246 [1] : vector<8x5xf32> to vector<8xf32>
    %834 = vector.shape_cast %833 : vector<8xf32> to vector<8x1xf32>
    %835 = vector.broadcast %834 : vector<8x1xf32> to vector<8x5xf32>
    %836 = arith.cmpf oeq, %832, %835 : vector<8x5xf32>
    %c5_i32_247 = arith.constant 5 : i32
    %837 = vector.broadcast %c5_i32_247 : i32 to vector<8x5xi32>
    %838 = arith.select %836, %220, %837 : vector<8x5xi1>, vector<8x5xi32>
    %cst_248 = arith.constant dense<2147483647> : vector<8xi32>
    %839 = vector.multi_reduction <minsi>, %838, %cst_248 [1] : vector<8x5xi32> to vector<8xi32>
    %840 = vector.shape_cast %839 : vector<8xi32> to vector<8x1xi32>
    %c2_i32_249 = arith.constant 2 : i32
    %841 = vector.broadcast %c2_i32_249 : i32 to vector<8x5xi32>
    %842 = arith.cmpi eq, %220, %841 : vector<8x5xi32>
    %843 = vector.shape_cast %834 : vector<8x1xf32> to vector<8x1xf32>
    %844 = vector.broadcast %843 : vector<8x1xf32> to vector<8x5xf32>
    %845 = arith.select %842, %844, %824 : vector<8x5xi1>, vector<8x5xf32>
    %c2_i32_250 = arith.constant 2 : i32
    %846 = vector.broadcast %c2_i32_250 : i32 to vector<8x5xi32>
    %847 = arith.cmpi eq, %220, %846 : vector<8x5xi32>
    %848 = vector.shape_cast %840 : vector<8x1xi32> to vector<8x1xi32>
    %849 = vector.broadcast %848 : vector<8x1xi32> to vector<8x5xi32>
    %850 = arith.select %847, %849, %829 : vector<8x5xi1>, vector<8x5xi32>
    %851 = vector.extract_strided_slice %219 {offsets = [3, 0], sizes = [1, 5], strides = [1, 1]} : vector<5x5xf32> to vector<1x5xf32>
    %852 = vector.broadcast %851 : vector<1x5xf32> to vector<8x5xf32>
    %853 = arith.addf %782, %852 : vector<8x5xf32>
    %cst_251 = arith.constant dense<0xFF800000> : vector<8xf32>
    %854 = vector.multi_reduction <maximumf>, %853, %cst_251 [1] : vector<8x5xf32> to vector<8xf32>
    %855 = vector.shape_cast %854 : vector<8xf32> to vector<8x1xf32>
    %856 = vector.broadcast %855 : vector<8x1xf32> to vector<8x5xf32>
    %857 = arith.cmpf oeq, %853, %856 : vector<8x5xf32>
    %c5_i32_252 = arith.constant 5 : i32
    %858 = vector.broadcast %c5_i32_252 : i32 to vector<8x5xi32>
    %859 = arith.select %857, %220, %858 : vector<8x5xi1>, vector<8x5xi32>
    %cst_253 = arith.constant dense<2147483647> : vector<8xi32>
    %860 = vector.multi_reduction <minsi>, %859, %cst_253 [1] : vector<8x5xi32> to vector<8xi32>
    %861 = vector.shape_cast %860 : vector<8xi32> to vector<8x1xi32>
    %c3_i32_254 = arith.constant 3 : i32
    %862 = vector.broadcast %c3_i32_254 : i32 to vector<8x5xi32>
    %863 = arith.cmpi eq, %220, %862 : vector<8x5xi32>
    %864 = vector.shape_cast %855 : vector<8x1xf32> to vector<8x1xf32>
    %865 = vector.broadcast %864 : vector<8x1xf32> to vector<8x5xf32>
    %866 = arith.select %863, %865, %845 : vector<8x5xi1>, vector<8x5xf32>
    %c3_i32_255 = arith.constant 3 : i32
    %867 = vector.broadcast %c3_i32_255 : i32 to vector<8x5xi32>
    %868 = arith.cmpi eq, %220, %867 : vector<8x5xi32>
    %869 = vector.shape_cast %861 : vector<8x1xi32> to vector<8x1xi32>
    %870 = vector.broadcast %869 : vector<8x1xi32> to vector<8x5xi32>
    %871 = arith.select %868, %870, %850 : vector<8x5xi1>, vector<8x5xi32>
    %872 = vector.extract_strided_slice %219 {offsets = [4, 0], sizes = [1, 5], strides = [1, 1]} : vector<5x5xf32> to vector<1x5xf32>
    %873 = vector.broadcast %872 : vector<1x5xf32> to vector<8x5xf32>
    %874 = arith.addf %782, %873 : vector<8x5xf32>
    %cst_256 = arith.constant dense<0xFF800000> : vector<8xf32>
    %875 = vector.multi_reduction <maximumf>, %874, %cst_256 [1] : vector<8x5xf32> to vector<8xf32>
    %876 = vector.shape_cast %875 : vector<8xf32> to vector<8x1xf32>
    %877 = vector.broadcast %876 : vector<8x1xf32> to vector<8x5xf32>
    %878 = arith.cmpf oeq, %874, %877 : vector<8x5xf32>
    %c5_i32_257 = arith.constant 5 : i32
    %879 = vector.broadcast %c5_i32_257 : i32 to vector<8x5xi32>
    %880 = arith.select %878, %220, %879 : vector<8x5xi1>, vector<8x5xi32>
    %cst_258 = arith.constant dense<2147483647> : vector<8xi32>
    %881 = vector.multi_reduction <minsi>, %880, %cst_258 [1] : vector<8x5xi32> to vector<8xi32>
    %882 = vector.shape_cast %881 : vector<8xi32> to vector<8x1xi32>
    %c4_i32_259 = arith.constant 4 : i32
    %883 = vector.broadcast %c4_i32_259 : i32 to vector<8x5xi32>
    %884 = arith.cmpi eq, %220, %883 : vector<8x5xi32>
    %885 = vector.shape_cast %876 : vector<8x1xf32> to vector<8x1xf32>
    %886 = vector.broadcast %885 : vector<8x1xf32> to vector<8x5xf32>
    %887 = arith.select %884, %886, %866 : vector<8x5xi1>, vector<8x5xf32>
    %c4_i32_260 = arith.constant 4 : i32
    %888 = vector.broadcast %c4_i32_260 : i32 to vector<8x5xi32>
    %889 = arith.cmpi eq, %220, %888 : vector<8x5xi32>
    %890 = vector.shape_cast %882 : vector<8x1xi32> to vector<8x1xi32>
    %891 = vector.broadcast %890 : vector<8x1xi32> to vector<8x5xi32>
    %892 = arith.select %889, %891, %871 : vector<8x5xi1>, vector<8x5xi32>
    %893 = vector.extract_strided_slice %215 {offsets = [40, 0], sizes = [8, 5], strides = [1, 1]} : vector<64x5xf32> to vector<8x5xf32>
    %894 = arith.addf %887, %893 : vector<8x5xf32>
    %c0_261 = arith.constant 0 : index
    %c40_262 = arith.constant 40 : index
    %c0_263 = arith.constant 0 : index
    %895 = vector.load %arg12[%c0_261, %c40_262, %c0_263] : memref<1x64x5xi32, #tpu.memory_space<vmem>>, vector<1x8x5xi32>
    %896 = vector.shape_cast %895 : vector<1x8x5xi32> to vector<8x5xi32>
    %897 = vector.shape_cast %892 : vector<8x5xi32> to vector<1x8x5xi32>
    tpu.vector_store %arg12[%c0_261, %c40_262, %c0_263], %897 {strides = array<i32>} : memref<1x64x5xi32, #tpu.memory_space<vmem>>, vector<1x8x5xi32>,
    %cst_264 = arith.constant 0.000000e+00 : f32
    %898 = vector.broadcast %cst_264 : f32 to vector<8x5xf32>
    %c0_i32_265 = arith.constant 0 : i32
    %899 = vector.broadcast %c0_i32_265 : i32 to vector<8x5xi32>
    %900 = vector.extract_strided_slice %219 {offsets = [0, 0], sizes = [1, 5], strides = [1, 1]} : vector<5x5xf32> to vector<1x5xf32>
    %901 = vector.broadcast %900 : vector<1x5xf32> to vector<8x5xf32>
    %902 = arith.addf %894, %901 : vector<8x5xf32>
    %cst_266 = arith.constant dense<0xFF800000> : vector<8xf32>
    %903 = vector.multi_reduction <maximumf>, %902, %cst_266 [1] : vector<8x5xf32> to vector<8xf32>
    %904 = vector.shape_cast %903 : vector<8xf32> to vector<8x1xf32>
    %905 = vector.broadcast %904 : vector<8x1xf32> to vector<8x5xf32>
    %906 = arith.cmpf oeq, %902, %905 : vector<8x5xf32>
    %c5_i32_267 = arith.constant 5 : i32
    %907 = vector.broadcast %c5_i32_267 : i32 to vector<8x5xi32>
    %908 = arith.select %906, %220, %907 : vector<8x5xi1>, vector<8x5xi32>
    %cst_268 = arith.constant dense<2147483647> : vector<8xi32>
    %909 = vector.multi_reduction <minsi>, %908, %cst_268 [1] : vector<8x5xi32> to vector<8xi32>
    %910 = vector.shape_cast %909 : vector<8xi32> to vector<8x1xi32>
    %c0_i32_269 = arith.constant 0 : i32
    %911 = vector.broadcast %c0_i32_269 : i32 to vector<8x5xi32>
    %912 = arith.cmpi eq, %220, %911 : vector<8x5xi32>
    %913 = vector.shape_cast %904 : vector<8x1xf32> to vector<8x1xf32>
    %914 = vector.broadcast %913 : vector<8x1xf32> to vector<8x5xf32>
    %915 = arith.select %912, %914, %898 : vector<8x5xi1>, vector<8x5xf32>
    %c0_i32_270 = arith.constant 0 : i32
    %916 = vector.broadcast %c0_i32_270 : i32 to vector<8x5xi32>
    %917 = arith.cmpi eq, %220, %916 : vector<8x5xi32>
    %918 = vector.shape_cast %910 : vector<8x1xi32> to vector<8x1xi32>
    %919 = vector.broadcast %918 : vector<8x1xi32> to vector<8x5xi32>
    %920 = arith.select %917, %919, %899 : vector<8x5xi1>, vector<8x5xi32>
    %921 = vector.extract_strided_slice %219 {offsets = [1, 0], sizes = [1, 5], strides = [1, 1]} : vector<5x5xf32> to vector<1x5xf32>
    %922 = vector.broadcast %921 : vector<1x5xf32> to vector<8x5xf32>
    %923 = arith.addf %894, %922 : vector<8x5xf32>
    %cst_271 = arith.constant dense<0xFF800000> : vector<8xf32>
    %924 = vector.multi_reduction <maximumf>, %923, %cst_271 [1] : vector<8x5xf32> to vector<8xf32>
    %925 = vector.shape_cast %924 : vector<8xf32> to vector<8x1xf32>
    %926 = vector.broadcast %925 : vector<8x1xf32> to vector<8x5xf32>
    %927 = arith.cmpf oeq, %923, %926 : vector<8x5xf32>
    %c5_i32_272 = arith.constant 5 : i32
    %928 = vector.broadcast %c5_i32_272 : i32 to vector<8x5xi32>
    %929 = arith.select %927, %220, %928 : vector<8x5xi1>, vector<8x5xi32>
    %cst_273 = arith.constant dense<2147483647> : vector<8xi32>
    %930 = vector.multi_reduction <minsi>, %929, %cst_273 [1] : vector<8x5xi32> to vector<8xi32>
    %931 = vector.shape_cast %930 : vector<8xi32> to vector<8x1xi32>
    %c1_i32_274 = arith.constant 1 : i32
    %932 = vector.broadcast %c1_i32_274 : i32 to vector<8x5xi32>
    %933 = arith.cmpi eq, %220, %932 : vector<8x5xi32>
    %934 = vector.shape_cast %925 : vector<8x1xf32> to vector<8x1xf32>
    %935 = vector.broadcast %934 : vector<8x1xf32> to vector<8x5xf32>
    %936 = arith.select %933, %935, %915 : vector<8x5xi1>, vector<8x5xf32>
    %c1_i32_275 = arith.constant 1 : i32
    %937 = vector.broadcast %c1_i32_275 : i32 to vector<8x5xi32>
    %938 = arith.cmpi eq, %220, %937 : vector<8x5xi32>
    %939 = vector.shape_cast %931 : vector<8x1xi32> to vector<8x1xi32>
    %940 = vector.broadcast %939 : vector<8x1xi32> to vector<8x5xi32>
    %941 = arith.select %938, %940, %920 : vector<8x5xi1>, vector<8x5xi32>
    %942 = vector.extract_strided_slice %219 {offsets = [2, 0], sizes = [1, 5], strides = [1, 1]} : vector<5x5xf32> to vector<1x5xf32>
    %943 = vector.broadcast %942 : vector<1x5xf32> to vector<8x5xf32>
    %944 = arith.addf %894, %943 : vector<8x5xf32>
    %cst_276 = arith.constant dense<0xFF800000> : vector<8xf32>
    %945 = vector.multi_reduction <maximumf>, %944, %cst_276 [1] : vector<8x5xf32> to vector<8xf32>
    %946 = vector.shape_cast %945 : vector<8xf32> to vector<8x1xf32>
    %947 = vector.broadcast %946 : vector<8x1xf32> to vector<8x5xf32>
    %948 = arith.cmpf oeq, %944, %947 : vector<8x5xf32>
    %c5_i32_277 = arith.constant 5 : i32
    %949 = vector.broadcast %c5_i32_277 : i32 to vector<8x5xi32>
    %950 = arith.select %948, %220, %949 : vector<8x5xi1>, vector<8x5xi32>
    %cst_278 = arith.constant dense<2147483647> : vector<8xi32>
    %951 = vector.multi_reduction <minsi>, %950, %cst_278 [1] : vector<8x5xi32> to vector<8xi32>
    %952 = vector.shape_cast %951 : vector<8xi32> to vector<8x1xi32>
    %c2_i32_279 = arith.constant 2 : i32
    %953 = vector.broadcast %c2_i32_279 : i32 to vector<8x5xi32>
    %954 = arith.cmpi eq, %220, %953 : vector<8x5xi32>
    %955 = vector.shape_cast %946 : vector<8x1xf32> to vector<8x1xf32>
    %956 = vector.broadcast %955 : vector<8x1xf32> to vector<8x5xf32>
    %957 = arith.select %954, %956, %936 : vector<8x5xi1>, vector<8x5xf32>
    %c2_i32_280 = arith.constant 2 : i32
    %958 = vector.broadcast %c2_i32_280 : i32 to vector<8x5xi32>
    %959 = arith.cmpi eq, %220, %958 : vector<8x5xi32>
    %960 = vector.shape_cast %952 : vector<8x1xi32> to vector<8x1xi32>
    %961 = vector.broadcast %960 : vector<8x1xi32> to vector<8x5xi32>
    %962 = arith.select %959, %961, %941 : vector<8x5xi1>, vector<8x5xi32>
    %963 = vector.extract_strided_slice %219 {offsets = [3, 0], sizes = [1, 5], strides = [1, 1]} : vector<5x5xf32> to vector<1x5xf32>
    %964 = vector.broadcast %963 : vector<1x5xf32> to vector<8x5xf32>
    %965 = arith.addf %894, %964 : vector<8x5xf32>
    %cst_281 = arith.constant dense<0xFF800000> : vector<8xf32>
    %966 = vector.multi_reduction <maximumf>, %965, %cst_281 [1] : vector<8x5xf32> to vector<8xf32>
    %967 = vector.shape_cast %966 : vector<8xf32> to vector<8x1xf32>
    %968 = vector.broadcast %967 : vector<8x1xf32> to vector<8x5xf32>
    %969 = arith.cmpf oeq, %965, %968 : vector<8x5xf32>
    %c5_i32_282 = arith.constant 5 : i32
    %970 = vector.broadcast %c5_i32_282 : i32 to vector<8x5xi32>
    %971 = arith.select %969, %220, %970 : vector<8x5xi1>, vector<8x5xi32>
    %cst_283 = arith.constant dense<2147483647> : vector<8xi32>
    %972 = vector.multi_reduction <minsi>, %971, %cst_283 [1] : vector<8x5xi32> to vector<8xi32>
    %973 = vector.shape_cast %972 : vector<8xi32> to vector<8x1xi32>
    %c3_i32_284 = arith.constant 3 : i32
    %974 = vector.broadcast %c3_i32_284 : i32 to vector<8x5xi32>
    %975 = arith.cmpi eq, %220, %974 : vector<8x5xi32>
    %976 = vector.shape_cast %967 : vector<8x1xf32> to vector<8x1xf32>
    %977 = vector.broadcast %976 : vector<8x1xf32> to vector<8x5xf32>
    %978 = arith.select %975, %977, %957 : vector<8x5xi1>, vector<8x5xf32>
    %c3_i32_285 = arith.constant 3 : i32
    %979 = vector.broadcast %c3_i32_285 : i32 to vector<8x5xi32>
    %980 = arith.cmpi eq, %220, %979 : vector<8x5xi32>
    %981 = vector.shape_cast %973 : vector<8x1xi32> to vector<8x1xi32>
    %982 = vector.broadcast %981 : vector<8x1xi32> to vector<8x5xi32>
    %983 = arith.select %980, %982, %962 : vector<8x5xi1>, vector<8x5xi32>
    %984 = vector.extract_strided_slice %219 {offsets = [4, 0], sizes = [1, 5], strides = [1, 1]} : vector<5x5xf32> to vector<1x5xf32>
    %985 = vector.broadcast %984 : vector<1x5xf32> to vector<8x5xf32>
    %986 = arith.addf %894, %985 : vector<8x5xf32>
    %cst_286 = arith.constant dense<0xFF800000> : vector<8xf32>
    %987 = vector.multi_reduction <maximumf>, %986, %cst_286 [1] : vector<8x5xf32> to vector<8xf32>
    %988 = vector.shape_cast %987 : vector<8xf32> to vector<8x1xf32>
    %989 = vector.broadcast %988 : vector<8x1xf32> to vector<8x5xf32>
    %990 = arith.cmpf oeq, %986, %989 : vector<8x5xf32>
    %c5_i32_287 = arith.constant 5 : i32
    %991 = vector.broadcast %c5_i32_287 : i32 to vector<8x5xi32>
    %992 = arith.select %990, %220, %991 : vector<8x5xi1>, vector<8x5xi32>
    %cst_288 = arith.constant dense<2147483647> : vector<8xi32>
    %993 = vector.multi_reduction <minsi>, %992, %cst_288 [1] : vector<8x5xi32> to vector<8xi32>
    %994 = vector.shape_cast %993 : vector<8xi32> to vector<8x1xi32>
    %c4_i32_289 = arith.constant 4 : i32
    %995 = vector.broadcast %c4_i32_289 : i32 to vector<8x5xi32>
    %996 = arith.cmpi eq, %220, %995 : vector<8x5xi32>
    %997 = vector.shape_cast %988 : vector<8x1xf32> to vector<8x1xf32>
    %998 = vector.broadcast %997 : vector<8x1xf32> to vector<8x5xf32>
    %999 = arith.select %996, %998, %978 : vector<8x5xi1>, vector<8x5xf32>
    %c4_i32_290 = arith.constant 4 : i32
    %1000 = vector.broadcast %c4_i32_290 : i32 to vector<8x5xi32>
    %1001 = arith.cmpi eq, %220, %1000 : vector<8x5xi32>
    %1002 = vector.shape_cast %994 : vector<8x1xi32> to vector<8x1xi32>
    %1003 = vector.broadcast %1002 : vector<8x1xi32> to vector<8x5xi32>
    %1004 = arith.select %1001, %1003, %983 : vector<8x5xi1>, vector<8x5xi32>
    %1005 = vector.extract_strided_slice %215 {offsets = [48, 0], sizes = [8, 5], strides = [1, 1]} : vector<64x5xf32> to vector<8x5xf32>
    %1006 = arith.addf %999, %1005 : vector<8x5xf32>
    %c0_291 = arith.constant 0 : index
    %c48_292 = arith.constant 48 : index
    %c0_293 = arith.constant 0 : index
    %1007 = vector.load %arg12[%c0_291, %c48_292, %c0_293] : memref<1x64x5xi32, #tpu.memory_space<vmem>>, vector<1x8x5xi32>
    %1008 = vector.shape_cast %1007 : vector<1x8x5xi32> to vector<8x5xi32>
    %1009 = vector.shape_cast %1004 : vector<8x5xi32> to vector<1x8x5xi32>
    tpu.vector_store %arg12[%c0_291, %c48_292, %c0_293], %1009 {strides = array<i32>} : memref<1x64x5xi32, #tpu.memory_space<vmem>>, vector<1x8x5xi32>,
    %cst_294 = arith.constant 0.000000e+00 : f32
    %1010 = vector.broadcast %cst_294 : f32 to vector<8x5xf32>
    %c0_i32_295 = arith.constant 0 : i32
    %1011 = vector.broadcast %c0_i32_295 : i32 to vector<8x5xi32>
    %1012 = vector.extract_strided_slice %219 {offsets = [0, 0], sizes = [1, 5], strides = [1, 1]} : vector<5x5xf32> to vector<1x5xf32>
    %1013 = vector.broadcast %1012 : vector<1x5xf32> to vector<8x5xf32>
    %1014 = arith.addf %1006, %1013 : vector<8x5xf32>
    %cst_296 = arith.constant dense<0xFF800000> : vector<8xf32>
    %1015 = vector.multi_reduction <maximumf>, %1014, %cst_296 [1] : vector<8x5xf32> to vector<8xf32>
    %1016 = vector.shape_cast %1015 : vector<8xf32> to vector<8x1xf32>
    %1017 = vector.broadcast %1016 : vector<8x1xf32> to vector<8x5xf32>
    %1018 = arith.cmpf oeq, %1014, %1017 : vector<8x5xf32>
    %c5_i32_297 = arith.constant 5 : i32
    %1019 = vector.broadcast %c5_i32_297 : i32 to vector<8x5xi32>
    %1020 = arith.select %1018, %220, %1019 : vector<8x5xi1>, vector<8x5xi32>
    %cst_298 = arith.constant dense<2147483647> : vector<8xi32>
    %1021 = vector.multi_reduction <minsi>, %1020, %cst_298 [1] : vector<8x5xi32> to vector<8xi32>
    %1022 = vector.shape_cast %1021 : vector<8xi32> to vector<8x1xi32>
    %c0_i32_299 = arith.constant 0 : i32
    %1023 = vector.broadcast %c0_i32_299 : i32 to vector<8x5xi32>
    %1024 = arith.cmpi eq, %220, %1023 : vector<8x5xi32>
    %1025 = vector.shape_cast %1016 : vector<8x1xf32> to vector<8x1xf32>
    %1026 = vector.broadcast %1025 : vector<8x1xf32> to vector<8x5xf32>
    %1027 = arith.select %1024, %1026, %1010 : vector<8x5xi1>, vector<8x5xf32>
    %c0_i32_300 = arith.constant 0 : i32
    %1028 = vector.broadcast %c0_i32_300 : i32 to vector<8x5xi32>
    %1029 = arith.cmpi eq, %220, %1028 : vector<8x5xi32>
    %1030 = vector.shape_cast %1022 : vector<8x1xi32> to vector<8x1xi32>
    %1031 = vector.broadcast %1030 : vector<8x1xi32> to vector<8x5xi32>
    %1032 = arith.select %1029, %1031, %1011 : vector<8x5xi1>, vector<8x5xi32>
    %1033 = vector.extract_strided_slice %219 {offsets = [1, 0], sizes = [1, 5], strides = [1, 1]} : vector<5x5xf32> to vector<1x5xf32>
    %1034 = vector.broadcast %1033 : vector<1x5xf32> to vector<8x5xf32>
    %1035 = arith.addf %1006, %1034 : vector<8x5xf32>
    %cst_301 = arith.constant dense<0xFF800000> : vector<8xf32>
    %1036 = vector.multi_reduction <maximumf>, %1035, %cst_301 [1] : vector<8x5xf32> to vector<8xf32>
    %1037 = vector.shape_cast %1036 : vector<8xf32> to vector<8x1xf32>
    %1038 = vector.broadcast %1037 : vector<8x1xf32> to vector<8x5xf32>
    %1039 = arith.cmpf oeq, %1035, %1038 : vector<8x5xf32>
    %c5_i32_302 = arith.constant 5 : i32
    %1040 = vector.broadcast %c5_i32_302 : i32 to vector<8x5xi32>
    %1041 = arith.select %1039, %220, %1040 : vector<8x5xi1>, vector<8x5xi32>
    %cst_303 = arith.constant dense<2147483647> : vector<8xi32>
    %1042 = vector.multi_reduction <minsi>, %1041, %cst_303 [1] : vector<8x5xi32> to vector<8xi32>
    %1043 = vector.shape_cast %1042 : vector<8xi32> to vector<8x1xi32>
    %c1_i32_304 = arith.constant 1 : i32
    %1044 = vector.broadcast %c1_i32_304 : i32 to vector<8x5xi32>
    %1045 = arith.cmpi eq, %220, %1044 : vector<8x5xi32>
    %1046 = vector.shape_cast %1037 : vector<8x1xf32> to vector<8x1xf32>
    %1047 = vector.broadcast %1046 : vector<8x1xf32> to vector<8x5xf32>
    %1048 = arith.select %1045, %1047, %1027 : vector<8x5xi1>, vector<8x5xf32>
    %c1_i32_305 = arith.constant 1 : i32
    %1049 = vector.broadcast %c1_i32_305 : i32 to vector<8x5xi32>
    %1050 = arith.cmpi eq, %220, %1049 : vector<8x5xi32>
    %1051 = vector.shape_cast %1043 : vector<8x1xi32> to vector<8x1xi32>
    %1052 = vector.broadcast %1051 : vector<8x1xi32> to vector<8x5xi32>
    %1053 = arith.select %1050, %1052, %1032 : vector<8x5xi1>, vector<8x5xi32>
    %1054 = vector.extract_strided_slice %219 {offsets = [2, 0], sizes = [1, 5], strides = [1, 1]} : vector<5x5xf32> to vector<1x5xf32>
    %1055 = vector.broadcast %1054 : vector<1x5xf32> to vector<8x5xf32>
    %1056 = arith.addf %1006, %1055 : vector<8x5xf32>
    %cst_306 = arith.constant dense<0xFF800000> : vector<8xf32>
    %1057 = vector.multi_reduction <maximumf>, %1056, %cst_306 [1] : vector<8x5xf32> to vector<8xf32>
    %1058 = vector.shape_cast %1057 : vector<8xf32> to vector<8x1xf32>
    %1059 = vector.broadcast %1058 : vector<8x1xf32> to vector<8x5xf32>
    %1060 = arith.cmpf oeq, %1056, %1059 : vector<8x5xf32>
    %c5_i32_307 = arith.constant 5 : i32
    %1061 = vector.broadcast %c5_i32_307 : i32 to vector<8x5xi32>
    %1062 = arith.select %1060, %220, %1061 : vector<8x5xi1>, vector<8x5xi32>
    %cst_308 = arith.constant dense<2147483647> : vector<8xi32>
    %1063 = vector.multi_reduction <minsi>, %1062, %cst_308 [1] : vector<8x5xi32> to vector<8xi32>
    %1064 = vector.shape_cast %1063 : vector<8xi32> to vector<8x1xi32>
    %c2_i32_309 = arith.constant 2 : i32
    %1065 = vector.broadcast %c2_i32_309 : i32 to vector<8x5xi32>
    %1066 = arith.cmpi eq, %220, %1065 : vector<8x5xi32>
    %1067 = vector.shape_cast %1058 : vector<8x1xf32> to vector<8x1xf32>
    %1068 = vector.broadcast %1067 : vector<8x1xf32> to vector<8x5xf32>
    %1069 = arith.select %1066, %1068, %1048 : vector<8x5xi1>, vector<8x5xf32>
    %c2_i32_310 = arith.constant 2 : i32
    %1070 = vector.broadcast %c2_i32_310 : i32 to vector<8x5xi32>
    %1071 = arith.cmpi eq, %220, %1070 : vector<8x5xi32>
    %1072 = vector.shape_cast %1064 : vector<8x1xi32> to vector<8x1xi32>
    %1073 = vector.broadcast %1072 : vector<8x1xi32> to vector<8x5xi32>
    %1074 = arith.select %1071, %1073, %1053 : vector<8x5xi1>, vector<8x5xi32>
    %1075 = vector.extract_strided_slice %219 {offsets = [3, 0], sizes = [1, 5], strides = [1, 1]} : vector<5x5xf32> to vector<1x5xf32>
    %1076 = vector.broadcast %1075 : vector<1x5xf32> to vector<8x5xf32>
    %1077 = arith.addf %1006, %1076 : vector<8x5xf32>
    %cst_311 = arith.constant dense<0xFF800000> : vector<8xf32>
    %1078 = vector.multi_reduction <maximumf>, %1077, %cst_311 [1] : vector<8x5xf32> to vector<8xf32>
    %1079 = vector.shape_cast %1078 : vector<8xf32> to vector<8x1xf32>
    %1080 = vector.broadcast %1079 : vector<8x1xf32> to vector<8x5xf32>
    %1081 = arith.cmpf oeq, %1077, %1080 : vector<8x5xf32>
    %c5_i32_312 = arith.constant 5 : i32
    %1082 = vector.broadcast %c5_i32_312 : i32 to vector<8x5xi32>
    %1083 = arith.select %1081, %220, %1082 : vector<8x5xi1>, vector<8x5xi32>
    %cst_313 = arith.constant dense<2147483647> : vector<8xi32>
    %1084 = vector.multi_reduction <minsi>, %1083, %cst_313 [1] : vector<8x5xi32> to vector<8xi32>
    %1085 = vector.shape_cast %1084 : vector<8xi32> to vector<8x1xi32>
    %c3_i32_314 = arith.constant 3 : i32
    %1086 = vector.broadcast %c3_i32_314 : i32 to vector<8x5xi32>
    %1087 = arith.cmpi eq, %220, %1086 : vector<8x5xi32>
    %1088 = vector.shape_cast %1079 : vector<8x1xf32> to vector<8x1xf32>
    %1089 = vector.broadcast %1088 : vector<8x1xf32> to vector<8x5xf32>
    %1090 = arith.select %1087, %1089, %1069 : vector<8x5xi1>, vector<8x5xf32>
    %c3_i32_315 = arith.constant 3 : i32
    %1091 = vector.broadcast %c3_i32_315 : i32 to vector<8x5xi32>
    %1092 = arith.cmpi eq, %220, %1091 : vector<8x5xi32>
    %1093 = vector.shape_cast %1085 : vector<8x1xi32> to vector<8x1xi32>
    %1094 = vector.broadcast %1093 : vector<8x1xi32> to vector<8x5xi32>
    %1095 = arith.select %1092, %1094, %1074 : vector<8x5xi1>, vector<8x5xi32>
    %1096 = vector.extract_strided_slice %219 {offsets = [4, 0], sizes = [1, 5], strides = [1, 1]} : vector<5x5xf32> to vector<1x5xf32>
    %1097 = vector.broadcast %1096 : vector<1x5xf32> to vector<8x5xf32>
    %1098 = arith.addf %1006, %1097 : vector<8x5xf32>
    %cst_316 = arith.constant dense<0xFF800000> : vector<8xf32>
    %1099 = vector.multi_reduction <maximumf>, %1098, %cst_316 [1] : vector<8x5xf32> to vector<8xf32>
    %1100 = vector.shape_cast %1099 : vector<8xf32> to vector<8x1xf32>
    %1101 = vector.broadcast %1100 : vector<8x1xf32> to vector<8x5xf32>
    %1102 = arith.cmpf oeq, %1098, %1101 : vector<8x5xf32>
    %c5_i32_317 = arith.constant 5 : i32
    %1103 = vector.broadcast %c5_i32_317 : i32 to vector<8x5xi32>
    %1104 = arith.select %1102, %220, %1103 : vector<8x5xi1>, vector<8x5xi32>
    %cst_318 = arith.constant dense<2147483647> : vector<8xi32>
    %1105 = vector.multi_reduction <minsi>, %1104, %cst_318 [1] : vector<8x5xi32> to vector<8xi32>
    %1106 = vector.shape_cast %1105 : vector<8xi32> to vector<8x1xi32>
    %c4_i32_319 = arith.constant 4 : i32
    %1107 = vector.broadcast %c4_i32_319 : i32 to vector<8x5xi32>
    %1108 = arith.cmpi eq, %220, %1107 : vector<8x5xi32>
    %1109 = vector.shape_cast %1100 : vector<8x1xf32> to vector<8x1xf32>
    %1110 = vector.broadcast %1109 : vector<8x1xf32> to vector<8x5xf32>
    %1111 = arith.select %1108, %1110, %1090 : vector<8x5xi1>, vector<8x5xf32>
    %c4_i32_320 = arith.constant 4 : i32
    %1112 = vector.broadcast %c4_i32_320 : i32 to vector<8x5xi32>
    %1113 = arith.cmpi eq, %220, %1112 : vector<8x5xi32>
    %1114 = vector.shape_cast %1106 : vector<8x1xi32> to vector<8x1xi32>
    %1115 = vector.broadcast %1114 : vector<8x1xi32> to vector<8x5xi32>
    %1116 = arith.select %1113, %1115, %1095 : vector<8x5xi1>, vector<8x5xi32>
    %1117 = vector.extract_strided_slice %215 {offsets = [56, 0], sizes = [8, 5], strides = [1, 1]} : vector<64x5xf32> to vector<8x5xf32>
    %1118 = arith.addf %1111, %1117 : vector<8x5xf32>
    %c0_321 = arith.constant 0 : index
    %c56_322 = arith.constant 56 : index
    %c0_323 = arith.constant 0 : index
    %1119 = vector.load %arg12[%c0_321, %c56_322, %c0_323] : memref<1x64x5xi32, #tpu.memory_space<vmem>>, vector<1x8x5xi32>
    %1120 = vector.shape_cast %1119 : vector<1x8x5xi32> to vector<8x5xi32>
    %1121 = vector.shape_cast %1116 : vector<8x5xi32> to vector<1x8x5xi32>
    tpu.vector_store %arg12[%c0_321, %c56_322, %c0_323], %1121 {strides = array<i32>} : memref<1x64x5xi32, #tpu.memory_space<vmem>>, vector<1x8x5xi32>,
    %1122 = vector.extract_strided_slice %219 {offsets = [4, 0], sizes = [1, 5], strides = [1, 1]} : vector<5x5xf32> to vector<1x5xf32>
    %1123 = vector.broadcast %1122 : vector<1x5xf32> to vector<8x5xf32>
    %1124 = arith.addf %1118, %1123 : vector<8x5xf32>
    %c0_324 = arith.constant 0 : index
    %c0_325 = arith.constant 0 : index
    %c0_326 = arith.constant 0 : index
    %1125 = vector.load %arg13[%c0_324, %c0_325, %c0_326] : memref<1x8x5xf32, #tpu.memory_space<vmem>>, vector<1x8x5xf32>
    %1126 = vector.shape_cast %1125 : vector<1x8x5xf32> to vector<8x5xf32>
    %1127 = vector.shape_cast %1124 : vector<8x5xf32> to vector<1x8x5xf32>
    tpu.vector_store %arg13[%c0_324, %c0_325, %c0_326], %1127 {strides = array<i32>} : memref<1x8x5xf32, #tpu.memory_space<vmem>>, vector<1x8x5xf32>,
    return
  }
  func.func @transform_0(%arg0: i32) -> (i32, i32, i32) {
    %c0_i32 = arith.constant 0 : i32
    %c0_i32_0 = arith.constant 0 : i32
    %c0_i32_1 = arith.constant 0 : i32
    return %arg0, %c0_i32, %c0_i32_0 : i32, i32, i32
  }
  func.func @transform_1(%arg0: i32) -> (i32, i32, i32) {
    %c0_i32 = arith.constant 0 : i32
    %c0_i32_0 = arith.constant 0 : i32
    %c0_i32_1 = arith.constant 0 : i32
    return %arg0, %c0_i32, %c0_i32_0 : i32, i32, i32
  }
  func.func @transform_2(%arg0: i32) -> (i32, i32) {
    %c0_i32 = arith.constant 0 : i32
    %c0_i32_0 = arith.constant 0 : i32
    %c0_i32_1 = arith.constant 0 : i32
    return %c0_i32, %c0_i32_0 : i32, i32
  }
  func.func @transform_3(%arg0: i32) -> (i32, i32) {
    %c0_i32 = arith.constant 0 : i32
    %c0_i32_0 = arith.constant 0 : i32
    %c0_i32_1 = arith.constant 0 : i32
    return %c0_i32, %c0_i32_0 : i32, i32
  }
  func.func @transform_4(%arg0: i32) -> (i32, i32) {
    %c0_i32 = arith.constant 0 : i32
    %c0_i32_0 = arith.constant 0 : i32
    %c0_i32_1 = arith.constant 0 : i32
    return %c0_i32, %c0_i32_0 : i32, i32
  }
  func.func @transform_5(%arg0: i32) -> (i32, i32) {
    %c0_i32 = arith.constant 0 : i32
    %c0_i32_0 = arith.constant 0 : i32
    %c0_i32_1 = arith.constant 0 : i32
    return %c0_i32, %c0_i32_0 : i32, i32
  }
  func.func @transform_6(%arg0: i32) -> (i32, i32) {
    %c0_i32 = arith.constant 0 : i32
    %c0_i32_0 = arith.constant 0 : i32
    %c0_i32_1 = arith.constant 0 : i32
    return %c0_i32, %c0_i32_0 : i32, i32
  }
  func.func @transform_7(%arg0: i32) -> (i32, i32) {
    %c0_i32 = arith.constant 0 : i32
    %c0_i32_0 = arith.constant 0 : i32
    %c0_i32_1 = arith.constant 0 : i32
    return %c0_i32, %c0_i32_0 : i32, i32
  }
  func.func @transform_8(%arg0: i32) -> (i32, i32) {
    %c0_i32 = arith.constant 0 : i32
    %c0_i32_0 = arith.constant 0 : i32
    %c0_i32_1 = arith.constant 0 : i32
    return %c0_i32, %c0_i32_0 : i32, i32
  }
  func.func @transform_9(%arg0: i32) -> (i32, i32) {
    %c0_i32 = arith.constant 0 : i32
    %c0_i32_0 = arith.constant 0 : i32
    %c0_i32_1 = arith.constant 0 : i32
    return %c0_i32, %c0_i32_0 : i32, i32
  }
  func.func @transform_10(%arg0: i32) -> (i32, i32, i32) {
    %c0_i32 = arith.constant 0 : i32
    %c0_i32_0 = arith.constant 0 : i32
    %c0_i32_1 = arith.constant 0 : i32
    return %arg0, %c0_i32, %c0_i32_0 : i32, i32, i32
  }
  func.func @transform_11(%arg0: i32) -> (i32, i32, i32) {
    %c0_i32 = arith.constant 0 : i32
    %c0_i32_0 = arith.constant 0 : i32
    %c0_i32_1 = arith.constant 0 : i32
    return %arg0, %c0_i32, %c0_i32_0 : i32, i32, i32
  }
  func.func @transform_12(%arg0: i32) -> (i32, i32, i32) {
    %c0_i32 = arith.constant 0 : i32
    %c0_i32_0 = arith.constant 0 : i32
    %c0_i32_1 = arith.constant 0 : i32
    return %arg0, %c0_i32, %c0_i32_0 : i32, i32, i32
  }
}

</mosaic_0001>

<llo_original>
// kernel: _run.1
$region0: #{_run.1}
  #allocation0 [shape = 'u32[]', space=smem, size = 0x4, offset = 0x4, fixed_abs, tag = 'smem constant byte address 0x4 - core index']
  #allocation1 [shape = 'u32[144,128]{1,0:T(1,128)}', space=vmem, size = 0x12000, scoped, tag = 'internal scratch']
  #allocation2 [shape = 'f32[64,128]{1,0:T(8,128)}', space=vmem, size = 0x8000, scoped, tag = 'scratch operand']
  #allocation3 [shape = 'f32[64,32]{1,0:T(8,128)}', space=vmem, size = 0x8000, scoped, tag = 'scratch operand']
  %s0 = inlined_call_operand.vmem [shape: s32[2,64,1], index: 0, kind: input, shape index: {}]
  %s1 = inlined_call_operand.vmem [shape: s32[2,64,1], index: 1, kind: input, shape index: {}]
  %s2 = inlined_call_operand.vmem [shape: f32[16,128], index: 2, kind: input, shape index: {}]
  %s3 = inlined_call_operand.vmem [shape: f32[16,128], index: 3, kind: input, shape index: {}]
  %s4 = inlined_call_operand.vmem [shape: f32[32,128], index: 4, kind: input, shape index: {}]
  %s5 = inlined_call_operand.vmem [shape: f32[1,32], index: 5, kind: input, shape index: {}]
  %s6 = inlined_call_operand.vmem [shape: f32[1,32], index: 6, kind: input, shape index: {}]
  %s7 = inlined_call_operand.vmem [shape: f32[32,5], index: 7, kind: input, shape index: {}]
  %s8 = inlined_call_operand.vmem [shape: f32[1,5], index: 8, kind: input, shape index: {}]
  %s9 = inlined_call_operand.vmem [shape: f32[5,5], index: 9, kind: input, shape index: {}]
  %s10 = inlined_call_operand.vmem [shape: f32[2,64,5], index: 10, kind: output, shape index: {0}]
  %s11 = inlined_call_operand.vmem [shape: s32[2,64,5], index: 11, kind: output, shape index: {1}]
  %s12 = inlined_call_operand.vmem [shape: f32[2,8,5], index: 12, kind: output, shape index: {2}]
  %13 = xla_tuple %s10, %s11, %s12
  %s14 = sld [smem:[#allocation0]]
  $region89: #{_run.1} parent=0
    _
  %s16 = ssub.s32 1, %s14
  %s17 = scalar_select 0, %s16, %s14
  loop: start=0, step=1, limit=4
  $region2: #{_run.1} parent=0 // loop_pre_header
    _
  $region3: #{_run.1} parent=0 // loop_header
    %s19 = sphi 0, %s23
    %p20 = scmp.ge.s32.totalorder %s19, 4
    %s29 = sphi 0, %s31
    %s32 = sphi 0, %s29
    %s33 = sphi 0, %s32
    %s49 = sphi 0, %s33
    %s55 = sphi 0, %s57
    %s58 = sphi 0, %s55
    %s59 = sphi 0, %s58
    %s75 = sphi 0, %s59
    %s79 = sphi 0, %s79
    %s81 = sphi 0, %s79
    %s82 = sphi 0, %s81
    %s96 = sphi 0, %s82
    %s100 = sphi 0, %s100
    %s102 = sphi 0, %s100
    %s103 = sphi 0, %s102
    %s117 = sphi 0, %s103
    %s121 = sphi 0, %s121
    %s123 = sphi 0, %s121
    %s124 = sphi 0, %s123
    %s138 = sphi 0, %s124
    %s142 = sphi 0, %s142
    %s144 = sphi 0, %s142
    %s145 = sphi 0, %s144
    %s159 = sphi 0, %s145
    %s163 = sphi 0, %s163
    %s165 = sphi 0, %s163
    %s166 = sphi 0, %s165
    %s180 = sphi 0, %s166
    %s184 = sphi 0, %s184
    %s186 = sphi 0, %s184
    %s187 = sphi 0, %s186
    %s201 = sphi 0, %s187
    %s205 = sphi 0, %s205
    %s207 = sphi 0, %s205
    %s208 = sphi 0, %s207
    %s222 = sphi 0, %s208
    %s226 = sphi 0, %s226
    %s228 = sphi 0, %s226
    %s229 = sphi 0, %s228
    %s243 = sphi 0, %s229
    %s249 = sphi 0, %s251
    %s252 = sphi 0, %s249
    %s253 = sphi 0, %s252
    %s269 = sphi 0, %s253
    %s275 = sphi 0, %s277
    %s278 = sphi 0, %s275
    %s279 = sphi 0, %s278
    %s295 = sphi 0, %s279
    %s301 = sphi 0, %s303
    %s304 = sphi 0, %s301
    %s305 = sphi 0, %s304
    %s321 = sphi 0, %s305
  $region4: #{_run.1} parent=0 // loop_header_branch
    %22 = sbr.rel (%p20) target = $region8
  $region5: #{_run.1} parent=0 // loop_body
    %s24 = ssub.s32 %s19, 1
    %s25 = ssub.s32 %s19, 2
    %s26 = sadd.s32 %s19, 1
    %s27 = ssub.s32 %s19, %s26
    %p28 = scmp.eq.s32.totalorder %s27, 0
    %s30 = sadd.s32 %s29, 1
    %s31 = scalar_select %p28, %s29, %s30
    %p34 = pneg %p28
    %p35 = scmp.eq.s32.totalorder %s19, 1
    %p36 = por %p34, %p35
    %p37 = scmp.ne.s32.totalorder %s29, %s32
    %p38 = scmp.eq.s32.totalorder %s19, 0
    %p39 = por %p37, %p38
    %p40 = scmp.ne.s32.totalorder %s29, %s32
    %p41 = scmp.eq.s32.totalorder %s24, 1
    %p42 = por %p40, %p41
    %p43 = scmp.ne.s32.totalorder %s32, %s33
    %p44 = scmp.eq.s32.totalorder %s24, 0
    %p45 = por %p43, %p44
    %p46 = scmp.ne.s32.totalorder %s32, %s33
    %p47 = scmp.eq.s32.totalorder %s25, 1
    %p48 = por %p46, %p47
    %p50 = scmp.ne.s32.totalorder %s33, %s49
    %p51 = scmp.eq.s32.totalorder %s25, 0
    %p52 = por %p50, %p51
    %s53 = ssub.s32 %s19, %s26
    %p54 = scmp.eq.s32.totalorder %s53, 0
    %s56 = sadd.s32 %s55, 1
    %s57 = scalar_select %p54, %s55, %s56
    %p60 = pneg %p54
    %p61 = scmp.eq.s32.totalorder %s19, 1
    %p62 = por %p60, %p61
    %p63 = scmp.ne.s32.totalorder %s55, %s58
    %p64 = scmp.eq.s32.totalorder %s19, 0
    %p65 = por %p63, %p64
    %p66 = scmp.ne.s32.totalorder %s55, %s58
    %p67 = scmp.eq.s32.totalorder %s24, 1
    %p68 = por %p66, %p67
    %p69 = scmp.ne.s32.totalorder %s58, %s59
    %p70 = scmp.eq.s32.totalorder %s24, 0
    %p71 = por %p69, %p70
    %p72 = scmp.ne.s32.totalorder %s58, %s59
    %p73 = scmp.eq.s32.totalorder %s25, 1
    %p74 = por %p72, %p73
    %p76 = scmp.ne.s32.totalorder %s59, %s75
    %p77 = scmp.eq.s32.totalorder %s25, 0
    %p78 = por %p76, %p77
    %s80 = sadd.s32 %s79, 1
    %p83 = scmp.eq.s32.totalorder %s19, 1
    %p84 = scmp.ne.s32.totalorder %s79, %s81
    %p85 = scmp.eq.s32.totalorder %s19, 0
    %p86 = por %p84, %p85
    %p87 = scmp.ne.s32.totalorder %s79, %s81
    %p88 = scmp.eq.s32.totalorder %s24, 1
    %p89 = por %p87, %p88
    %p90 = scmp.ne.s32.totalorder %s81, %s82
    %p91 = scmp.eq.s32.totalorder %s24, 0
    %p92 = por %p90, %p91
    %p93 = scmp.ne.s32.totalorder %s81, %s82
    %p94 = scmp.eq.s32.totalorder %s25, 1
    %p95 = por %p93, %p94
    %p97 = scmp.ne.s32.totalorder %s82, %s96
    %p98 = scmp.eq.s32.totalorder %s25, 0
    %p99 = por %p97, %p98
    %s101 = sadd.s32 %s100, 1
    %p104 = scmp.eq.s32.totalorder %s19, 1
    %p105 = scmp.ne.s32.totalorder %s100, %s102
    %p106 = scmp.eq.s32.totalorder %s19, 0
    %p107 = por %p105, %p106
    %p108 = scmp.ne.s32.totalorder %s100, %s102
    %p109 = scmp.eq.s32.totalorder %s24, 1
    %p110 = por %p108, %p109
    %p111 = scmp.ne.s32.totalorder %s102, %s103
    %p112 = scmp.eq.s32.totalorder %s24, 0
    %p113 = por %p111, %p112
    %p114 = scmp.ne.s32.totalorder %s102, %s103
    %p115 = scmp.eq.s32.totalorder %s25, 1
    %p116 = por %p114, %p115
    %p118 = scmp.ne.s32.totalorder %s103, %s117
    %p119 = scmp.eq.s32.totalorder %s25, 0
    %p120 = por %p118, %p119
    %s122 = sadd.s32 %s121, 1
    %p125 = scmp.eq.s32.totalorder %s19, 1
    %p126 = scmp.ne.s32.totalorder %s121, %s123
    %p127 = scmp.eq.s32.totalorder %s19, 0
    %p128 = por %p126, %p127
    %p129 = scmp.ne.s32.totalorder %s121, %s123
    %p130 = scmp.eq.s32.totalorder %s24, 1
    %p131 = por %p129, %p130
    %p132 = scmp.ne.s32.totalorder %s123, %s124
    %p133 = scmp.eq.s32.totalorder %s24, 0
    %p134 = por %p132, %p133
    %p135 = scmp.ne.s32.totalorder %s123, %s124
    %p136 = scmp.eq.s32.totalorder %s25, 1
    %p137 = por %p135, %p136
    %p139 = scmp.ne.s32.totalorder %s124, %s138
    %p140 = scmp.eq.s32.totalorder %s25, 0
    %p141 = por %p139, %p140
    %s143 = sadd.s32 %s142, 1
    %p146 = scmp.eq.s32.totalorder %s19, 1
    %p147 = scmp.ne.s32.totalorder %s142, %s144
    %p148 = scmp.eq.s32.totalorder %s19, 0
    %p149 = por %p147, %p148
    %p150 = scmp.ne.s32.totalorder %s142, %s144
    %p151 = scmp.eq.s32.totalorder %s24, 1
    %p152 = por %p150, %p151
    %p153 = scmp.ne.s32.totalorder %s144, %s145
    %p154 = scmp.eq.s32.totalorder %s24, 0
    %p155 = por %p153, %p154
    %p156 = scmp.ne.s32.totalorder %s144, %s145
    %p157 = scmp.eq.s32.totalorder %s25, 1
    %p158 = por %p156, %p157
    %p160 = scmp.ne.s32.totalorder %s145, %s159
    %p161 = scmp.eq.s32.totalorder %s25, 0
    %p162 = por %p160, %p161
    %s164 = sadd.s32 %s163, 1
    %p167 = scmp.eq.s32.totalorder %s19, 1
    %p168 = scmp.ne.s32.totalorder %s163, %s165
    %p169 = scmp.eq.s32.totalorder %s19, 0
    %p170 = por %p168, %p169
    %p171 = scmp.ne.s32.totalorder %s163, %s165
    %p172 = scmp.eq.s32.totalorder %s24, 1
    %p173 = por %p171, %p172
    %p174 = scmp.ne.s32.totalorder %s165, %s166
    %p175 = scmp.eq.s32.totalorder %s24, 0
    %p176 = por %p174, %p175
    %p177 = scmp.ne.s32.totalorder %s165, %s166
    %p178 = scmp.eq.s32.totalorder %s25, 1
    %p179 = por %p177, %p178
    %p181 = scmp.ne.s32.totalorder %s166, %s180
    %p182 = scmp.eq.s32.totalorder %s25, 0
    %p183 = por %p181, %p182
    %s185 = sadd.s32 %s184, 1
    %p188 = scmp.eq.s32.totalorder %s19, 1
    %p189 = scmp.ne.s32.totalorder %s184, %s186
    %p190 = scmp.eq.s32.totalorder %s19, 0
    %p191 = por %p189, %p190
    %p192 = scmp.ne.s32.totalorder %s184, %s186
    %p193 = scmp.eq.s32.totalorder %s24, 1
    %p194 = por %p192, %p193
    %p195 = scmp.ne.s32.totalorder %s186, %s187
    %p196 = scmp.eq.s32.totalorder %s24, 0
    %p197 = por %p195, %p196
    %p198 = scmp.ne.s32.totalorder %s186, %s187
    %p199 = scmp.eq.s32.totalorder %s25, 1
    %p200 = por %p198, %p199
    %p202 = scmp.ne.s32.totalorder %s187, %s201
    %p203 = scmp.eq.s32.totalorder %s25, 0
    %p204 = por %p202, %p203
    %s206 = sadd.s32 %s205, 1
    %p209 = scmp.eq.s32.totalorder %s19, 1
    %p210 = scmp.ne.s32.totalorder %s205, %s207
    %p211 = scmp.eq.s32.totalorder %s19, 0
    %p212 = por %p210, %p211
    %p213 = scmp.ne.s32.totalorder %s205, %s207
    %p214 = scmp.eq.s32.totalorder %s24, 1
    %p215 = por %p213, %p214
    %p216 = scmp.ne.s32.totalorder %s207, %s208
    %p217 = scmp.eq.s32.totalorder %s24, 0
    %p218 = por %p216, %p217
    %p219 = scmp.ne.s32.totalorder %s207, %s208
    %p220 = scmp.eq.s32.totalorder %s25, 1
    %p221 = por %p219, %p220
    %p223 = scmp.ne.s32.totalorder %s208, %s222
    %p224 = scmp.eq.s32.totalorder %s25, 0
    %p225 = por %p223, %p224
    %s227 = sadd.s32 %s226, 1
    %p230 = scmp.eq.s32.totalorder %s19, 1
    %p231 = scmp.ne.s32.totalorder %s226, %s228
    %p232 = scmp.eq.s32.totalorder %s19, 0
    %p233 = por %p231, %p232
    %p234 = scmp.ne.s32.totalorder %s226, %s228
    %p235 = scmp.eq.s32.totalorder %s24, 1
    %p236 = por %p234, %p235
    %p237 = scmp.ne.s32.totalorder %s228, %s229
    %p238 = scmp.eq.s32.totalorder %s24, 0
    %p239 = por %p237, %p238
    %p240 = scmp.ne.s32.totalorder %s228, %s229
    %p241 = scmp.eq.s32.totalorder %s25, 1
    %p242 = por %p240, %p241
    %p244 = scmp.ne.s32.totalorder %s229, %s243
    %p245 = scmp.eq.s32.totalorder %s25, 0
    %p246 = por %p244, %p245
    %s247 = ssub.s32 %s19, %s26
    %p248 = scmp.eq.s32.totalorder %s247, 0
    %s250 = sadd.s32 %s249, 1
    %s251 = scalar_select %p248, %s249, %s250
    %p254 = pneg %p248
    %p255 = scmp.eq.s32.totalorder %s19, 1
    %p256 = por %p254, %p255
    %p257 = scmp.ne.s32.totalorder %s249, %s252
    %p258 = scmp.eq.s32.totalorder %s19, 0
    %p259 = por %p257, %p258
    %p260 = scmp.ne.s32.totalorder %s249, %s252
    %p261 = scmp.eq.s32.totalorder %s24, 1
    %p262 = por %p260, %p261
    %p263 = scmp.ne.s32.totalorder %s252, %s253
    %p264 = scmp.eq.s32.totalorder %s24, 0
    %p265 = por %p263, %p264
    %p266 = scmp.ne.s32.totalorder %s252, %s253
    %p267 = scmp.eq.s32.totalorder %s25, 1
    %p268 = por %p266, %p267
    %p270 = scmp.ne.s32.totalorder %s253, %s269
    %p271 = scmp.eq.s32.totalorder %s25, 0
    %p272 = por %p270, %p271
    %s273 = ssub.s32 %s19, %s26
    %p274 = scmp.eq.s32.totalorder %s273, 0
    %s276 = sadd.s32 %s275, 1
    %s277 = scalar_select %p274, %s275, %s276
    %p280 = pneg %p274
    %p281 = scmp.eq.s32.totalorder %s19, 1
    %p282 = por %p280, %p281
    %p283 = scmp.ne.s32.totalorder %s275, %s278
    %p284 = scmp.eq.s32.totalorder %s19, 0
    %p285 = por %p283, %p284
    %p286 = scmp.ne.s32.totalorder %s275, %s278
    %p287 = scmp.eq.s32.totalorder %s24, 1
    %p288 = por %p286, %p287
    %p289 = scmp.ne.s32.totalorder %s278, %s279
    %p290 = scmp.eq.s32.totalorder %s24, 0
    %p291 = por %p289, %p290
    %p292 = scmp.ne.s32.totalorder %s278, %s279
    %p293 = scmp.eq.s32.totalorder %s25, 1
    %p294 = por %p292, %p293
    %p296 = scmp.ne.s32.totalorder %s279, %s295
    %p297 = scmp.eq.s32.totalorder %s25, 0
    %p298 = por %p296, %p297
    %s299 = ssub.s32 %s19, %s26
    %p300 = scmp.eq.s32.totalorder %s299, 0
    %s302 = sadd.s32 %s301, 1
    %s303 = scalar_select %p300, %s301, %s302
    %p306 = pneg %p300
    %p307 = scmp.eq.s32.totalorder %s19, 1
    %p308 = por %p306, %p307
    %p309 = scmp.ne.s32.totalorder %s301, %s304
    %p310 = scmp.eq.s32.totalorder %s19, 0
    %p311 = por %p309, %p310
    %p312 = scmp.ne.s32.totalorder %s301, %s304
    %p313 = scmp.eq.s32.totalorder %s24, 1
    %p314 = por %p312, %p313
    %p315 = scmp.ne.s32.totalorder %s304, %s305
    %p316 = scmp.eq.s32.totalorder %s24, 0
    %p317 = por %p315, %p316
    %p318 = scmp.ne.s32.totalorder %s304, %s305
    %p319 = scmp.eq.s32.totalorder %s25, 1
    %p320 = por %p318, %p319
    %p322 = scmp.ne.s32.totalorder %s305, %s321
    %p323 = scmp.eq.s32.totalorder %s25, 0
    %p324 = por %p322, %p323
    %p325 = scmp.le.s32.totalorder 1, %s19
    %p326 = scmp.lt.s32.totalorder %s19, 3
    %p327 = pnand %p325, %p326
    %p328 = pneg %p327
    // Predicated region
    $region9: #{_run.1} parent=5 // pred_check
      _
    $region10: #{_run.1} parent=5 // pred_check_branch
      %330 = sbr.rel (%p327) target = $region12
    $region11: #{_run.1} parent=5 // pred_region
      %s331 = ssub.s32 %s19, 1
      // Predicated region
      $region13: #{_run.1} parent=11 // pred_check
        %p332 = pneg %p92
      $region14: #{_run.1} parent=11 // pred_check_branch
        %334 = sbr.rel (%p332) target = $region16
      $region15: #{_run.1} parent=11 // pred_region
        _
      $region16: #{_run.1} parent=11 // pred_fallthru
        _
      // Predicated region
      $region17: #{_run.1} parent=11 // pred_check
        %p335 = pneg %p113
      $region18: #{_run.1} parent=11 // pred_check_branch
        %337 = sbr.rel (%p335) target = $region20
      $region19: #{_run.1} parent=11 // pred_region
        _
      $region20: #{_run.1} parent=11 // pred_fallthru
        _
      // Predicated region
      $region21: #{_run.1} parent=11 // pred_check
        %p338 = pneg %p134
      $region22: #{_run.1} parent=11 // pred_check_branch
        %340 = sbr.rel (%p338) target = $region24
      $region23: #{_run.1} parent=11 // pred_region
        _
      $region24: #{_run.1} parent=11 // pred_fallthru
        _
      // Predicated region
      $region25: #{_run.1} parent=11 // pred_check
        %p341 = pneg %p155
      $region26: #{_run.1} parent=11 // pred_check_branch
        %343 = sbr.rel (%p341) target = $region28
      $region27: #{_run.1} parent=11 // pred_region
        _
      $region28: #{_run.1} parent=11 // pred_fallthru
        _
      // Predicated region
      $region29: #{_run.1} parent=11 // pred_check
        %p344 = pneg %p176
      $region30: #{_run.1} parent=11 // pred_check_branch
        %346 = sbr.rel (%p344) target = $region32
      $region31: #{_run.1} parent=11 // pred_region
        _
      $region32: #{_run.1} parent=11 // pred_fallthru
        _
      // Predicated region
      $region33: #{_run.1} parent=11 // pred_check
        %p347 = pneg %p197
      $region34: #{_run.1} parent=11 // pred_check_branch
        %349 = sbr.rel (%p347) target = $region36
      $region35: #{_run.1} parent=11 // pred_region
        _
      $region36: #{_run.1} parent=11 // pred_fallthru
        _
      // Predicated region
      $region37: #{_run.1} parent=11 // pred_check
        %p350 = pneg %p218
      $region38: #{_run.1} parent=11 // pred_check_branch
        %352 = sbr.rel (%p350) target = $region40
      $region39: #{_run.1} parent=11 // pred_region
        _
      $region40: #{_run.1} parent=11 // pred_fallthru
        _
      // Predicated region
      $region41: #{_run.1} parent=11 // pred_check
        %p353 = pneg %p239
      $region42: #{_run.1} parent=11 // pred_check_branch
        %355 = sbr.rel (%p353) target = $region44
      $region43: #{_run.1} parent=11 // pred_region
        _
      $region44: #{_run.1} parent=11 // pred_fallthru
        _
    $region12: #{_run.1} parent=5 // pred_fallthru
      _
    %p356 = scmp.lt.s32.totalorder %s19, 2
    // Predicated region
    $region45: #{_run.1} parent=5 // pred_check
      %p357 = pneg %p356
    $region46: #{_run.1} parent=5 // pred_check_branch
      %359 = sbr.rel (%p357) target = $region48
    $region47: #{_run.1} parent=5 // pred_region
      // Predicated region
      $region49: #{_run.1} parent=47 // pred_check
        %p360 = pneg %p39
      $region50: #{_run.1} parent=47 // pred_check_branch
        %362 = sbr.rel (%p360) target = $region52
      $region51: #{_run.1} parent=47 // pred_region
        %p363 = scmp.lt.s32.totalorder %s19, 1
        %s364 = scalar_select %p363, %s19, 1
        %s365 = smul.addr %s364, 8
        %s366 = smul.addr %s365, 8
        %s367 = scalar_lea.vmem %s0, %s366
      $region52: #{_run.1} parent=47 // pred_fallthru
        _
      // Predicated region
      $region53: #{_run.1} parent=47 // pred_check
        %p368 = pneg %p65
      $region54: #{_run.1} parent=47 // pred_check_branch
        %370 = sbr.rel (%p368) target = $region56
      $region55: #{_run.1} parent=47 // pred_region
        %p371 = scmp.lt.s32.totalorder %s19, 1
        %s372 = scalar_select %p371, %s19, 1
        %s373 = smul.addr %s372, 8
        %s374 = smul.addr %s373, 8
        %s375 = scalar_lea.vmem %s1, %s374
      $region56: #{_run.1} parent=47 // pred_fallthru
        _
    $region48: #{_run.1} parent=5 // pred_fallthru
      _
    %p376 = scmp.le.s32.totalorder 1, %s19
    %p377 = scmp.lt.s32.totalorder %s19, 3
    %p378 = pnand %p376, %p377
    %p379 = pneg %p378
    // Predicated region
    $region57: #{_run.1} parent=5 // pred_check
      _
    $region58: #{_run.1} parent=5 // pred_check_branch
      %381 = sbr.rel (%p378) target = $region60
    $region59: #{_run.1} parent=5 // pred_region
      %s382 = ssub.s32 %s19, 1
      %p383 = scmp.lt.s32.totalorder %s24, 1
      %s384 = scalar_select %p383, %s24, 1
      %s385 = smul.addr %s384, 8
      %s386 = smul.addr %s385, 8
      %s387 = scalar_lea.vmem %s0, %s386
      %p388 = pneg %p45
      %p389 = pneg %p42
      %p390 = scmp.lt.s32.totalorder %s24, 1
      %s391 = scalar_select %p390, %s24, 1
      %s392 = smul.addr %s391, 8
      %s393 = smul.addr %s392, 8
      %s394 = scalar_lea.vmem %s1, %s393
      %p395 = pneg %p71
      %p396 = pneg %p68
      %p397 = pneg %p92
      %p398 = pneg %p89
      %p399 = pneg %p113
      %p400 = pneg %p110
      %p401 = pneg %p134
      %p402 = pneg %p131
      %p403 = pneg %p155
      %p404 = pneg %p152
      %p405 = pneg %p176
      %p406 = pneg %p173
      %p407 = pneg %p197
      %p408 = pneg %p194
      %p409 = pneg %p218
      %p410 = pneg %p215
      %p411 = pneg %p239
      %p412 = pneg %p236
      %p413 = pneg %p265
      %p414 = pneg %p262
      %p415 = scmp.lt.s32.totalorder %s24, 1
      %s416 = scalar_select %p415, %s24, 1
      %s417 = smul.addr %s416, 8
      %s418 = smul.addr %s417, 8
      %s419 = scalar_lea.vmem %s10, %s418
      %p420 = pneg %p291
      %p421 = pneg %p288
      %p422 = scmp.lt.s32.totalorder %s24, 1
      %s423 = scalar_select %p422, %s24, 1
      %s424 = smul.addr %s423, 8
      %s425 = smul.addr %s424, 8
      %s426 = scalar_lea.vmem %s11, %s425
      %p427 = pneg %p317
      %p428 = pneg %p314
      %p429 = scmp.lt.s32.totalorder %s24, 1
      %s430 = scalar_select %p429, %s24, 1
      %s431 = smul.addr %s430, 8
      %s432 = scalar_lea.vmem %s12, %s431
      %p433 = scmp.lt.s32.totalorder %s24, 1
      %s434 = scalar_select %p433, %s24, 1
      %s435 = smul.addr %s434, 8
      %s436 = smul.addr %s435, 8
      %s437 = scalar_lea.vmem %s0, %s436
      %p438 = scmp.lt.s32.totalorder %s24, 1
      %s439 = scalar_select %p438, %s24, 1
      %s440 = smul.addr %s439, 8
      %s441 = smul.addr %s440, 8
      %s442 = scalar_lea.vmem %s1, %s441
      %p443 = scmp.lt.s32.totalorder %s24, 1
      %s444 = scalar_select %p443, %s24, 1
      %s445 = smul.addr %s444, 8
      %s446 = smul.addr %s445, 8
      %s447 = scalar_lea.vmem %s10, %s446
      %p448 = scmp.lt.s32.totalorder %s24, 1
      %s449 = scalar_select %p448, %s24, 1
      %s450 = smul.addr %s449, 8
      %s451 = smul.addr %s450, 8
      %s452 = scalar_lea.vmem %s11, %s451
      %p453 = scmp.lt.s32.totalorder %s24, 1
      %s454 = scalar_select %p453, %s24, 1
      %s455 = smul.addr %s454, 8
      %s456 = scalar_lea.vmem %s12, %s455
      %v457 = vlaneseq
      %v458 = vand.u32 %v457, 127
      %v459 = vld [vmem:[%s437] sm:$0xff]
      %v460 = vld [vmem:[%s437 + $0x8] sm:$0xff]
      %v461 = vld [vmem:[%s437 + $0x10] sm:$0xff]
      %v462 = vld [vmem:[%s437 + $0x18] sm:$0xff]
      %v463 = vld [vmem:[%s437 + $0x20] sm:$0xff]
      %v464 = vld [vmem:[%s437 + $0x28] sm:$0xff]
      %v465 = vld [vmem:[%s437 + $0x30] sm:$0xff]
      %v466 = vld [vmem:[%s437 + $0x38] sm:$0xff]
      %467 = vset.pattern.permute.xlu0 0
      %468 = vperm.xlu0 %467, %v459
      %v469 = vpop.permute.xlu0 %468
      %470 = vset.pattern.permute.xlu0 0
      %471 = vperm.xlu0 %470, %v460
      %v472 = vpop.permute.xlu0 %471
      %473 = vset.pattern.permute.xlu0 0
      %474 = vperm.xlu0 %473, %v461
      %v475 = vpop.permute.xlu0 %474
      %476 = vset.pattern.permute.xlu0 0
      %477 = vperm.xlu0 %476, %v462
      %v478 = vpop.permute.xlu0 %477
      %479 = vset.pattern.permute.xlu0 0
      %480 = vperm.xlu0 %479, %v463
      %v481 = vpop.permute.xlu0 %480
      %482 = vset.pattern.permute.xlu0 0
      %483 = vperm.xlu0 %482, %v464
      %v484 = vpop.permute.xlu0 %483
      %485 = vset.pattern.permute.xlu0 0
      %486 = vperm.xlu0 %485, %v465
      %v487 = vpop.permute.xlu0 %486
      %488 = vset.pattern.permute.xlu0 0
      %489 = vperm.xlu0 %488, %v466
      %v490 = vpop.permute.xlu0 %489
      %vm491 = vcmp.eq.s32.totalorder %v469, %v458
      %vm492 = vcmp.eq.s32.totalorder %v472, %v458
      %vm493 = vcmp.eq.s32.totalorder %v475, %v458
      %vm494 = vcmp.eq.s32.totalorder %v478, %v458
      %vm495 = vcmp.eq.s32.totalorder %v481, %v458
      %vm496 = vcmp.eq.s32.totalorder %v484, %v458
      %vm497 = vcmp.eq.s32.totalorder %v487, %v458
      %vm498 = vcmp.eq.s32.totalorder %v490, %v458
      %v499 = vsel %vm491, 1, 0
      %v500 = vsel %vm492, 1, 0
      %v501 = vsel %vm493, 1, 0
      %v502 = vsel %vm494, 1, 0
      %v503 = vsel %vm495, 1, 0
      %v504 = vsel %vm496, 1, 0
      %v505 = vsel %vm497, 1, 0
      %v506 = vsel %vm498, 1, 0
      %v507 = vcvt.s32.f32 %v499
      %v508 = vcvt.s32.f32 %v500
      %v509 = vcvt.s32.f32 %v501
      %v510 = vcvt.s32.f32 %v502
      %v511 = vcvt.s32.f32 %v503
      %v512 = vcvt.s32.f32 %v504
      %v513 = vcvt.s32.f32 %v505
      %v514 = vcvt.s32.f32 %v506
      %v515 = vld [vmem:[%s442] sm:$0xff]
      %v516 = vld [vmem:[%s442 + $0x8] sm:$0xff]
      %v517 = vld [vmem:[%s442 + $0x10] sm:$0xff]
      %v518 = vld [vmem:[%s442 + $0x18] sm:$0xff]
      %v519 = vld [vmem:[%s442 + $0x20] sm:$0xff]
      %v520 = vld [vmem:[%s442 + $0x28] sm:$0xff]
      %v521 = vld [vmem:[%s442 + $0x30] sm:$0xff]
      %v522 = vld [vmem:[%s442 + $0x38] sm:$0xff]
      %523 = vset.pattern.permute.xlu0 0
      %524 = vperm.xlu0 %523, %v515
      %v525 = vpop.permute.xlu0 %524
      %526 = vset.pattern.permute.xlu0 0
      %527 = vperm.xlu0 %526, %v516
      %v528 = vpop.permute.xlu0 %527
      %529 = vset.pattern.permute.xlu0 0
      %530 = vperm.xlu0 %529, %v517
      %v531 = vpop.permute.xlu0 %530
      %532 = vset.pattern.permute.xlu0 0
      %533 = vperm.xlu0 %532, %v518
      %v534 = vpop.permute.xlu0 %533
      %535 = vset.pattern.permute.xlu0 0
      %536 = vperm.xlu0 %535, %v519
      %v537 = vpop.permute.xlu0 %536
      %538 = vset.pattern.permute.xlu0 0
      %539 = vperm.xlu0 %538, %v520
      %v540 = vpop.permute.xlu0 %539
      %541 = vset.pattern.permute.xlu0 0
      %542 = vperm.xlu0 %541, %v521
      %v543 = vpop.permute.xlu0 %542
      %544 = vset.pattern.permute.xlu0 0
      %545 = vperm.xlu0 %544, %v522
      %v546 = vpop.permute.xlu0 %545
      %vm547 = vcmp.eq.s32.totalorder %v525, %v458
      %vm548 = vcmp.eq.s32.totalorder %v528, %v458
      %vm549 = vcmp.eq.s32.totalorder %v531, %v458
      %vm550 = vcmp.eq.s32.totalorder %v534, %v458
      %vm551 = vcmp.eq.s32.totalorder %v537, %v458
      %vm552 = vcmp.eq.s32.totalorder %v540, %v458
      %vm553 = vcmp.eq.s32.totalorder %v543, %v458
      %vm554 = vcmp.eq.s32.totalorder %v546, %v458
      %v555 = vsel %vm547, 1, 0
      %v556 = vsel %vm548, 1, 0
      %v557 = vsel %vm549, 1, 0
      %v558 = vsel %vm550, 1, 0
      %v559 = vsel %vm551, 1, 0
      %v560 = vsel %vm552, 1, 0
      %v561 = vsel %vm553, 1, 0
      %v562 = vsel %vm554, 1, 0
      %v563 = vcvt.s32.f32 %v555
      %v564 = vcvt.s32.f32 %v556
      %v565 = vcvt.s32.f32 %v557
      %v566 = vcvt.s32.f32 %v558
      %v567 = vcvt.s32.f32 %v559
      %v568 = vcvt.s32.f32 %v560
      %v569 = vcvt.s32.f32 %v561
      %v570 = vcvt.s32.f32 %v562
      %v571 = vld [vmem:[%s2] sm:$0xff]
      %v572 = vld [vmem:[%s2 + $0x8] sm:$0xff]
      %v573 = vld [vmem:[%s3] sm:$0xff]
      %v574 = vld [vmem:[%s3 + $0x8] sm:$0xff]
      %vm575 = vcmask 130048
      %v577 = vsel %vm575, %v563, 0
      %v580 = vsel %vm575, %v564, 0
      %v583 = vsel %vm575, %v565, 0
      %v586 = vsel %vm575, %v566, 0
      %v589 = vsel %vm575, %v567, 0
      %v592 = vsel %vm575, %v568, 0
      %v595 = vsel %vm575, %v569, 0
      %v598 = vsel %vm575, %v570, 0
      %600 = vmatprep.subr.mxu0 0.0
      %601 = vmatpush1.msra.mxu0 0.0
      %602 = vmatprep.subr.mxu0 0.0
      %603 = vmatpush1.msra.mxu0 0.0
      %604 = vmatprep.subr.mxu0 0.0
      %605 = vmatpush1.msra.mxu0 0.0
      %606 = vmatprep.subr.mxu0 0.0
      %607 = vmatpush1.msra.mxu0 0.0
      %608 = vmatprep.subr.mxu0 0.0
      %609 = vmatpush1.msra.mxu0 0.0
      %610 = vmatprep.subr.mxu0 0.0
      %611 = vmatpush1.msra.mxu0 0.0
      %612 = vmatprep.subr.mxu0 0.0
      %613 = vmatpush1.msra.mxu0 0.0
      %614 = vmatprep.subr.mxu0 0.0
      %615 = vmatpush1.msra.mxu0 0.0
      %616 = vmatprep.subr.mxu0 0.0
      %617 = vmatpush1.msra.mxu0 0.0
      %618 = vmatprep.subr.mxu0 0.0
      %619 = vmatpush1.msra.mxu0 0.0
      %620 = vmatprep.subr.mxu0 0.0
      %621 = vmatpush1.msra.mxu0 0.0
      %622 = vmatprep.subr.mxu0 0.0
      %623 = vmatpush1.msra.mxu0 0.0
      %624 = vmatprep.subr.mxu0 0.0
      %625 = vmatpush1.msra.mxu0 0.0
      %626 = vmatprep.subr.mxu0 0.0
      %627 = vmatpush1.msra.mxu0 0.0
      %628 = vmatprep.subr.mxu0 0.0
      %629 = vmatpush1.msra.mxu0 %v574
      %630 = vmatprep.subr.mxu0 0.0
      %631 = vmatpush1.msra.mxu0 %v573
      %632 = vmatprep.subr.mxu0 0.0
      %633 = vmatpush2.msra.mxu0 0.0
      %634 = vmatprep.subr.mxu0 0.0
      %635 = vmatpush2.msra.mxu0 0.0
      %636 = vmatprep.subr.mxu0 0.0
      %637 = vmatpush2.msra.mxu0 0.0
      %638 = vmatprep.subr.mxu0 0.0
      %639 = vmatpush2.msra.mxu0 0.0
      %640 = vmatprep.subr.mxu0 0.0
      %641 = vmatpush2.msra.mxu0 0.0
      %642 = vmatprep.subr.mxu0 0.0
      %643 = vmatpush2.msra.mxu0 0.0
      %644 = vmatprep.subr.mxu0 0.0
      %645 = vmatpush2.msra.mxu0 0.0
      %646 = vmatprep.subr.mxu0 0.0
      %647 = vmatpush2.msra.mxu0 0.0
      %648 = vmatprep.subr.mxu0 0.0
      %649 = vmatpush2.msra.mxu0 0.0
      %650 = vmatprep.subr.mxu0 0.0
      %651 = vmatpush2.msra.mxu0 0.0
      %652 = vmatprep.subr.mxu0 0.0
      %653 = vmatpush2.msra.mxu0 0.0
      %654 = vmatprep.subr.mxu0 0.0
      %655 = vmatpush2.msra.mxu0 0.0
      %656 = vmatprep.subr.mxu0 0.0
      %657 = vmatpush2.msra.mxu0 0.0
      %658 = vmatprep.subr.mxu0 0.0
      %659 = vmatpush2.msra.mxu0 0.0
      %660 = vmatprep.subr.mxu0 0.0
      %661 = vmatpush2.msra.mxu0 0.0
      %662 = vmatprep.subr.mxu0 0.0
      %663 = vmatpush2.msra.mxu0 0.0
      %664 = vmatprep.mubr.f32.mxu0 0.0
      %665 = vmatmul.mubr.f32.gmra.mxu0 %v577
      %v666 = vpop.f32.mrf.mxu0
      %v667 = vadd.f32 0.0, %v666
      %v668 = vpop.f32.mrf.mxu0
      %669 = vmatprep.mubr.f32.mxu0 0.0
      %670 = vmatmul.mubr.f32.gmra.mxu0 %v580
      %v671 = vpop.f32.mrf.mxu0
      %v672 = vadd.f32 0.0, %v671
      %v673 = vpop.f32.mrf.mxu0
      %674 = vmatprep.mubr.f32.mxu0 0.0
      %675 = vmatmul.mubr.f32.gmra.mxu0 %v583
      %v676 = vpop.f32.mrf.mxu0
      %v677 = vadd.f32 0.0, %v676
      %v678 = vpop.f32.mrf.mxu0
      %679 = vmatprep.mubr.f32.mxu0 0.0
      %680 = vmatmul.mubr.f32.gmra.mxu0 %v586
      %v681 = vpop.f32.mrf.mxu0
      %v682 = vadd.f32 0.0, %v681
      %v683 = vpop.f32.mrf.mxu0
      %684 = vmatprep.mubr.f32.mxu0 0.0
      %685 = vmatmul.mubr.f32.gmra.mxu0 %v589
      %v686 = vpop.f32.mrf.mxu0
      %v687 = vadd.f32 0.0, %v686
      %v688 = vpop.f32.mrf.mxu0
      %689 = vmatprep.mubr.f32.mxu0 0.0
      %690 = vmatmul.mubr.f32.gmra.mxu0 %v592
      %v691 = vpop.f32.mrf.mxu0
      %v692 = vadd.f32 0.0, %v691
      %v693 = vpop.f32.mrf.mxu0
      %694 = vmatprep.mubr.f32.mxu0 0.0
      %695 = vmatmul.mubr.f32.gmra.mxu0 %v595
      %v696 = vpop.f32.mrf.mxu0
      %v697 = vadd.f32 0.0, %v696
      %v698 = vpop.f32.mrf.mxu0
      %699 = vmatprep.mubr.f32.mxu0 0.0
      %700 = vmatmul.mubr.f32.gmra.mxu0 %v598
      %v701 = vpop.f32.mrf.mxu0
      %v702 = vadd.f32 0.0, %v701
      %v703 = vpop.f32.mrf.mxu0
      %704 = vdwg.mxu0
      %v706 = vsel %vm575, %v507, 0
      %v709 = vsel %vm575, %v508, 0
      %v712 = vsel %vm575, %v509, 0
      %v715 = vsel %vm575, %v510, 0
      %v718 = vsel %vm575, %v511, 0
      %v721 = vsel %vm575, %v512, 0
      %v724 = vsel %vm575, %v513, 0
      %v727 = vsel %vm575, %v514, 0
      %729 = vmatprep.subr.mxu0 0.0
      %730 = vmatpush1.msra.mxu0 0.0
      %731 = vmatprep.subr.mxu0 0.0
      %732 = vmatpush1.msra.mxu0 0.0
      %733 = vmatprep.subr.mxu0 0.0
      %734 = vmatpush1.msra.mxu0 0.0
      %735 = vmatprep.subr.mxu0 0.0
      %736 = vmatpush1.msra.mxu0 0.0
      %737 = vmatprep.subr.mxu0 0.0
      %738 = vmatpush1.msra.mxu0 0.0
      %739 = vmatprep.subr.mxu0 0.0
      %740 = vmatpush1.msra.mxu0 0.0
      %741 = vmatprep.subr.mxu0 0.0
      %742 = vmatpush1.msra.mxu0 0.0
      %743 = vmatprep.subr.mxu0 0.0
      %744 = vmatpush1.msra.mxu0 0.0
      %745 = vmatprep.subr.mxu0 0.0
      %746 = vmatpush1.msra.mxu0 0.0
      %747 = vmatprep.subr.mxu0 0.0
      %748 = vmatpush1.msra.mxu0 0.0
      %749 = vmatprep.subr.mxu0 0.0
      %750 = vmatpush1.msra.mxu0 0.0
      %751 = vmatprep.subr.mxu0 0.0
      %752 = vmatpush1.msra.mxu0 0.0
      %753 = vmatprep.subr.mxu0 0.0
      %754 = vmatpush1.msra.mxu0 0.0
      %755 = vmatprep.subr.mxu0 0.0
      %756 = vmatpush1.msra.mxu0 0.0
      %757 = vmatprep.subr.mxu0 0.0
      %758 = vmatpush1.msra.mxu0 %v572
      %759 = vmatprep.subr.mxu0 0.0
      %760 = vmatpush1.msra.mxu0 %v571
      %761 = vmatprep.subr.mxu0 0.0
      %762 = vmatpush2.msra.mxu0 0.0
      %763 = vmatprep.subr.mxu0 0.0
      %764 = vmatpush2.msra.mxu0 0.0
      %765 = vmatprep.subr.mxu0 0.0
      %766 = vmatpush2.msra.mxu0 0.0
      %767 = vmatprep.subr.mxu0 0.0
      %768 = vmatpush2.msra.mxu0 0.0
      %769 = vmatprep.subr.mxu0 0.0
      %770 = vmatpush2.msra.mxu0 0.0
      %771 = vmatprep.subr.mxu0 0.0
      %772 = vmatpush2.msra.mxu0 0.0
      %773 = vmatprep.subr.mxu0 0.0
      %774 = vmatpush2.msra.mxu0 0.0
      %775 = vmatprep.subr.mxu0 0.0
      %776 = vmatpush2.msra.mxu0 0.0
      %777 = vmatprep.subr.mxu0 0.0
      %778 = vmatpush2.msra.mxu0 0.0
      %779 = vmatprep.subr.mxu0 0.0
      %780 = vmatpush2.msra.mxu0 0.0
      %781 = vmatprep.subr.mxu0 0.0
      %782 = vmatpush2.msra.mxu0 0.0
      %783 = vmatprep.subr.mxu0 0.0
      %784 = vmatpush2.msra.mxu0 0.0
      %785 = vmatprep.subr.mxu0 0.0
      %786 = vmatpush2.msra.mxu0 0.0
      %787 = vmatprep.subr.mxu0 0.0
      %788 = vmatpush2.msra.mxu0 0.0
      %789 = vmatprep.subr.mxu0 0.0
      %790 = vmatpush2.msra.mxu0 0.0
      %791 = vmatprep.subr.mxu0 0.0
      %792 = vmatpush2.msra.mxu0 0.0
      %793 = vmatprep.mubr.f32.mxu0 0.0
      %794 = vmatmul.mubr.f32.gmra.mxu0 %v706
      %v795 = vpop.f32.mrf.mxu0
      %v796 = vadd.f32 %v667, %v795
      %v797 = vpop.f32.mrf.mxu0
      %798 = vmatprep.mubr.f32.mxu0 0.0
      %799 = vmatmul.mubr.f32.gmra.mxu0 %v709
      %v800 = vpop.f32.mrf.mxu0
      %v801 = vadd.f32 %v672, %v800
      %v802 = vpop.f32.mrf.mxu0
      %803 = vmatprep.mubr.f32.mxu0 0.0
      %804 = vmatmul.mubr.f32.gmra.mxu0 %v712
      %v805 = vpop.f32.mrf.mxu0
      %v806 = vadd.f32 %v677, %v805
      %v807 = vpop.f32.mrf.mxu0
      %808 = vmatprep.mubr.f32.mxu0 0.0
      %809 = vmatmul.mubr.f32.gmra.mxu0 %v715
      %v810 = vpop.f32.mrf.mxu0
      %v811 = vadd.f32 %v682, %v810
      %v812 = vpop.f32.mrf.mxu0
      %813 = vmatprep.mubr.f32.mxu0 0.0
      %814 = vmatmul.mubr.f32.gmra.mxu0 %v718
      %v815 = vpop.f32.mrf.mxu0
      %v816 = vadd.f32 %v687, %v815
      %v817 = vpop.f32.mrf.mxu0
      %818 = vmatprep.mubr.f32.mxu0 0.0
      %819 = vmatmul.mubr.f32.gmra.mxu0 %v721
      %v820 = vpop.f32.mrf.mxu0
      %v821 = vadd.f32 %v692, %v820
      %v822 = vpop.f32.mrf.mxu0
      %823 = vmatprep.mubr.f32.mxu0 0.0
      %824 = vmatmul.mubr.f32.gmra.mxu0 %v724
      %v825 = vpop.f32.mrf.mxu0
      %v826 = vadd.f32 %v697, %v825
      %v827 = vpop.f32.mrf.mxu0
      %828 = vmatprep.mubr.f32.mxu0 0.0
      %829 = vmatmul.mubr.f32.gmra.mxu0 %v727
      %v830 = vpop.f32.mrf.mxu0
      %v831 = vadd.f32 %v702, %v830
      %v832 = vpop.f32.mrf.mxu0
      %833 = vdwg.mxu0
      %834 = vst [vmem:[#allocation2] sm:$0xff] %v796
      %835 = vst [vmem:[#allocation2 + $0x8] sm:$0xff] %v801
      %836 = vst [vmem:[#allocation2 + $0x10] sm:$0xff] %v806
      %837 = vst [vmem:[#allocation2 + $0x18] sm:$0xff] %v811
      %838 = vst [vmem:[#allocation2 + $0x20] sm:$0xff] %v816
      %839 = vst [vmem:[#allocation2 + $0x28] sm:$0xff] %v821
      %840 = vst [vmem:[#allocation2 + $0x30] sm:$0xff] %v826
      %841 = vst [vmem:[#allocation2 + $0x38] sm:$0xff] %v831
      %v842 = vld [vmem:[%s4] sm:$0xff]
      %v843 = vld [vmem:[%s4 + $0x8] sm:$0xff]
      %v844 = vld [vmem:[%s4 + $0x10] sm:$0xff]
      %v845 = vld [vmem:[%s4 + $0x18] sm:$0xff]
      %v846 = vld [vmem:[%s5] sm:$0x1]
      %v848 = vlaneseq
      %v849 = vshrl.u32 %v848, 7
      %v850 = vsub.s32 0, %v849
      %v851 = vrot.slane %v846, %v850
      %v852 = vld [vmem:[%s6] sm:$0x1]
      %v854 = vlaneseq
      %v855 = vshrl.u32 %v854, 7
      %v856 = vsub.s32 0, %v855
      %v857 = vrot.slane %v852, %v856
      %v858 = vld [vmem:[#allocation2] sm:$0xff]
      %vm859 = vcmask 261120
      %v860 = vsel %vm859, %v851, 0
      %862 = vmatprep.subr.mxu0 0.0
      %863 = vmatpush1.msra.mxu0 0.0
      %864 = vmatprep.subr.mxu0 0.0
      %865 = vmatpush1.msra.mxu0 0.0
      %866 = vmatprep.subr.mxu0 0.0
      %867 = vmatpush1.msra.mxu0 0.0
      %868 = vmatprep.subr.mxu0 0.0
      %869 = vmatpush1.msra.mxu0 0.0
      %870 = vmatprep.subr.mxu0 0.0
      %871 = vmatpush1.msra.mxu0 0.0
      %872 = vmatprep.subr.mxu0 0.0
      %873 = vmatpush1.msra.mxu0 0.0
      %874 = vmatprep.subr.mxu0 0.0
      %875 = vmatpush1.msra.mxu0 0.0
      %876 = vmatprep.subr.mxu0 0.0
      %877 = vmatpush1.msra.mxu0 0.0
      %878 = vmatprep.subr.mxu0 0.0
      %879 = vmatpush1.msra.mxu0 0.0
      %880 = vmatprep.subr.mxu0 0.0
      %881 = vmatpush1.msra.mxu0 0.0
      %882 = vmatprep.subr.mxu0 0.0
      %883 = vmatpush1.msra.mxu0 0.0
      %884 = vmatprep.subr.mxu0 0.0
      %885 = vmatpush1.msra.mxu0 0.0
      %886 = vmatprep.subr.mxu0 0.0
      %887 = vmatpush1.msra.mxu0 %v845
      %888 = vmatprep.subr.mxu0 0.0
      %889 = vmatpush1.msra.mxu0 %v844
      %890 = vmatprep.subr.mxu0 0.0
      %891 = vmatpush1.msra.mxu0 %v843
      %892 = vmatprep.subr.mxu0 0.0
      %893 = vmatpush1.msra.mxu0 %v842
      %894 = vmatprep.subr.mxu0 0.0
      %895 = vmatpush2.msra.mxu0 0.0
      %896 = vmatprep.subr.mxu0 0.0
      %897 = vmatpush2.msra.mxu0 0.0
      %898 = vmatprep.subr.mxu0 0.0
      %899 = vmatpush2.msra.mxu0 0.0
      %900 = vmatprep.subr.mxu0 0.0
      %901 = vmatpush2.msra.mxu0 0.0
      %902 = vmatprep.subr.mxu0 0.0
      %903 = vmatpush2.msra.mxu0 0.0
      %904 = vmatprep.subr.mxu0 0.0
      %905 = vmatpush2.msra.mxu0 0.0
      %906 = vmatprep.subr.mxu0 0.0
      %907 = vmatpush2.msra.mxu0 0.0
      %908 = vmatprep.subr.mxu0 0.0
      %909 = vmatpush2.msra.mxu0 0.0
      %910 = vmatprep.subr.mxu0 0.0
      %911 = vmatpush2.msra.mxu0 0.0
      %912 = vmatprep.subr.mxu0 0.0
      %913 = vmatpush2.msra.mxu0 0.0
      %914 = vmatprep.subr.mxu0 0.0
      %915 = vmatpush2.msra.mxu0 0.0
      %916 = vmatprep.subr.mxu0 0.0
      %917 = vmatpush2.msra.mxu0 0.0
      %918 = vmatprep.subr.mxu0 0.0
      %919 = vmatpush2.msra.mxu0 0.0
      %920 = vmatprep.subr.mxu0 0.0
      %921 = vmatpush2.msra.mxu0 0.0
      %922 = vmatprep.subr.mxu0 0.0
      %923 = vmatpush2.msra.mxu0 0.0
      %924 = vmatprep.subr.mxu0 0.0
      %925 = vmatpush2.msra.mxu0 0.0
      %926 = vmatprep.mubr.f32.mxu0 0.0
      %927 = vmatmul.mubr.f32.gmra.mxu0 %v860
      %v928 = vpop.f32.mrf.mxu0
      %v929 = vadd.f32 %v858, %v928
      %v930 = vpop.f32.mrf.mxu0
      %931 = vdwg.mxu0
      %v932 = vxor.u32 %v929, 2147483648
      %v933 = vmul.f32 %v932, 1.442695
      %v934 = vpow.pop %v933
      %v935 = vadd.f32 %v934, 1.0
      %v936 = vrcp.pop %v935
      %v937 = vmul.f32 1.0, %v936
      %v938 = vtanh.pop %v929
      %939 = vrot.lane.b32.xlu0 %v857, 32
      %v940 = vpop.permute.xlu0 %939
      %v942 = vmul.f32 %v937, %v940
      %944 = vrot.lane.b32.xlu0 %v938, 32
      %v945 = vpop.permute.xlu0 %944
      %v947 = vmul.f32 %v937, %v945
      %949 = vrot.lane.b32.xlu0 %v947, 32
      %v950 = vpop.permute.xlu0 %949
      %v952 = vadd.f32 %v942, %v950
      %v953 = vtanh.pop %v952
      %955 = vrot.lane.b32.xlu0 %v953, 32
      %v956 = vpop.permute.xlu0 %955
      %v958 = vmul.f32 %v937, %v956
      %960 = vrot.lane.b32.xlu0 %v958, 64
      %v961 = vpop.permute.xlu0 %960
      %963 = vst.msk [vmem:[#allocation3] sm:$0xff] %vm575, %v961
      %vm964 = vcmask 261248
      %965 = vst.msk [vmem:[#allocation3 + $0x38] sm:$0xff] %vm964, %v961
      %v966 = vld [vmem:[#allocation2 + $0x8] sm:$0xff]
      %v967 = vsel %vm859, %v961, 0
      %969 = vmatprep.subr.mxu0 0.0
      %970 = vmatpush1.msra.mxu0 0.0
      %971 = vmatprep.subr.mxu0 0.0
      %972 = vmatpush1.msra.mxu0 0.0
      %973 = vmatprep.subr.mxu0 0.0
      %974 = vmatpush1.msra.mxu0 0.0
      %975 = vmatprep.subr.mxu0 0.0
      %976 = vmatpush1.msra.mxu0 0.0
      %977 = vmatprep.subr.mxu0 0.0
      %978 = vmatpush1.msra.mxu0 0.0
      %979 = vmatprep.subr.mxu0 0.0
      %980 = vmatpush1.msra.mxu0 0.0
      %981 = vmatprep.subr.mxu0 0.0
      %982 = vmatpush1.msra.mxu0 0.0
      %983 = vmatprep.subr.mxu0 0.0
      %984 = vmatpush1.msra.mxu0 0.0
      %985 = vmatprep.subr.mxu0 0.0
      %986 = vmatpush1.msra.mxu0 0.0
      %987 = vmatprep.subr.mxu0 0.0
      %988 = vmatpush1.msra.mxu0 0.0
      %989 = vmatprep.subr.mxu0 0.0
      %990 = vmatpush1.msra.mxu0 0.0
      %991 = vmatprep.subr.mxu0 0.0
      %992 = vmatpush1.msra.mxu0 0.0
      %993 = vmatprep.subr.mxu0 0.0
      %994 = vmatpush1.msra.mxu0 %v845
      %995 = vmatprep.subr.mxu0 0.0
      %996 = vmatpush1.msra.mxu0 %v844
      %997 = vmatprep.subr.mxu0 0.0
      %998 = vmatpush1.msra.mxu0 %v843
      %999 = vmatprep.subr.mxu0 0.0
      %1000 = vmatpush1.msra.mxu0 %v842
      %1001 = vmatprep.subr.mxu0 0.0
      %1002 = vmatpush2.msra.mxu0 0.0
      %1003 = vmatprep.subr.mxu0 0.0
      %1004 = vmatpush2.msra.mxu0 0.0
      %1005 = vmatprep.subr.mxu0 0.0
      %1006 = vmatpush2.msra.mxu0 0.0
      %1007 = vmatprep.subr.mxu0 0.0
      %1008 = vmatpush2.msra.mxu0 0.0
      %1009 = vmatprep.subr.mxu0 0.0
      %1010 = vmatpush2.msra.mxu0 0.0
      %1011 = vmatprep.subr.mxu0 0.0
      %1012 = vmatpush2.msra.mxu0 0.0
      %1013 = vmatprep.subr.mxu0 0.0
      %1014 = vmatpush2.msra.mxu0 0.0
      %1015 = vmatprep.subr.mxu0 0.0
      %1016 = vmatpush2.msra.mxu0 0.0
      %1017 = vmatprep.subr.mxu0 0.0
      %1018 = vmatpush2.msra.mxu0 0.0
      %1019 = vmatprep.subr.mxu0 0.0
      %1020 = vmatpush2.msra.mxu0 0.0
      %1021 = vmatprep.subr.mxu0 0.0
      %1022 = vmatpush2.msra.mxu0 0.0
      %1023 = vmatprep.subr.mxu0 0.0
      %1024 = vmatpush2.msra.mxu0 0.0
      %1025 = vmatprep.subr.mxu0 0.0
      %1026 = vmatpush2.msra.mxu0 0.0
      %1027 = vmatprep.subr.mxu0 0.0
      %1028 = vmatpush2.msra.mxu0 0.0
      %1029 = vmatprep.subr.mxu0 0.0
      %1030 = vmatpush2.msra.mxu0 0.0
      %1031 = vmatprep.subr.mxu0 0.0
      %1032 = vmatpush2.msra.mxu0 0.0
      %1033 = vmatprep.mubr.f32.mxu0 0.0
      %1034 = vmatmul.mubr.f32.gmra.mxu0 %v967
      %v1035 = vpop.f32.mrf.mxu0
      %v1036 = vadd.f32 %v966, %v1035
      %v1037 = vpop.f32.mrf.mxu0
      %1038 = vdwg.mxu0
      %v1039 = vxor.u32 %v1036, 2147483648
      %v1040 = vmul.f32 %v1039, 1.442695
      %v1041 = vpow.pop %v1040
      %v1042 = vadd.f32 %v1041, 1.0
      %v1043 = vrcp.pop %v1042
      %v1044 = vmul.f32 1.0, %v1043
      %v1045 = vtanh.pop %v1036
      %v1046 = vmul.f32 %v1044, %v952
      %1048 = vrot.lane.b32.xlu0 %v1045, 32
      %v1049 = vpop.permute.xlu0 %1048
      %v1051 = vmul.f32 %v1044, %v1049
      %1053 = vrot.lane.b32.xlu0 %v1051, 32
      %v1054 = vpop.permute.xlu0 %1053
      %v1056 = vadd.f32 %v1046, %v1054
      %v1057 = vtanh.pop %v1056
      %1059 = vrot.lane.b32.xlu0 %v1057, 32
      %v1060 = vpop.permute.xlu0 %1059
      %v1062 = vmul.f32 %v1044, %v1060
      %1064 = vrot.lane.b32.xlu0 %v1062, 64
      %v1065 = vpop.permute.xlu0 %1064
      %1067 = vst.msk [vmem:[#allocation3 + $0x8] sm:$0xff] %vm575, %v1065
      %1068 = vst.msk [vmem:[#allocation3 + $0x30] sm:$0xff] %vm964, %v1065
      %v1069 = vld [vmem:[#allocation2 + $0x10] sm:$0xff]
      %v1070 = vsel %vm859, %v1065, 0
      %1072 = vmatprep.subr.mxu0 0.0
      %1073 = vmatpush1.msra.mxu0 0.0
      %1074 = vmatprep.subr.mxu0 0.0
      %1075 = vmatpush1.msra.mxu0 0.0
      %1076 = vmatprep.subr.mxu0 0.0
      %1077 = vmatpush1.msra.mxu0 0.0
      %1078 = vmatprep.subr.mxu0 0.0
      %1079 = vmatpush1.msra.mxu0 0.0
      %1080 = vmatprep.subr.mxu0 0.0
      %1081 = vmatpush1.msra.mxu0 0.0
      %1082 = vmatprep.subr.mxu0 0.0
      %1083 = vmatpush1.msra.mxu0 0.0
      %1084 = vmatprep.subr.mxu0 0.0
      %1085 = vmatpush1.msra.mxu0 0.0
      %1086 = vmatprep.subr.mxu0 0.0
      %1087 = vmatpush1.msra.mxu0 0.0
      %1088 = vmatprep.subr.mxu0 0.0
      %1089 = vmatpush1.msra.mxu0 0.0
      %1090 = vmatprep.subr.mxu0 0.0
      %1091 = vmatpush1.msra.mxu0 0.0
      %1092 = vmatprep.subr.mxu0 0.0
      %1093 = vmatpush1.msra.mxu0 0.0
      %1094 = vmatprep.subr.mxu0 0.0
      %1095 = vmatpush1.msra.mxu0 0.0
      %1096 = vmatprep.subr.mxu0 0.0
      %1097 = vmatpush1.msra.mxu0 %v845
      %1098 = vmatprep.subr.mxu0 0.0
      %1099 = vmatpush1.msra.mxu0 %v844
      %1100 = vmatprep.subr.mxu0 0.0
      %1101 = vmatpush1.msra.mxu0 %v843
      %1102 = vmatprep.subr.mxu0 0.0
      %1103 = vmatpush1.msra.mxu0 %v842
      %1104 = vmatprep.subr.mxu0 0.0
      %1105 = vmatpush2.msra.mxu0 0.0
      %1106 = vmatprep.subr.mxu0 0.0
      %1107 = vmatpush2.msra.mxu0 0.0
      %1108 = vmatprep.subr.mxu0 0.0
      %1109 = vmatpush2.msra.mxu0 0.0
      %1110 = vmatprep.subr.mxu0 0.0
      %1111 = vmatpush2.msra.mxu0 0.0
      %1112 = vmatprep.subr.mxu0 0.0
      %1113 = vmatpush2.msra.mxu0 0.0
      %1114 = vmatprep.subr.mxu0 0.0
      %1115 = vmatpush2.msra.mxu0 0.0
      %1116 = vmatprep.subr.mxu0 0.0
      %1117 = vmatpush2.msra.mxu0 0.0
      %1118 = vmatprep.subr.mxu0 0.0
      %1119 = vmatpush2.msra.mxu0 0.0
      %1120 = vmatprep.subr.mxu0 0.0
      %1121 = vmatpush2.msra.mxu0 0.0
      %1122 = vmatprep.subr.mxu0 0.0
      %1123 = vmatpush2.msra.mxu0 0.0
      %1124 = vmatprep.subr.mxu0 0.0
      %1125 = vmatpush2.msra.mxu0 0.0
      %1126 = vmatprep.subr.mxu0 0.0
      %1127 = vmatpush2.msra.mxu0 0.0
      %1128 = vmatprep.subr.mxu0 0.0
      %1129 = vmatpush2.msra.mxu0 0.0
      %1130 = vmatprep.subr.mxu0 0.0
      %1131 = vmatpush2.msra.mxu0 0.0
      %1132 = vmatprep.subr.mxu0 0.0
      %1133 = vmatpush2.msra.mxu0 0.0
      %1134 = vmatprep.subr.mxu0 0.0
      %1135 = vmatpush2.msra.mxu0 0.0
      %1136 = vmatprep.mubr.f32.mxu0 0.0
      %1137 = vmatmul.mubr.f32.gmra.mxu0 %v1070
      %v1138 = vpop.f32.mrf.mxu0
      %v1139 = vadd.f32 %v1069, %v1138
      %v1140 = vpop.f32.mrf.mxu0
      %1141 = vdwg.mxu0
      %v1142 = vxor.u32 %v1139, 2147483648
      %v1143 = vmul.f32 %v1142, 1.442695
      %v1144 = vpow.pop %v1143
      %v1145 = vadd.f32 %v1144, 1.0
      %v1146 = vrcp.pop %v1145
      %v1147 = vmul.f32 1.0, %v1146
      %v1148 = vtanh.pop %v1139
      %v1149 = vmul.f32 %v1147, %v1056
      %1151 = vrot.lane.b32.xlu0 %v1148, 32
      %v1152 = vpop.permute.xlu0 %1151
      %v1154 = vmul.f32 %v1147, %v1152
      %1156 = vrot.lane.b32.xlu0 %v1154, 32
      %v1157 = vpop.permute.xlu0 %1156
      %v1159 = vadd.f32 %v1149, %v1157
      %v1160 = vtanh.pop %v1159
      %1162 = vrot.lane.b32.xlu0 %v1160, 32
      %v1163 = vpop.permute.xlu0 %1162
      %v1165 = vmul.f32 %v1147, %v1163
      %1167 = vrot.lane.b32.xlu0 %v1165, 64
      %v1168 = vpop.permute.xlu0 %1167
      %1170 = vst.msk [vmem:[#allocation3 + $0x10] sm:$0xff] %vm575, %v1168
      %1171 = vst.msk [vmem:[#allocation3 + $0x28] sm:$0xff] %vm964, %v1168
      %v1172 = vld [vmem:[#allocation2 + $0x18] sm:$0xff]
      %v1173 = vsel %vm859, %v1168, 0
      %1175 = vmatprep.subr.mxu0 0.0
      %1176 = vmatpush1.msra.mxu0 0.0
      %1177 = vmatprep.subr.mxu0 0.0
      %1178 = vmatpush1.msra.mxu0 0.0
      %1179 = vmatprep.subr.mxu0 0.0
      %1180 = vmatpush1.msra.mxu0 0.0
      %1181 = vmatprep.subr.mxu0 0.0
      %1182 = vmatpush1.msra.mxu0 0.0
      %1183 = vmatprep.subr.mxu0 0.0
      %1184 = vmatpush1.msra.mxu0 0.0
      %1185 = vmatprep.subr.mxu0 0.0
      %1186 = vmatpush1.msra.mxu0 0.0
      %1187 = vmatprep.subr.mxu0 0.0
      %1188 = vmatpush1.msra.mxu0 0.0
      %1189 = vmatprep.subr.mxu0 0.0
      %1190 = vmatpush1.msra.mxu0 0.0
      %1191 = vmatprep.subr.mxu0 0.0
      %1192 = vmatpush1.msra.mxu0 0.0
      %1193 = vmatprep.subr.mxu0 0.0
      %1194 = vmatpush1.msra.mxu0 0.0
      %1195 = vmatprep.subr.mxu0 0.0
      %1196 = vmatpush1.msra.mxu0 0.0
      %1197 = vmatprep.subr.mxu0 0.0
      %1198 = vmatpush1.msra.mxu0 0.0
      %1199 = vmatprep.subr.mxu0 0.0
      %1200 = vmatpush1.msra.mxu0 %v845
      %1201 = vmatprep.subr.mxu0 0.0
      %1202 = vmatpush1.msra.mxu0 %v844
      %1203 = vmatprep.subr.mxu0 0.0
      %1204 = vmatpush1.msra.mxu0 %v843
      %1205 = vmatprep.subr.mxu0 0.0
      %1206 = vmatpush1.msra.mxu0 %v842
      %1207 = vmatprep.subr.mxu0 0.0
      %1208 = vmatpush2.msra.mxu0 0.0
      %1209 = vmatprep.subr.mxu0 0.0
      %1210 = vmatpush2.msra.mxu0 0.0
      %1211 = vmatprep.subr.mxu0 0.0
      %1212 = vmatpush2.msra.mxu0 0.0
      %1213 = vmatprep.subr.mxu0 0.0
      %1214 = vmatpush2.msra.mxu0 0.0
      %1215 = vmatprep.subr.mxu0 0.0
      %1216 = vmatpush2.msra.mxu0 0.0
      %1217 = vmatprep.subr.mxu0 0.0
      %1218 = vmatpush2.msra.mxu0 0.0
      %1219 = vmatprep.subr.mxu0 0.0
      %1220 = vmatpush2.msra.mxu0 0.0
      %1221 = vmatprep.subr.mxu0 0.0
      %1222 = vmatpush2.msra.mxu0 0.0
      %1223 = vmatprep.subr.mxu0 0.0
      %1224 = vmatpush2.msra.mxu0 0.0
      %1225 = vmatprep.subr.mxu0 0.0
      %1226 = vmatpush2.msra.mxu0 0.0
      %1227 = vmatprep.subr.mxu0 0.0
      %1228 = vmatpush2.msra.mxu0 0.0
      %1229 = vmatprep.subr.mxu0 0.0
      %1230 = vmatpush2.msra.mxu0 0.0
      %1231 = vmatprep.subr.mxu0 0.0
      %1232 = vmatpush2.msra.mxu0 0.0
      %1233 = vmatprep.subr.mxu0 0.0
      %1234 = vmatpush2.msra.mxu0 0.0
      %1235 = vmatprep.subr.mxu0 0.0
      %1236 = vmatpush2.msra.mxu0 0.0
      %1237 = vmatprep.subr.mxu0 0.0
      %1238 = vmatpush2.msra.mxu0 0.0
      %1239 = vmatprep.mubr.f32.mxu0 0.0
      %1240 = vmatmul.mubr.f32.gmra.mxu0 %v1173
      %v1241 = vpop.f32.mrf.mxu0
      %v1242 = vadd.f32 %v1172, %v1241
      %v1243 = vpop.f32.mrf.mxu0
      %1244 = vdwg.mxu0
      %v1245 = vxor.u32 %v1242, 2147483648
      %v1246 = vmul.f32 %v1245, 1.442695
      %v1247 = vpow.pop %v1246
      %v1248 = vadd.f32 %v1247, 1.0
      %v1249 = vrcp.pop %v1248
      %v1250 = vmul.f32 1.0, %v1249
      %v1251 = vtanh.pop %v1242
      %v1252 = vmul.f32 %v1250, %v1159
      %1254 = vrot.lane.b32.xlu0 %v1251, 32
      %v1255 = vpop.permute.xlu0 %1254
      %v1257 = vmul.f32 %v1250, %v1255
      %1259 = vrot.lane.b32.xlu0 %v1257, 32
      %v1260 = vpop.permute.xlu0 %1259
      %v1262 = vadd.f32 %v1252, %v1260
      %v1263 = vtanh.pop %v1262
      %1265 = vrot.lane.b32.xlu0 %v1263, 32
      %v1266 = vpop.permute.xlu0 %1265
      %v1268 = vmul.f32 %v1250, %v1266
      %1270 = vrot.lane.b32.xlu0 %v1268, 64
      %v1271 = vpop.permute.xlu0 %1270
      %1273 = vst.msk [vmem:[#allocation3 + $0x18] sm:$0xff] %vm575, %v1271
      %1274 = vst.msk [vmem:[#allocation3 + $0x20] sm:$0xff] %vm964, %v1271
      %v1275 = vld [vmem:[#allocation2 + $0x20] sm:$0xff]
      %v1276 = vsel %vm859, %v1271, 0
      %1278 = vmatprep.subr.mxu0 0.0
      %1279 = vmatpush1.msra.mxu0 0.0
      %1280 = vmatprep.subr.mxu0 0.0
      %1281 = vmatpush1.msra.mxu0 0.0
      %1282 = vmatprep.subr.mxu0 0.0
      %1283 = vmatpush1.msra.mxu0 0.0
      %1284 = vmatprep.subr.mxu0 0.0
      %1285 = vmatpush1.msra.mxu0 0.0
      %1286 = vmatprep.subr.mxu0 0.0
      %1287 = vmatpush1.msra.mxu0 0.0
      %1288 = vmatprep.subr.mxu0 0.0
      %1289 = vmatpush1.msra.mxu0 0.0
      %1290 = vmatprep.subr.mxu0 0.0
      %1291 = vmatpush1.msra.mxu0 0.0
      %1292 = vmatprep.subr.mxu0 0.0
      %1293 = vmatpush1.msra.mxu0 0.0
      %1294 = vmatprep.subr.mxu0 0.0
      %1295 = vmatpush1.msra.mxu0 0.0
      %1296 = vmatprep.subr.mxu0 0.0
      %1297 = vmatpush1.msra.mxu0 0.0
      %1298 = vmatprep.subr.mxu0 0.0
      %1299 = vmatpush1.msra.mxu0 0.0
      %1300 = vmatprep.subr.mxu0 0.0
      %1301 = vmatpush1.msra.mxu0 0.0
      %1302 = vmatprep.subr.mxu0 0.0
      %1303 = vmatpush1.msra.mxu0 %v845
      %1304 = vmatprep.subr.mxu0 0.0
      %1305 = vmatpush1.msra.mxu0 %v844
      %1306 = vmatprep.subr.mxu0 0.0
      %1307 = vmatpush1.msra.mxu0 %v843
      %1308 = vmatprep.subr.mxu0 0.0
      %1309 = vmatpush1.msra.mxu0 %v842
      %1310 = vmatprep.subr.mxu0 0.0
      %1311 = vmatpush2.msra.mxu0 0.0
      %1312 = vmatprep.subr.mxu0 0.0
      %1313 = vmatpush2.msra.mxu0 0.0
      %1314 = vmatprep.subr.mxu0 0.0
      %1315 = vmatpush2.msra.mxu0 0.0
      %1316 = vmatprep.subr.mxu0 0.0
      %1317 = vmatpush2.msra.mxu0 0.0
      %1318 = vmatprep.subr.mxu0 0.0
      %1319 = vmatpush2.msra.mxu0 0.0
      %1320 = vmatprep.subr.mxu0 0.0
      %1321 = vmatpush2.msra.mxu0 0.0
      %1322 = vmatprep.subr.mxu0 0.0
      %1323 = vmatpush2.msra.mxu0 0.0
      %1324 = vmatprep.subr.mxu0 0.0
      %1325 = vmatpush2.msra.mxu0 0.0
      %1326 = vmatprep.subr.mxu0 0.0
      %1327 = vmatpush2.msra.mxu0 0.0
      %1328 = vmatprep.subr.mxu0 0.0
      %1329 = vmatpush2.msra.mxu0 0.0
      %1330 = vmatprep.subr.mxu0 0.0
      %1331 = vmatpush2.msra.mxu0 0.0
      %1332 = vmatprep.subr.mxu0 0.0
      %1333 = vmatpush2.msra.mxu0 0.0
      %1334 = vmatprep.subr.mxu0 0.0
      %1335 = vmatpush2.msra.mxu0 0.0
      %1336 = vmatprep.subr.mxu0 0.0
      %1337 = vmatpush2.msra.mxu0 0.0
      %1338 = vmatprep.subr.mxu0 0.0
      %1339 = vmatpush2.msra.mxu0 0.0
      %1340 = vmatprep.subr.mxu0 0.0
      %1341 = vmatpush2.msra.mxu0 0.0
      %1342 = vmatprep.mubr.f32.mxu0 0.0
      %1343 = vmatmul.mubr.f32.gmra.mxu0 %v1276
      %v1344 = vpop.f32.mrf.mxu0
      %v1345 = vadd.f32 %v1275, %v1344
      %v1346 = vpop.f32.mrf.mxu0
      %1347 = vdwg.mxu0
      %v1348 = vxor.u32 %v1345, 2147483648
      %v1349 = vmul.f32 %v1348, 1.442695
      %v1350 = vpow.pop %v1349
      %v1351 = vadd.f32 %v1350, 1.0
      %v1352 = vrcp.pop %v1351
      %v1353 = vmul.f32 1.0, %v1352
      %v1354 = vtanh.pop %v1345
      %v1355 = vmul.f32 %v1353, %v1262
      %1357 = vrot.lane.b32.xlu0 %v1354, 32
      %v1358 = vpop.permute.xlu0 %1357
      %v1360 = vmul.f32 %v1353, %v1358
      %1362 = vrot.lane.b32.xlu0 %v1360, 32
      %v1363 = vpop.permute.xlu0 %1362
      %v1365 = vadd.f32 %v1355, %v1363
      %v1366 = vtanh.pop %v1365
      %1368 = vrot.lane.b32.xlu0 %v1366, 32
      %v1369 = vpop.permute.xlu0 %1368
      %v1371 = vmul.f32 %v1353, %v1369
      %1373 = vrot.lane.b32.xlu0 %v1371, 64
      %v1374 = vpop.permute.xlu0 %1373
      %1376 = vst.msk [vmem:[#allocation3 + $0x20] sm:$0xff] %vm575, %v1374
      %1377 = vst.msk [vmem:[#allocation3 + $0x18] sm:$0xff] %vm964, %v1374
      %v1378 = vld [vmem:[#allocation2 + $0x28] sm:$0xff]
      %v1379 = vsel %vm859, %v1374, 0
      %1381 = vmatprep.subr.mxu0 0.0
      %1382 = vmatpush1.msra.mxu0 0.0
      %1383 = vmatprep.subr.mxu0 0.0
      %1384 = vmatpush1.msra.mxu0 0.0
      %1385 = vmatprep.subr.mxu0 0.0
      %1386 = vmatpush1.msra.mxu0 0.0
      %1387 = vmatprep.subr.mxu0 0.0
      %1388 = vmatpush1.msra.mxu0 0.0
      %1389 = vmatprep.subr.mxu0 0.0
      %1390 = vmatpush1.msra.mxu0 0.0
      %1391 = vmatprep.subr.mxu0 0.0
      %1392 = vmatpush1.msra.mxu0 0.0
      %1393 = vmatprep.subr.mxu0 0.0
      %1394 = vmatpush1.msra.mxu0 0.0
      %1395 = vmatprep.subr.mxu0 0.0
      %1396 = vmatpush1.msra.mxu0 0.0
      %1397 = vmatprep.subr.mxu0 0.0
      %1398 = vmatpush1.msra.mxu0 0.0
      %1399 = vmatprep.subr.mxu0 0.0
      %1400 = vmatpush1.msra.mxu0 0.0
      %1401 = vmatprep.subr.mxu0 0.0
      %1402 = vmatpush1.msra.mxu0 0.0
      %1403 = vmatprep.subr.mxu0 0.0
      %1404 = vmatpush1.msra.mxu0 0.0
      %1405 = vmatprep.subr.mxu0 0.0
      %1406 = vmatpush1.msra.mxu0 %v845
      %1407 = vmatprep.subr.mxu0 0.0
      %1408 = vmatpush1.msra.mxu0 %v844
      %1409 = vmatprep.subr.mxu0 0.0
      %1410 = vmatpush1.msra.mxu0 %v843
      %1411 = vmatprep.subr.mxu0 0.0
      %1412 = vmatpush1.msra.mxu0 %v842
      %1413 = vmatprep.subr.mxu0 0.0
      %1414 = vmatpush2.msra.mxu0 0.0
      %1415 = vmatprep.subr.mxu0 0.0
      %1416 = vmatpush2.msra.mxu0 0.0
      %1417 = vmatprep.subr.mxu0 0.0
      %1418 = vmatpush2.msra.mxu0 0.0
      %1419 = vmatprep.subr.mxu0 0.0
      %1420 = vmatpush2.msra.mxu0 0.0
      %1421 = vmatprep.subr.mxu0 0.0
      %1422 = vmatpush2.msra.mxu0 0.0
      %1423 = vmatprep.subr.mxu0 0.0
      %1424 = vmatpush2.msra.mxu0 0.0
      %1425 = vmatprep.subr.mxu0 0.0
      %1426 = vmatpush2.msra.mxu0 0.0
      %1427 = vmatprep.subr.mxu0 0.0
      %1428 = vmatpush2.msra.mxu0 0.0
      %1429 = vmatprep.subr.mxu0 0.0
      %1430 = vmatpush2.msra.mxu0 0.0
      %1431 = vmatprep.subr.mxu0 0.0
      %1432 = vmatpush2.msra.mxu0 0.0
      %1433 = vmatprep.subr.mxu0 0.0
      %1434 = vmatpush2.msra.mxu0 0.0
      %1435 = vmatprep.subr.mxu0 0.0
      %1436 = vmatpush2.msra.mxu0 0.0
      %1437 = vmatprep.subr.mxu0 0.0
      %1438 = vmatpush2.msra.mxu0 0.0
      %1439 = vmatprep.subr.mxu0 0.0
      %1440 = vmatpush2.msra.mxu0 0.0
      %1441 = vmatprep.subr.mxu0 0.0
      %1442 = vmatpush2.msra.mxu0 0.0
      %1443 = vmatprep.subr.mxu0 0.0
      %1444 = vmatpush2.msra.mxu0 0.0
      %1445 = vmatprep.mubr.f32.mxu0 0.0
      %1446 = vmatmul.mubr.f32.gmra.mxu0 %v1379
      %v1447 = vpop.f32.mrf.mxu0
      %v1448 = vadd.f32 %v1378, %v1447
      %v1449 = vpop.f32.mrf.mxu0
      %1450 = vdwg.mxu0
      %v1451 = vxor.u32 %v1448, 2147483648
      %v1452 = vmul.f32 %v1451, 1.442695
      %v1453 = vpow.pop %v1452
      %v1454 = vadd.f32 %v1453, 1.0
      %v1455 = vrcp.pop %v1454
      %v1456 = vmul.f32 1.0, %v1455
      %v1457 = vtanh.pop %v1448
      %v1458 = vmul.f32 %v1456, %v1365
      %1460 = vrot.lane.b32.xlu0 %v1457, 32
      %v1461 = vpop.permute.xlu0 %1460
      %v1463 = vmul.f32 %v1456, %v1461
      %1465 = vrot.lane.b32.xlu0 %v1463, 32
      %v1466 = vpop.permute.xlu0 %1465
      %v1468 = vadd.f32 %v1458, %v1466
      %v1469 = vtanh.pop %v1468
      %1471 = vrot.lane.b32.xlu0 %v1469, 32
      %v1472 = vpop.permute.xlu0 %1471
      %v1474 = vmul.f32 %v1456, %v1472
      %1476 = vrot.lane.b32.xlu0 %v1474, 64
      %v1477 = vpop.permute.xlu0 %1476
      %1479 = vst.msk [vmem:[#allocation3 + $0x28] sm:$0xff] %vm575, %v1477
      %1480 = vst.msk [vmem:[#allocation3 + $0x10] sm:$0xff] %vm964, %v1477
      %v1481 = vld [vmem:[#allocation2 + $0x30] sm:$0xff]
      %v1482 = vsel %vm859, %v1477, 0
      %1484 = vmatprep.subr.mxu0 0.0
      %1485 = vmatpush1.msra.mxu0 0.0
      %1486 = vmatprep.subr.mxu0 0.0
      %1487 = vmatpush1.msra.mxu0 0.0
      %1488 = vmatprep.subr.mxu0 0.0
      %1489 = vmatpush1.msra.mxu0 0.0
      %1490 = vmatprep.subr.mxu0 0.0
      %1491 = vmatpush1.msra.mxu0 0.0
      %1492 = vmatprep.subr.mxu0 0.0
      %1493 = vmatpush1.msra.mxu0 0.0
      %1494 = vmatprep.subr.mxu0 0.0
      %1495 = vmatpush1.msra.mxu0 0.0
      %1496 = vmatprep.subr.mxu0 0.0
      %1497 = vmatpush1.msra.mxu0 0.0
      %1498 = vmatprep.subr.mxu0 0.0
      %1499 = vmatpush1.msra.mxu0 0.0
      %1500 = vmatprep.subr.mxu0 0.0
      %1501 = vmatpush1.msra.mxu0 0.0
      %1502 = vmatprep.subr.mxu0 0.0
      %1503 = vmatpush1.msra.mxu0 0.0
      %1504 = vmatprep.subr.mxu0 0.0
      %1505 = vmatpush1.msra.mxu0 0.0
      %1506 = vmatprep.subr.mxu0 0.0
      %1507 = vmatpush1.msra.mxu0 0.0
      %1508 = vmatprep.subr.mxu0 0.0
      %1509 = vmatpush1.msra.mxu0 %v845
      %1510 = vmatprep.subr.mxu0 0.0
      %1511 = vmatpush1.msra.mxu0 %v844
      %1512 = vmatprep.subr.mxu0 0.0
      %1513 = vmatpush1.msra.mxu0 %v843
      %1514 = vmatprep.subr.mxu0 0.0
      %1515 = vmatpush1.msra.mxu0 %v842
      %1516 = vmatprep.subr.mxu0 0.0
      %1517 = vmatpush2.msra.mxu0 0.0
      %1518 = vmatprep.subr.mxu0 0.0
      %1519 = vmatpush2.msra.mxu0 0.0
      %1520 = vmatprep.subr.mxu0 0.0
      %1521 = vmatpush2.msra.mxu0 0.0
      %1522 = vmatprep.subr.mxu0 0.0
      %1523 = vmatpush2.msra.mxu0 0.0
      %1524 = vmatprep.subr.mxu0 0.0
      %1525 = vmatpush2.msra.mxu0 0.0
      %1526 = vmatprep.subr.mxu0 0.0
      %1527 = vmatpush2.msra.mxu0 0.0
      %1528 = vmatprep.subr.mxu0 0.0
      %1529 = vmatpush2.msra.mxu0 0.0
      %1530 = vmatprep.subr.mxu0 0.0
      %1531 = vmatpush2.msra.mxu0 0.0
      %1532 = vmatprep.subr.mxu0 0.0
      %1533 = vmatpush2.msra.mxu0 0.0
      %1534 = vmatprep.subr.mxu0 0.0
      %1535 = vmatpush2.msra.mxu0 0.0
      %1536 = vmatprep.subr.mxu0 0.0
      %1537 = vmatpush2.msra.mxu0 0.0
      %1538 = vmatprep.subr.mxu0 0.0
      %1539 = vmatpush2.msra.mxu0 0.0
      %1540 = vmatprep.subr.mxu0 0.0
      %1541 = vmatpush2.msra.mxu0 0.0
      %1542 = vmatprep.subr.mxu0 0.0
      %1543 = vmatpush2.msra.mxu0 0.0
      %1544 = vmatprep.subr.mxu0 0.0
      %1545 = vmatpush2.msra.mxu0 0.0
      %1546 = vmatprep.subr.mxu0 0.0
      %1547 = vmatpush2.msra.mxu0 0.0
      %1548 = vmatprep.mubr.f32.mxu0 0.0
      %1549 = vmatmul.mubr.f32.gmra.mxu0 %v1482
      %v1550 = vpop.f32.mrf.mxu0
      %v1551 = vadd.f32 %v1481, %v1550
      %v1552 = vpop.f32.mrf.mxu0
      %1553 = vdwg.mxu0
      %v1554 = vxor.u32 %v1551, 2147483648
      %v1555 = vmul.f32 %v1554, 1.442695
      %v1556 = vpow.pop %v1555
      %v1557 = vadd.f32 %v1556, 1.0
      %v1558 = vrcp.pop %v1557
      %v1559 = vmul.f32 1.0, %v1558
      %v1560 = vtanh.pop %v1551
      %v1561 = vmul.f32 %v1559, %v1468
      %1563 = vrot.lane.b32.xlu0 %v1560, 32
      %v1564 = vpop.permute.xlu0 %1563
      %v1566 = vmul.f32 %v1559, %v1564
      %1568 = vrot.lane.b32.xlu0 %v1566, 32
      %v1569 = vpop.permute.xlu0 %1568
      %v1571 = vadd.f32 %v1561, %v1569
      %v1572 = vtanh.pop %v1571
      %1574 = vrot.lane.b32.xlu0 %v1572, 32
      %v1575 = vpop.permute.xlu0 %1574
      %v1577 = vmul.f32 %v1559, %v1575
      %1579 = vrot.lane.b32.xlu0 %v1577, 64
      %v1580 = vpop.permute.xlu0 %1579
      %1582 = vst.msk [vmem:[#allocation3 + $0x30] sm:$0xff] %vm575, %v1580
      %1583 = vst.msk [vmem:[#allocation3 + $0x8] sm:$0xff] %vm964, %v1580
      %v1584 = vld [vmem:[#allocation2 + $0x38] sm:$0xff]
      %v1585 = vsel %vm859, %v1580, 0
      %1587 = vmatprep.subr.mxu0 0.0
      %1588 = vmatpush1.msra.mxu0 0.0
      %1589 = vmatprep.subr.mxu0 0.0
      %1590 = vmatpush1.msra.mxu0 0.0
      %1591 = vmatprep.subr.mxu0 0.0
      %1592 = vmatpush1.msra.mxu0 0.0
      %1593 = vmatprep.subr.mxu0 0.0
      %1594 = vmatpush1.msra.mxu0 0.0
      %1595 = vmatprep.subr.mxu0 0.0
      %1596 = vmatpush1.msra.mxu0 0.0
      %1597 = vmatprep.subr.mxu0 0.0
      %1598 = vmatpush1.msra.mxu0 0.0
      %1599 = vmatprep.subr.mxu0 0.0
      %1600 = vmatpush1.msra.mxu0 0.0
      %1601 = vmatprep.subr.mxu0 0.0
      %1602 = vmatpush1.msra.mxu0 0.0
      %1603 = vmatprep.subr.mxu0 0.0
      %1604 = vmatpush1.msra.mxu0 0.0
      %1605 = vmatprep.subr.mxu0 0.0
      %1606 = vmatpush1.msra.mxu0 0.0
      %1607 = vmatprep.subr.mxu0 0.0
      %1608 = vmatpush1.msra.mxu0 0.0
      %1609 = vmatprep.subr.mxu0 0.0
      %1610 = vmatpush1.msra.mxu0 0.0
      %1611 = vmatprep.subr.mxu0 0.0
      %1612 = vmatpush1.msra.mxu0 %v845
      %1613 = vmatprep.subr.mxu0 0.0
      %1614 = vmatpush1.msra.mxu0 %v844
      %1615 = vmatprep.subr.mxu0 0.0
      %1616 = vmatpush1.msra.mxu0 %v843
      %1617 = vmatprep.subr.mxu0 0.0
      %1618 = vmatpush1.msra.mxu0 %v842
      %1619 = vmatprep.subr.mxu0 0.0
      %1620 = vmatpush2.msra.mxu0 0.0
      %1621 = vmatprep.subr.mxu0 0.0
      %1622 = vmatpush2.msra.mxu0 0.0
      %1623 = vmatprep.subr.mxu0 0.0
      %1624 = vmatpush2.msra.mxu0 0.0
      %1625 = vmatprep.subr.mxu0 0.0
      %1626 = vmatpush2.msra.mxu0 0.0
      %1627 = vmatprep.subr.mxu0 0.0
      %1628 = vmatpush2.msra.mxu0 0.0
      %1629 = vmatprep.subr.mxu0 0.0
      %1630 = vmatpush2.msra.mxu0 0.0
      %1631 = vmatprep.subr.mxu0 0.0
      %1632 = vmatpush2.msra.mxu0 0.0
      %1633 = vmatprep.subr.mxu0 0.0
      %1634 = vmatpush2.msra.mxu0 0.0
      %1635 = vmatprep.subr.mxu0 0.0
      %1636 = vmatpush2.msra.mxu0 0.0
      %1637 = vmatprep.subr.mxu0 0.0
      %1638 = vmatpush2.msra.mxu0 0.0
      %1639 = vmatprep.subr.mxu0 0.0
      %1640 = vmatpush2.msra.mxu0 0.0
      %1641 = vmatprep.subr.mxu0 0.0
      %1642 = vmatpush2.msra.mxu0 0.0
      %1643 = vmatprep.subr.mxu0 0.0
      %1644 = vmatpush2.msra.mxu0 0.0
      %1645 = vmatprep.subr.mxu0 0.0
      %1646 = vmatpush2.msra.mxu0 0.0
      %1647 = vmatprep.subr.mxu0 0.0
      %1648 = vmatpush2.msra.mxu0 0.0
      %1649 = vmatprep.subr.mxu0 0.0
      %1650 = vmatpush2.msra.mxu0 0.0
      %1651 = vmatprep.mubr.f32.mxu0 0.0
      %1652 = vmatmul.mubr.f32.gmra.mxu0 %v1585
      %v1653 = vpop.f32.mrf.mxu0
      %v1654 = vadd.f32 %v1584, %v1653
      %v1655 = vpop.f32.mrf.mxu0
      %1656 = vdwg.mxu0
      %v1657 = vxor.u32 %v1654, 2147483648
      %v1658 = vmul.f32 %v1657, 1.442695
      %v1659 = vpow.pop %v1658
      %v1660 = vadd.f32 %v1659, 1.0
      %v1661 = vrcp.pop %v1660
      %v1662 = vmul.f32 1.0, %v1661
      %v1663 = vtanh.pop %v1654
      %v1664 = vmul.f32 %v1662, %v1571
      %1666 = vrot.lane.b32.xlu0 %v1663, 32
      %v1667 = vpop.permute.xlu0 %1666
      %v1669 = vmul.f32 %v1662, %v1667
      %1671 = vrot.lane.b32.xlu0 %v1669, 32
      %v1672 = vpop.permute.xlu0 %1671
      %v1674 = vadd.f32 %v1664, %v1672
      %v1675 = vtanh.pop %v1674
      %1677 = vrot.lane.b32.xlu0 %v1675, 32
      %v1678 = vpop.permute.xlu0 %1677
      %v1680 = vmul.f32 %v1662, %v1678
      %1682 = vrot.lane.b32.xlu0 %v1680, 64
      %v1683 = vpop.permute.xlu0 %1682
      %1685 = vst.msk [vmem:[#allocation3 + $0x38] sm:$0xff] %vm575, %v1683
      %1686 = vst.msk [vmem:[#allocation3] sm:$0xff] %vm964, %v1683
      %v1687 = vld [vmem:[#allocation3] sm:$0xff]
      %v1688 = vld [vmem:[#allocation3 + $0x8] sm:$0xff]
      %v1689 = vld [vmem:[#allocation3 + $0x10] sm:$0xff]
      %v1690 = vld [vmem:[#allocation3 + $0x18] sm:$0xff]
      %v1691 = vld [vmem:[#allocation3 + $0x20] sm:$0xff]
      %v1692 = vld [vmem:[#allocation3 + $0x28] sm:$0xff]
      %v1693 = vld [vmem:[#allocation3 + $0x30] sm:$0xff]
      %v1694 = vld [vmem:[#allocation3 + $0x38] sm:$0xff]
      %v1695 = vld [vmem:[%s7] sm:$0xff]
      %v1696 = vld [vmem:[%s7 + $0x8] sm:$0xff]
      %v1697 = vld [vmem:[%s7 + $0x10] sm:$0xff]
      %v1698 = vld [vmem:[%s7 + $0x18] sm:$0xff]
      %v1699 = vld [vmem:[%s8] sm:$0x1]
      %v1701 = vlaneseq
      %v1702 = vshrl.u32 %v1701, 7
      %v1703 = vsub.s32 0, %v1702
      %v1704 = vrot.slane %v1699, %v1703
      %v1707 = vsel %vm859, %v1687, 0
      %v1710 = vsel %vm859, %v1688, 0
      %v1713 = vsel %vm859, %v1689, 0
      %v1716 = vsel %vm859, %v1690, 0
      %v1719 = vsel %vm859, %v1691, 0
      %v1722 = vsel %vm859, %v1692, 0
      %v1725 = vsel %vm859, %v1693, 0
      %v1728 = vsel %vm859, %v1694, 0
      %1730 = vmatprep.subr.mxu0 0.0
      %1731 = vmatpush1.msra.mxu0 0.0
      %1732 = vmatprep.subr.mxu0 0.0
      %1733 = vmatpush1.msra.mxu0 0.0
      %1734 = vmatprep.subr.mxu0 0.0
      %1735 = vmatpush1.msra.mxu0 0.0
      %1736 = vmatprep.subr.mxu0 0.0
      %1737 = vmatpush1.msra.mxu0 0.0
      %1738 = vmatprep.subr.mxu0 0.0
      %1739 = vmatpush1.msra.mxu0 0.0
      %1740 = vmatprep.subr.mxu0 0.0
      %1741 = vmatpush1.msra.mxu0 0.0
      %1742 = vmatprep.subr.mxu0 0.0
      %1743 = vmatpush1.msra.mxu0 0.0
      %1744 = vmatprep.subr.mxu0 0.0
      %1745 = vmatpush1.msra.mxu0 0.0
      %1746 = vmatprep.subr.mxu0 0.0
      %1747 = vmatpush1.msra.mxu0 0.0
      %1748 = vmatprep.subr.mxu0 0.0
      %1749 = vmatpush1.msra.mxu0 0.0
      %1750 = vmatprep.subr.mxu0 0.0
      %1751 = vmatpush1.msra.mxu0 0.0
      %1752 = vmatprep.subr.mxu0 0.0
      %1753 = vmatpush1.msra.mxu0 0.0
      %1754 = vmatprep.subr.mxu0 0.0
      %1755 = vmatpush1.msra.mxu0 %v1698
      %1756 = vmatprep.subr.mxu0 0.0
      %1757 = vmatpush1.msra.mxu0 %v1697
      %1758 = vmatprep.subr.mxu0 0.0
      %1759 = vmatpush1.msra.mxu0 %v1696
      %1760 = vmatprep.subr.mxu0 0.0
      %1761 = vmatpush1.msra.mxu0 %v1695
      %1762 = vmatprep.subr.mxu0 0.0
      %1763 = vmatpush2.msra.mxu0 0.0
      %1764 = vmatprep.subr.mxu0 0.0
      %1765 = vmatpush2.msra.mxu0 0.0
      %1766 = vmatprep.subr.mxu0 0.0
      %1767 = vmatpush2.msra.mxu0 0.0
      %1768 = vmatprep.subr.mxu0 0.0
      %1769 = vmatpush2.msra.mxu0 0.0
      %1770 = vmatprep.subr.mxu0 0.0
      %1771 = vmatpush2.msra.mxu0 0.0
      %1772 = vmatprep.subr.mxu0 0.0
      %1773 = vmatpush2.msra.mxu0 0.0
      %1774 = vmatprep.subr.mxu0 0.0
      %1775 = vmatpush2.msra.mxu0 0.0
      %1776 = vmatprep.subr.mxu0 0.0
      %1777 = vmatpush2.msra.mxu0 0.0
      %1778 = vmatprep.subr.mxu0 0.0
      %1779 = vmatpush2.msra.mxu0 0.0
      %1780 = vmatprep.subr.mxu0 0.0
      %1781 = vmatpush2.msra.mxu0 0.0
      %1782 = vmatprep.subr.mxu0 0.0
      %1783 = vmatpush2.msra.mxu0 0.0
      %1784 = vmatprep.subr.mxu0 0.0
      %1785 = vmatpush2.msra.mxu0 0.0
      %1786 = vmatprep.subr.mxu0 0.0
      %1787 = vmatpush2.msra.mxu0 0.0
      %1788 = vmatprep.subr.mxu0 0.0
      %1789 = vmatpush2.msra.mxu0 0.0
      %1790 = vmatprep.subr.mxu0 0.0
      %1791 = vmatpush2.msra.mxu0 0.0
      %1792 = vmatprep.subr.mxu0 0.0
      %1793 = vmatpush2.msra.mxu0 0.0
      %1794 = vmatprep.mubr.f32.mxu0 0.0
      %1795 = vmatmul.mubr.f32.gmra.mxu0 %v1707
      %v1796 = vpop.f32.mrf.mxu0
      %v1797 = vadd.f32 %v1704, %v1796
      %v1798 = vpop.f32.mrf.mxu0
      %1799 = vmatprep.mubr.f32.mxu0 0.0
      %1800 = vmatmul.mubr.f32.gmra.mxu0 %v1710
      %v1801 = vpop.f32.mrf.mxu0
      %v1802 = vadd.f32 %v1704, %v1801
      %v1803 = vpop.f32.mrf.mxu0
      %1804 = vmatprep.mubr.f32.mxu0 0.0
      %1805 = vmatmul.mubr.f32.gmra.mxu0 %v1713
      %v1806 = vpop.f32.mrf.mxu0
      %v1807 = vadd.f32 %v1704, %v1806
      %v1808 = vpop.f32.mrf.mxu0
      %1809 = vmatprep.mubr.f32.mxu0 0.0
      %1810 = vmatmul.mubr.f32.gmra.mxu0 %v1716
      %v1811 = vpop.f32.mrf.mxu0
      %v1812 = vadd.f32 %v1704, %v1811
      %v1813 = vpop.f32.mrf.mxu0
      %1814 = vmatprep.mubr.f32.mxu0 0.0
      %1815 = vmatmul.mubr.f32.gmra.mxu0 %v1719
      %v1816 = vpop.f32.mrf.mxu0
      %v1817 = vadd.f32 %v1704, %v1816
      %v1818 = vpop.f32.mrf.mxu0
      %1819 = vmatprep.mubr.f32.mxu0 0.0
      %1820 = vmatmul.mubr.f32.gmra.mxu0 %v1722
      %v1821 = vpop.f32.mrf.mxu0
      %v1822 = vadd.f32 %v1704, %v1821
      %v1823 = vpop.f32.mrf.mxu0
      %1824 = vmatprep.mubr.f32.mxu0 0.0
      %1825 = vmatmul.mubr.f32.gmra.mxu0 %v1725
      %v1826 = vpop.f32.mrf.mxu0
      %v1827 = vadd.f32 %v1704, %v1826
      %v1828 = vpop.f32.mrf.mxu0
      %1829 = vmatprep.mubr.f32.mxu0 0.0
      %1830 = vmatmul.mubr.f32.gmra.mxu0 %v1728
      %v1831 = vpop.f32.mrf.mxu0
      %v1832 = vadd.f32 %v1704, %v1831
      %v1833 = vpop.f32.mrf.mxu0
      %1834 = vdwg.mxu0
      %vm1835 = vcmask 39936
      %1836 = vst.msk [vmem:[%s447] sm:$0xff] %vm1835, %v1797
      %1837 = vst.msk [vmem:[%s447 + $0x8] sm:$0xff] %vm1835, %v1802
      %1838 = vst.msk [vmem:[%s447 + $0x10] sm:$0xff] %vm1835, %v1807
      %1839 = vst.msk [vmem:[%s447 + $0x18] sm:$0xff] %vm1835, %v1812
      %1840 = vst.msk [vmem:[%s447 + $0x20] sm:$0xff] %vm1835, %v1817
      %1841 = vst.msk [vmem:[%s447 + $0x28] sm:$0xff] %vm1835, %v1822
      %1842 = vst.msk [vmem:[%s447 + $0x30] sm:$0xff] %vm1835, %v1827
      %1843 = vst.msk [vmem:[%s447 + $0x38] sm:$0xff] %vm1835, %v1832
      %v1844 = vld [vmem:[%s9] sm:$0x1f]
      %vm1845 = vcmp.eq.s32.totalorder %v458, 3
      %v1846 = vsel %vm1845, 0.0, -10000.0
      %v1847 = vlaneseq
      %v1848 = vshrl.u32 %v1847, 7
      %v1849 = vsub.s32 0, %v1848
      %v1850 = vrot.slane %v1844, %v1849
      %v1851 = vadd.f32 %v1846, %v1850
      %v1852 = vsel %vm1835, %v1851, -inf
      %1853 = vmax.xlane.f32.xlu0 %v1852
      %v1854 = vpop.xlane.xlu0 %1853
      %vm1855 = vcmp.eq.f32.partialorder %v1851, %v1854
      %v1856 = vsel %vm1855, %v458, 5
      %v1857 = vsel %vm1835, %v1856, 2147483647
      %v1858 = vand.u32 %v1857, 65535
      %v1859 = vshra.s32 %v1857, 16
      %v1860 = vcvt.s32.f32 %v1858
      %v1861 = vcvt.s32.f32 %v1859
      %1862 = vmin.xlane.f32.xlu0 %v1861
      %v1863 = vpop.xlane.xlu0 %1862
      %vm1864 = vcmp.eq.f32.partialorder %v1861, %v1863
      %v1865 = vsel %vm1864, %v1860, inf
      %1866 = vmin.xlane.f32.xlu0 %v1865
      %v1867 = vpop.xlane.xlu0 %1866
      %v1868 = vcvt.f32.s32 %v1867
      %v1869 = vcvt.f32.s32 %v1863
      %v1870 = vshll.u32 %v1869, 16
      %v1871 = vadd.s32 %v1870, %v1868
      %vm1872 = vcmp.eq.s32.totalorder %v458, 0
      %v1873 = vsel %vm1872, %v1854, 0.0
      %v1874 = vsel %vm1872, %v1871, 0
      %v1875 = vlaneseq
      %v1876 = vshrl.u32 %v1875, 7
      %v1877 = vsub.s32 1, %v1876
      %v1878 = vrot.slane %v1844, %v1877
      %v1879 = vadd.f32 %v1846, %v1878
      %v1880 = vsel %vm1835, %v1879, -inf
      %1881 = vmax.xlane.f32.xlu0 %v1880
      %v1882 = vpop.xlane.xlu0 %1881
      %vm1883 = vcmp.eq.f32.partialorder %v1879, %v1882
      %v1884 = vsel %vm1883, %v458, 5
      %v1885 = vsel %vm1835, %v1884, 2147483647
      %v1886 = vand.u32 %v1885, 65535
      %v1887 = vshra.s32 %v1885, 16
      %v1888 = vcvt.s32.f32 %v1886
      %v1889 = vcvt.s32.f32 %v1887
      %1890 = vmin.xlane.f32.xlu0 %v1889
      %v1891 = vpop.xlane.xlu0 %1890
      %vm1892 = vcmp.eq.f32.partialorder %v1889, %v1891
      %v1893 = vsel %vm1892, %v1888, inf
      %1894 = vmin.xlane.f32.xlu0 %v1893
      %v1895 = vpop.xlane.xlu0 %1894
      %v1896 = vcvt.f32.s32 %v1895
      %v1897 = vcvt.f32.s32 %v1891
      %v1898 = vshll.u32 %v1897, 16
      %v1899 = vadd.s32 %v1898, %v1896
      %vm1900 = vcmp.eq.s32.totalorder %v458, 1
      %v1901 = vsel %vm1900, %v1882, %v1873
      %v1902 = vsel %vm1900, %v1899, %v1874
      %v1903 = vlaneseq
      %v1904 = vshrl.u32 %v1903, 7
      %v1905 = vsub.s32 2, %v1904
      %v1906 = vrot.slane %v1844, %v1905
      %v1907 = vadd.f32 %v1846, %v1906
      %v1908 = vsel %vm1835, %v1907, -inf
      %1909 = vmax.xlane.f32.xlu0 %v1908
      %v1910 = vpop.xlane.xlu0 %1909
      %vm1911 = vcmp.eq.f32.partialorder %v1907, %v1910
      %v1912 = vsel %vm1911, %v458, 5
      %v1913 = vsel %vm1835, %v1912, 2147483647
      %v1914 = vand.u32 %v1913, 65535
      %v1915 = vshra.s32 %v1913, 16
      %v1916 = vcvt.s32.f32 %v1914
      %v1917 = vcvt.s32.f32 %v1915
      %1918 = vmin.xlane.f32.xlu0 %v1917
      %v1919 = vpop.xlane.xlu0 %1918
      %vm1920 = vcmp.eq.f32.partialorder %v1917, %v1919
      %v1921 = vsel %vm1920, %v1916, inf
      %1922 = vmin.xlane.f32.xlu0 %v1921
      %v1923 = vpop.xlane.xlu0 %1922
      %v1924 = vcvt.f32.s32 %v1923
      %v1925 = vcvt.f32.s32 %v1919
      %v1926 = vshll.u32 %v1925, 16
      %v1927 = vadd.s32 %v1926, %v1924
      %vm1928 = vcmp.eq.s32.totalorder %v458, 2
      %v1929 = vsel %vm1928, %v1910, %v1901
      %v1930 = vsel %vm1928, %v1927, %v1902
      %v1931 = vlaneseq
      %v1932 = vshrl.u32 %v1931, 7
      %v1933 = vsub.s32 3, %v1932
      %v1934 = vrot.slane %v1844, %v1933
      %v1935 = vadd.f32 %v1846, %v1934
      %v1936 = vsel %vm1835, %v1935, -inf
      %1937 = vmax.xlane.f32.xlu0 %v1936
      %v1938 = vpop.xlane.xlu0 %1937
      %vm1939 = vcmp.eq.f32.partialorder %v1935, %v1938
      %v1940 = vsel %vm1939, %v458, 5
      %v1941 = vsel %vm1835, %v1940, 2147483647
      %v1942 = vand.u32 %v1941, 65535
      %v1943 = vshra.s32 %v1941, 16
      %v1944 = vcvt.s32.f32 %v1942
      %v1945 = vcvt.s32.f32 %v1943
      %1946 = vmin.xlane.f32.xlu0 %v1945
      %v1947 = vpop.xlane.xlu0 %1946
      %vm1948 = vcmp.eq.f32.partialorder %v1945, %v1947
      %v1949 = vsel %vm1948, %v1944, inf
      %1950 = vmin.xlane.f32.xlu0 %v1949
      %v1951 = vpop.xlane.xlu0 %1950
      %v1952 = vcvt.f32.s32 %v1951
      %v1953 = vcvt.f32.s32 %v1947
      %v1954 = vshll.u32 %v1953, 16
      %v1955 = vadd.s32 %v1954, %v1952
      %v1956 = vsel %vm1845, %v1938, %v1929
      %v1957 = vsel %vm1845, %v1955, %v1930
      %v1958 = vlaneseq
      %v1959 = vshrl.u32 %v1958, 7
      %v1960 = vsub.s32 4, %v1959
      %v1961 = vrot.slane %v1844, %v1960
      %v1962 = vadd.f32 %v1846, %v1961
      %v1963 = vsel %vm1835, %v1962, -inf
      %1964 = vmax.xlane.f32.xlu0 %v1963
      %v1965 = vpop.xlane.xlu0 %1964
      %vm1966 = vcmp.eq.f32.partialorder %v1962, %v1965
      %v1967 = vsel %vm1966, %v458, 5
      %v1968 = vsel %vm1835, %v1967, 2147483647
      %v1969 = vand.u32 %v1968, 65535
      %v1970 = vshra.s32 %v1968, 16
      %v1971 = vcvt.s32.f32 %v1969
      %v1972 = vcvt.s32.f32 %v1970
      %1973 = vmin.xlane.f32.xlu0 %v1972
      %v1974 = vpop.xlane.xlu0 %1973
      %vm1975 = vcmp.eq.f32.partialorder %v1972, %v1974
      %v1976 = vsel %vm1975, %v1971, inf
      %1977 = vmin.xlane.f32.xlu0 %v1976
      %v1978 = vpop.xlane.xlu0 %1977
      %v1979 = vcvt.f32.s32 %v1978
      %v1980 = vcvt.f32.s32 %v1974
      %v1981 = vshll.u32 %v1980, 16
      %v1982 = vadd.s32 %v1981, %v1979
      %vm1983 = vcmp.eq.s32.totalorder %v458, 4
      %v1984 = vsel %vm1983, %v1965, %v1956
      %v1985 = vsel %vm1983, %v1982, %v1957
      %v1986 = vadd.f32 %v1984, %v1797
      %1987 = vst.msk [vmem:[%s452] sm:$0xff] %vm1835, %v1985
      %v1988 = vadd.f32 %v1986, %v1850
      %v1989 = vsel %vm1835, %v1988, -inf
      %1990 = vmax.xlane.f32.xlu0 %v1989
      %v1991 = vpop.xlane.xlu0 %1990
      %vm1992 = vcmp.eq.f32.partialorder %v1988, %v1991
      %v1993 = vsel %vm1992, %v458, 5
      %v1994 = vsel %vm1835, %v1993, 2147483647
      %v1995 = vand.u32 %v1994, 65535
      %v1996 = vshra.s32 %v1994, 16
      %v1997 = vcvt.s32.f32 %v1995
      %v1998 = vcvt.s32.f32 %v1996
      %1999 = vmin.xlane.f32.xlu0 %v1998
      %v2000 = vpop.xlane.xlu0 %1999
      %vm2001 = vcmp.eq.f32.partialorder %v1998, %v2000
      %v2002 = vsel %vm2001, %v1997, inf
      %2003 = vmin.xlane.f32.xlu0 %v2002
      %v2004 = vpop.xlane.xlu0 %2003
      %v2005 = vcvt.f32.s32 %v2004
      %v2006 = vcvt.f32.s32 %v2000
      %v2007 = vshll.u32 %v2006, 16
      %v2008 = vadd.s32 %v2007, %v2005
      %v2009 = vsel %vm1872, %v1991, 0.0
      %v2010 = vsel %vm1872, %v2008, 0
      %v2011 = vadd.f32 %v1986, %v1878
      %v2012 = vsel %vm1835, %v2011, -inf
      %2013 = vmax.xlane.f32.xlu0 %v2012
      %v2014 = vpop.xlane.xlu0 %2013
      %vm2015 = vcmp.eq.f32.partialorder %v2011, %v2014
      %v2016 = vsel %vm2015, %v458, 5
      %v2017 = vsel %vm1835, %v2016, 2147483647
      %v2018 = vand.u32 %v2017, 65535
      %v2019 = vshra.s32 %v2017, 16
      %v2020 = vcvt.s32.f32 %v2018
      %v2021 = vcvt.s32.f32 %v2019
      %2022 = vmin.xlane.f32.xlu0 %v2021
      %v2023 = vpop.xlane.xlu0 %2022
      %vm2024 = vcmp.eq.f32.partialorder %v2021, %v2023
      %v2025 = vsel %vm2024, %v2020, inf
      %2026 = vmin.xlane.f32.xlu0 %v2025
      %v2027 = vpop.xlane.xlu0 %2026
      %v2028 = vcvt.f32.s32 %v2027
      %v2029 = vcvt.f32.s32 %v2023
      %v2030 = vshll.u32 %v2029, 16
      %v2031 = vadd.s32 %v2030, %v2028
      %v2032 = vsel %vm1900, %v2014, %v2009
      %v2033 = vsel %vm1900, %v2031, %v2010
      %v2034 = vadd.f32 %v1986, %v1906
      %v2035 = vsel %vm1835, %v2034, -inf
      %2036 = vmax.xlane.f32.xlu0 %v2035
      %v2037 = vpop.xlane.xlu0 %2036
      %vm2038 = vcmp.eq.f32.partialorder %v2034, %v2037
      %v2039 = vsel %vm2038, %v458, 5
      %v2040 = vsel %vm1835, %v2039, 2147483647
      %v2041 = vand.u32 %v2040, 65535
      %v2042 = vshra.s32 %v2040, 16
      %v2043 = vcvt.s32.f32 %v2041
      %v2044 = vcvt.s32.f32 %v2042
      %2045 = vmin.xlane.f32.xlu0 %v2044
      %v2046 = vpop.xlane.xlu0 %2045
      %vm2047 = vcmp.eq.f32.partialorder %v2044, %v2046
      %v2048 = vsel %vm2047, %v2043, inf
      %2049 = vmin.xlane.f32.xlu0 %v2048
      %v2050 = vpop.xlane.xlu0 %2049
      %v2051 = vcvt.f32.s32 %v2050
      %v2052 = vcvt.f32.s32 %v2046
      %v2053 = vshll.u32 %v2052, 16
      %v2054 = vadd.s32 %v2053, %v2051
      %v2055 = vsel %vm1928, %v2037, %v2032
      %v2056 = vsel %vm1928, %v2054, %v2033
      %v2057 = vadd.f32 %v1986, %v1934
      %v2058 = vsel %vm1835, %v2057, -inf
      %2059 = vmax.xlane.f32.xlu0 %v2058
      %v2060 = vpop.xlane.xlu0 %2059
      %vm2061 = vcmp.eq.f32.partialorder %v2057, %v2060
      %v2062 = vsel %vm2061, %v458, 5
      %v2063 = vsel %vm1835, %v2062, 2147483647
      %v2064 = vand.u32 %v2063, 65535
      %v2065 = vshra.s32 %v2063, 16
      %v2066 = vcvt.s32.f32 %v2064
      %v2067 = vcvt.s32.f32 %v2065
      %2068 = vmin.xlane.f32.xlu0 %v2067
      %v2069 = vpop.xlane.xlu0 %2068
      %vm2070 = vcmp.eq.f32.partialorder %v2067, %v2069
      %v2071 = vsel %vm2070, %v2066, inf
      %2072 = vmin.xlane.f32.xlu0 %v2071
      %v2073 = vpop.xlane.xlu0 %2072
      %v2074 = vcvt.f32.s32 %v2073
      %v2075 = vcvt.f32.s32 %v2069
      %v2076 = vshll.u32 %v2075, 16
      %v2077 = vadd.s32 %v2076, %v2074
      %v2078 = vsel %vm1845, %v2060, %v2055
      %v2079 = vsel %vm1845, %v2077, %v2056
      %v2080 = vadd.f32 %v1986, %v1961
      %v2081 = vsel %vm1835, %v2080, -inf
      %2082 = vmax.xlane.f32.xlu0 %v2081
      %v2083 = vpop.xlane.xlu0 %2082
      %vm2084 = vcmp.eq.f32.partialorder %v2080, %v2083
      %v2085 = vsel %vm2084, %v458, 5
      %v2086 = vsel %vm1835, %v2085, 2147483647
      %v2087 = vand.u32 %v2086, 65535
      %v2088 = vshra.s32 %v2086, 16
      %v2089 = vcvt.s32.f32 %v2087
      %v2090 = vcvt.s32.f32 %v2088
      %2091 = vmin.xlane.f32.xlu0 %v2090
      %v2092 = vpop.xlane.xlu0 %2091
      %vm2093 = vcmp.eq.f32.partialorder %v2090, %v2092
      %v2094 = vsel %vm2093, %v2089, inf
      %2095 = vmin.xlane.f32.xlu0 %v2094
      %v2096 = vpop.xlane.xlu0 %2095
      %v2097 = vcvt.f32.s32 %v2096
      %v2098 = vcvt.f32.s32 %v2092
      %v2099 = vshll.u32 %v2098, 16
      %v2100 = vadd.s32 %v2099, %v2097
      %v2101 = vsel %vm1983, %v2083, %v2078
      %v2102 = vsel %vm1983, %v2100, %v2079
      %v2103 = vadd.f32 %v2101, %v1802
      %2104 = vst.msk [vmem:[%s452 + $0x8] sm:$0xff] %vm1835, %v2102
      %v2105 = vadd.f32 %v2103, %v1850
      %v2106 = vsel %vm1835, %v2105, -inf
      %2107 = vmax.xlane.f32.xlu0 %v2106
      %v2108 = vpop.xlane.xlu0 %2107
      %vm2109 = vcmp.eq.f32.partialorder %v2105, %v2108
      %v2110 = vsel %vm2109, %v458, 5
      %v2111 = vsel %vm1835, %v2110, 2147483647
      %v2112 = vand.u32 %v2111, 65535
      %v2113 = vshra.s32 %v2111, 16
      %v2114 = vcvt.s32.f32 %v2112
      %v2115 = vcvt.s32.f32 %v2113
      %2116 = vmin.xlane.f32.xlu0 %v2115
      %v2117 = vpop.xlane.xlu0 %2116
      %vm2118 = vcmp.eq.f32.partialorder %v2115, %v2117
      %v2119 = vsel %vm2118, %v2114, inf
      %2120 = vmin.xlane.f32.xlu0 %v2119
      %v2121 = vpop.xlane.xlu0 %2120
      %v2122 = vcvt.f32.s32 %v2121
      %v2123 = vcvt.f32.s32 %v2117
      %v2124 = vshll.u32 %v2123, 16
      %v2125 = vadd.s32 %v2124, %v2122
      %v2126 = vsel %vm1872, %v2108, 0.0
      %v2127 = vsel %vm1872, %v2125, 0
      %v2128 = vadd.f32 %v2103, %v1878
      %v2129 = vsel %vm1835, %v2128, -inf
      %2130 = vmax.xlane.f32.xlu0 %v2129
      %v2131 = vpop.xlane.xlu0 %2130
      %vm2132 = vcmp.eq.f32.partialorder %v2128, %v2131
      %v2133 = vsel %vm2132, %v458, 5
      %v2134 = vsel %vm1835, %v2133, 2147483647
      %v2135 = vand.u32 %v2134, 65535
      %v2136 = vshra.s32 %v2134, 16
      %v2137 = vcvt.s32.f32 %v2135
      %v2138 = vcvt.s32.f32 %v2136
      %2139 = vmin.xlane.f32.xlu0 %v2138
      %v2140 = vpop.xlane.xlu0 %2139
      %vm2141 = vcmp.eq.f32.partialorder %v2138, %v2140
      %v2142 = vsel %vm2141, %v2137, inf
      %2143 = vmin.xlane.f32.xlu0 %v2142
      %v2144 = vpop.xlane.xlu0 %2143
      %v2145 = vcvt.f32.s32 %v2144
      %v2146 = vcvt.f32.s32 %v2140
      %v2147 = vshll.u32 %v2146, 16
      %v2148 = vadd.s32 %v2147, %v2145
      %v2149 = vsel %vm1900, %v2131, %v2126
      %v2150 = vsel %vm1900, %v2148, %v2127
      %v2151 = vadd.f32 %v2103, %v1906
      %v2152 = vsel %vm1835, %v2151, -inf
      %2153 = vmax.xlane.f32.xlu0 %v2152
      %v2154 = vpop.xlane.xlu0 %2153
      %vm2155 = vcmp.eq.f32.partialorder %v2151, %v2154
      %v2156 = vsel %vm2155, %v458, 5
      %v2157 = vsel %vm1835, %v2156, 2147483647
      %v2158 = vand.u32 %v2157, 65535
      %v2159 = vshra.s32 %v2157, 16
      %v2160 = vcvt.s32.f32 %v2158
      %v2161 = vcvt.s32.f32 %v2159
      %2162 = vmin.xlane.f32.xlu0 %v2161
      %v2163 = vpop.xlane.xlu0 %2162
      %vm2164 = vcmp.eq.f32.partialorder %v2161, %v2163
      %v2165 = vsel %vm2164, %v2160, inf
      %2166 = vmin.xlane.f32.xlu0 %v2165
      %v2167 = vpop.xlane.xlu0 %2166
      %v2168 = vcvt.f32.s32 %v2167
      %v2169 = vcvt.f32.s32 %v2163
      %v2170 = vshll.u32 %v2169, 16
      %v2171 = vadd.s32 %v2170, %v2168
      %v2172 = vsel %vm1928, %v2154, %v2149
      %v2173 = vsel %vm1928, %v2171, %v2150
      %v2174 = vadd.f32 %v2103, %v1934
      %v2175 = vsel %vm1835, %v2174, -inf
      %2176 = vmax.xlane.f32.xlu0 %v2175
      %v2177 = vpop.xlane.xlu0 %2176
      %vm2178 = vcmp.eq.f32.partialorder %v2174, %v2177
      %v2179 = vsel %vm2178, %v458, 5
      %v2180 = vsel %vm1835, %v2179, 2147483647
      %v2181 = vand.u32 %v2180, 65535
      %v2182 = vshra.s32 %v2180, 16
      %v2183 = vcvt.s32.f32 %v2181
      %v2184 = vcvt.s32.f32 %v2182
      %2185 = vmin.xlane.f32.xlu0 %v2184
      %v2186 = vpop.xlane.xlu0 %2185
      %vm2187 = vcmp.eq.f32.partialorder %v2184, %v2186
      %v2188 = vsel %vm2187, %v2183, inf
      %2189 = vmin.xlane.f32.xlu0 %v2188
      %v2190 = vpop.xlane.xlu0 %2189
      %v2191 = vcvt.f32.s32 %v2190
      %v2192 = vcvt.f32.s32 %v2186
      %v2193 = vshll.u32 %v2192, 16
      %v2194 = vadd.s32 %v2193, %v2191
      %v2195 = vsel %vm1845, %v2177, %v2172
      %v2196 = vsel %vm1845, %v2194, %v2173
      %v2197 = vadd.f32 %v2103, %v1961
      %v2198 = vsel %vm1835, %v2197, -inf
      %2199 = vmax.xlane.f32.xlu0 %v2198
      %v2200 = vpop.xlane.xlu0 %2199
      %vm2201 = vcmp.eq.f32.partialorder %v2197, %v2200
      %v2202 = vsel %vm2201, %v458, 5
      %v2203 = vsel %vm1835, %v2202, 2147483647
      %v2204 = vand.u32 %v2203, 65535
      %v2205 = vshra.s32 %v2203, 16
      %v2206 = vcvt.s32.f32 %v2204
      %v2207 = vcvt.s32.f32 %v2205
      %2208 = vmin.xlane.f32.xlu0 %v2207
      %v2209 = vpop.xlane.xlu0 %2208
      %vm2210 = vcmp.eq.f32.partialorder %v2207, %v2209
      %v2211 = vsel %vm2210, %v2206, inf
      %2212 = vmin.xlane.f32.xlu0 %v2211
      %v2213 = vpop.xlane.xlu0 %2212
      %v2214 = vcvt.f32.s32 %v2213
      %v2215 = vcvt.f32.s32 %v2209
      %v2216 = vshll.u32 %v2215, 16
      %v2217 = vadd.s32 %v2216, %v2214
      %v2218 = vsel %vm1983, %v2200, %v2195
      %v2219 = vsel %vm1983, %v2217, %v2196
      %v2220 = vadd.f32 %v2218, %v1807
      %2221 = vst.msk [vmem:[%s452 + $0x10] sm:$0xff] %vm1835, %v2219
      %v2222 = vadd.f32 %v2220, %v1850
      %v2223 = vsel %vm1835, %v2222, -inf
      %2224 = vmax.xlane.f32.xlu0 %v2223
      %v2225 = vpop.xlane.xlu0 %2224
      %vm2226 = vcmp.eq.f32.partialorder %v2222, %v2225
      %v2227 = vsel %vm2226, %v458, 5
      %v2228 = vsel %vm1835, %v2227, 2147483647
      %v2229 = vand.u32 %v2228, 65535
      %v2230 = vshra.s32 %v2228, 16
      %v2231 = vcvt.s32.f32 %v2229
      %v2232 = vcvt.s32.f32 %v2230
      %2233 = vmin.xlane.f32.xlu0 %v2232
      %v2234 = vpop.xlane.xlu0 %2233
      %vm2235 = vcmp.eq.f32.partialorder %v2232, %v2234
      %v2236 = vsel %vm2235, %v2231, inf
      %2237 = vmin.xlane.f32.xlu0 %v2236
      %v2238 = vpop.xlane.xlu0 %2237
      %v2239 = vcvt.f32.s32 %v2238
      %v2240 = vcvt.f32.s32 %v2234
      %v2241 = vshll.u32 %v2240, 16
      %v2242 = vadd.s32 %v2241, %v2239
      %v2243 = vsel %vm1872, %v2225, 0.0
      %v2244 = vsel %vm1872, %v2242, 0
      %v2245 = vadd.f32 %v2220, %v1878
      %v2246 = vsel %vm1835, %v2245, -inf
      %2247 = vmax.xlane.f32.xlu0 %v2246
      %v2248 = vpop.xlane.xlu0 %2247
      %vm2249 = vcmp.eq.f32.partialorder %v2245, %v2248
      %v2250 = vsel %vm2249, %v458, 5
      %v2251 = vsel %vm1835, %v2250, 2147483647
      %v2252 = vand.u32 %v2251, 65535
      %v2253 = vshra.s32 %v2251, 16
      %v2254 = vcvt.s32.f32 %v2252
      %v2255 = vcvt.s32.f32 %v2253
      %2256 = vmin.xlane.f32.xlu0 %v2255
      %v2257 = vpop.xlane.xlu0 %2256
      %vm2258 = vcmp.eq.f32.partialorder %v2255, %v2257
      %v2259 = vsel %vm2258, %v2254, inf
      %2260 = vmin.xlane.f32.xlu0 %v2259
      %v2261 = vpop.xlane.xlu0 %2260
      %v2262 = vcvt.f32.s32 %v2261
      %v2263 = vcvt.f32.s32 %v2257
      %v2264 = vshll.u32 %v2263, 16
      %v2265 = vadd.s32 %v2264, %v2262
      %v2266 = vsel %vm1900, %v2248, %v2243
      %v2267 = vsel %vm1900, %v2265, %v2244
      %v2268 = vadd.f32 %v2220, %v1906
      %v2269 = vsel %vm1835, %v2268, -inf
      %2270 = vmax.xlane.f32.xlu0 %v2269
      %v2271 = vpop.xlane.xlu0 %2270
      %vm2272 = vcmp.eq.f32.partialorder %v2268, %v2271
      %v2273 = vsel %vm2272, %v458, 5
      %v2274 = vsel %vm1835, %v2273, 2147483647
      %v2275 = vand.u32 %v2274, 65535
      %v2276 = vshra.s32 %v2274, 16
      %v2277 = vcvt.s32.f32 %v2275
      %v2278 = vcvt.s32.f32 %v2276
      %2279 = vmin.xlane.f32.xlu0 %v2278
      %v2280 = vpop.xlane.xlu0 %2279
      %vm2281 = vcmp.eq.f32.partialorder %v2278, %v2280
      %v2282 = vsel %vm2281, %v2277, inf
      %2283 = vmin.xlane.f32.xlu0 %v2282
      %v2284 = vpop.xlane.xlu0 %2283
      %v2285 = vcvt.f32.s32 %v2284
      %v2286 = vcvt.f32.s32 %v2280
      %v2287 = vshll.u32 %v2286, 16
      %v2288 = vadd.s32 %v2287, %v2285
      %v2289 = vsel %vm1928, %v2271, %v2266
      %v2290 = vsel %vm1928, %v2288, %v2267
      %v2291 = vadd.f32 %v2220, %v1934
      %v2292 = vsel %vm1835, %v2291, -inf
      %2293 = vmax.xlane.f32.xlu0 %v2292
      %v2294 = vpop.xlane.xlu0 %2293
      %vm2295 = vcmp.eq.f32.partialorder %v2291, %v2294
      %v2296 = vsel %vm2295, %v458, 5
      %v2297 = vsel %vm1835, %v2296, 2147483647
      %v2298 = vand.u32 %v2297, 65535
      %v2299 = vshra.s32 %v2297, 16
      %v2300 = vcvt.s32.f32 %v2298
      %v2301 = vcvt.s32.f32 %v2299
      %2302 = vmin.xlane.f32.xlu0 %v2301
      %v2303 = vpop.xlane.xlu0 %2302
      %vm2304 = vcmp.eq.f32.partialorder %v2301, %v2303
      %v2305 = vsel %vm2304, %v2300, inf
      %2306 = vmin.xlane.f32.xlu0 %v2305
      %v2307 = vpop.xlane.xlu0 %2306
      %v2308 = vcvt.f32.s32 %v2307
      %v2309 = vcvt.f32.s32 %v2303
      %v2310 = vshll.u32 %v2309, 16
      %v2311 = vadd.s32 %v2310, %v2308
      %v2312 = vsel %vm1845, %v2294, %v2289
      %v2313 = vsel %vm1845, %v2311, %v2290
      %v2314 = vadd.f32 %v2220, %v1961
      %v2315 = vsel %vm1835, %v2314, -inf
      %2316 = vmax.xlane.f32.xlu0 %v2315
      %v2317 = vpop.xlane.xlu0 %2316
      %vm2318 = vcmp.eq.f32.partialorder %v2314, %v2317
      %v2319 = vsel %vm2318, %v458, 5
      %v2320 = vsel %vm1835, %v2319, 2147483647
      %v2321 = vand.u32 %v2320, 65535
      %v2322 = vshra.s32 %v2320, 16
      %v2323 = vcvt.s32.f32 %v2321
      %v2324 = vcvt.s32.f32 %v2322
      %2325 = vmin.xlane.f32.xlu0 %v2324
      %v2326 = vpop.xlane.xlu0 %2325
      %vm2327 = vcmp.eq.f32.partialorder %v2324, %v2326
      %v2328 = vsel %vm2327, %v2323, inf
      %2329 = vmin.xlane.f32.xlu0 %v2328
      %v2330 = vpop.xlane.xlu0 %2329
      %v2331 = vcvt.f32.s32 %v2330
      %v2332 = vcvt.f32.s32 %v2326
      %v2333 = vshll.u32 %v2332, 16
      %v2334 = vadd.s32 %v2333, %v2331
      %v2335 = vsel %vm1983, %v2317, %v2312
      %v2336 = vsel %vm1983, %v2334, %v2313
      %v2337 = vadd.f32 %v2335, %v1812
      %2338 = vst.msk [vmem:[%s452 + $0x18] sm:$0xff] %vm1835, %v2336
      %v2339 = vadd.f32 %v2337, %v1850
      %v2340 = vsel %vm1835, %v2339, -inf
      %2341 = vmax.xlane.f32.xlu0 %v2340
      %v2342 = vpop.xlane.xlu0 %2341
      %vm2343 = vcmp.eq.f32.partialorder %v2339, %v2342
      %v2344 = vsel %vm2343, %v458, 5
      %v2345 = vsel %vm1835, %v2344, 2147483647
      %v2346 = vand.u32 %v2345, 65535
      %v2347 = vshra.s32 %v2345, 16
      %v2348 = vcvt.s32.f32 %v2346
      %v2349 = vcvt.s32.f32 %v2347
      %2350 = vmin.xlane.f32.xlu0 %v2349
      %v2351 = vpop.xlane.xlu0 %2350
      %vm2352 = vcmp.eq.f32.partialorder %v2349, %v2351
      %v2353 = vsel %vm2352, %v2348, inf
      %2354 = vmin.xlane.f32.xlu0 %v2353
      %v2355 = vpop.xlane.xlu0 %2354
      %v2356 = vcvt.f32.s32 %v2355
      %v2357 = vcvt.f32.s32 %v2351
      %v2358 = vshll.u32 %v2357, 16
      %v2359 = vadd.s32 %v2358, %v2356
      %v2360 = vsel %vm1872, %v2342, 0.0
      %v2361 = vsel %vm1872, %v2359, 0
      %v2362 = vadd.f32 %v2337, %v1878
      %v2363 = vsel %vm1835, %v2362, -inf
      %2364 = vmax.xlane.f32.xlu0 %v2363
      %v2365 = vpop.xlane.xlu0 %2364
      %vm2366 = vcmp.eq.f32.partialorder %v2362, %v2365
      %v2367 = vsel %vm2366, %v458, 5
      %v2368 = vsel %vm1835, %v2367, 2147483647
      %v2369 = vand.u32 %v2368, 65535
      %v2370 = vshra.s32 %v2368, 16
      %v2371 = vcvt.s32.f32 %v2369
      %v2372 = vcvt.s32.f32 %v2370
      %2373 = vmin.xlane.f32.xlu0 %v2372
      %v2374 = vpop.xlane.xlu0 %2373
      %vm2375 = vcmp.eq.f32.partialorder %v2372, %v2374
      %v2376 = vsel %vm2375, %v2371, inf
      %2377 = vmin.xlane.f32.xlu0 %v2376
      %v2378 = vpop.xlane.xlu0 %2377
      %v2379 = vcvt.f32.s32 %v2378
      %v2380 = vcvt.f32.s32 %v2374
      %v2381 = vshll.u32 %v2380, 16
      %v2382 = vadd.s32 %v2381, %v2379
      %v2383 = vsel %vm1900, %v2365, %v2360
      %v2384 = vsel %vm1900, %v2382, %v2361
      %v2385 = vadd.f32 %v2337, %v1906
      %v2386 = vsel %vm1835, %v2385, -inf
      %2387 = vmax.xlane.f32.xlu0 %v2386
      %v2388 = vpop.xlane.xlu0 %2387
      %vm2389 = vcmp.eq.f32.partialorder %v2385, %v2388
      %v2390 = vsel %vm2389, %v458, 5
      %v2391 = vsel %vm1835, %v2390, 2147483647
      %v2392 = vand.u32 %v2391, 65535
      %v2393 = vshra.s32 %v2391, 16
      %v2394 = vcvt.s32.f32 %v2392
      %v2395 = vcvt.s32.f32 %v2393
      %2396 = vmin.xlane.f32.xlu0 %v2395
      %v2397 = vpop.xlane.xlu0 %2396
      %vm2398 = vcmp.eq.f32.partialorder %v2395, %v2397
      %v2399 = vsel %vm2398, %v2394, inf
      %2400 = vmin.xlane.f32.xlu0 %v2399
      %v2401 = vpop.xlane.xlu0 %2400
      %v2402 = vcvt.f32.s32 %v2401
      %v2403 = vcvt.f32.s32 %v2397
      %v2404 = vshll.u32 %v2403, 16
      %v2405 = vadd.s32 %v2404, %v2402
      %v2406 = vsel %vm1928, %v2388, %v2383
      %v2407 = vsel %vm1928, %v2405, %v2384
      %v2408 = vadd.f32 %v2337, %v1934
      %v2409 = vsel %vm1835, %v2408, -inf
      %2410 = vmax.xlane.f32.xlu0 %v2409
      %v2411 = vpop.xlane.xlu0 %2410
      %vm2412 = vcmp.eq.f32.partialorder %v2408, %v2411
      %v2413 = vsel %vm2412, %v458, 5
      %v2414 = vsel %vm1835, %v2413, 2147483647
      %v2415 = vand.u32 %v2414, 65535
      %v2416 = vshra.s32 %v2414, 16
      %v2417 = vcvt.s32.f32 %v2415
      %v2418 = vcvt.s32.f32 %v2416
      %2419 = vmin.xlane.f32.xlu0 %v2418
      %v2420 = vpop.xlane.xlu0 %2419
      %vm2421 = vcmp.eq.f32.partialorder %v2418, %v2420
      %v2422 = vsel %vm2421, %v2417, inf
      %2423 = vmin.xlane.f32.xlu0 %v2422
      %v2424 = vpop.xlane.xlu0 %2423
      %v2425 = vcvt.f32.s32 %v2424
      %v2426 = vcvt.f32.s32 %v2420
      %v2427 = vshll.u32 %v2426, 16
      %v2428 = vadd.s32 %v2427, %v2425
      %v2429 = vsel %vm1845, %v2411, %v2406
      %v2430 = vsel %vm1845, %v2428, %v2407
      %v2431 = vadd.f32 %v2337, %v1961
      %v2432 = vsel %vm1835, %v2431, -inf
      %2433 = vmax.xlane.f32.xlu0 %v2432
      %v2434 = vpop.xlane.xlu0 %2433
      %vm2435 = vcmp.eq.f32.partialorder %v2431, %v2434
      %v2436 = vsel %vm2435, %v458, 5
      %v2437 = vsel %vm1835, %v2436, 2147483647
      %v2438 = vand.u32 %v2437, 65535
      %v2439 = vshra.s32 %v2437, 16
      %v2440 = vcvt.s32.f32 %v2438
      %v2441 = vcvt.s32.f32 %v2439
      %2442 = vmin.xlane.f32.xlu0 %v2441
      %v2443 = vpop.xlane.xlu0 %2442
      %vm2444 = vcmp.eq.f32.partialorder %v2441, %v2443
      %v2445 = vsel %vm2444, %v2440, inf
      %2446 = vmin.xlane.f32.xlu0 %v2445
      %v2447 = vpop.xlane.xlu0 %2446
      %v2448 = vcvt.f32.s32 %v2447
      %v2449 = vcvt.f32.s32 %v2443
      %v2450 = vshll.u32 %v2449, 16
      %v2451 = vadd.s32 %v2450, %v2448
      %v2452 = vsel %vm1983, %v2434, %v2429
      %v2453 = vsel %vm1983, %v2451, %v2430
      %v2454 = vadd.f32 %v2452, %v1817
      %2455 = vst.msk [vmem:[%s452 + $0x20] sm:$0xff] %vm1835, %v2453
      %v2456 = vadd.f32 %v2454, %v1850
      %v2457 = vsel %vm1835, %v2456, -inf
      %2458 = vmax.xlane.f32.xlu0 %v2457
      %v2459 = vpop.xlane.xlu0 %2458
      %vm2460 = vcmp.eq.f32.partialorder %v2456, %v2459
      %v2461 = vsel %vm2460, %v458, 5
      %v2462 = vsel %vm1835, %v2461, 2147483647
      %v2463 = vand.u32 %v2462, 65535
      %v2464 = vshra.s32 %v2462, 16
      %v2465 = vcvt.s32.f32 %v2463
      %v2466 = vcvt.s32.f32 %v2464
      %2467 = vmin.xlane.f32.xlu0 %v2466
      %v2468 = vpop.xlane.xlu0 %2467
      %vm2469 = vcmp.eq.f32.partialorder %v2466, %v2468
      %v2470 = vsel %vm2469, %v2465, inf
      %2471 = vmin.xlane.f32.xlu0 %v2470
      %v2472 = vpop.xlane.xlu0 %2471
      %v2473 = vcvt.f32.s32 %v2472
      %v2474 = vcvt.f32.s32 %v2468
      %v2475 = vshll.u32 %v2474, 16
      %v2476 = vadd.s32 %v2475, %v2473
      %v2477 = vsel %vm1872, %v2459, 0.0
      %v2478 = vsel %vm1872, %v2476, 0
      %v2479 = vadd.f32 %v2454, %v1878
      %v2480 = vsel %vm1835, %v2479, -inf
      %2481 = vmax.xlane.f32.xlu0 %v2480
      %v2482 = vpop.xlane.xlu0 %2481
      %vm2483 = vcmp.eq.f32.partialorder %v2479, %v2482
      %v2484 = vsel %vm2483, %v458, 5
      %v2485 = vsel %vm1835, %v2484, 2147483647
      %v2486 = vand.u32 %v2485, 65535
      %v2487 = vshra.s32 %v2485, 16
      %v2488 = vcvt.s32.f32 %v2486
      %v2489 = vcvt.s32.f32 %v2487
      %2490 = vmin.xlane.f32.xlu0 %v2489
      %v2491 = vpop.xlane.xlu0 %2490
      %vm2492 = vcmp.eq.f32.partialorder %v2489, %v2491
      %v2493 = vsel %vm2492, %v2488, inf
      %2494 = vmin.xlane.f32.xlu0 %v2493
      %v2495 = vpop.xlane.xlu0 %2494
      %v2496 = vcvt.f32.s32 %v2495
      %v2497 = vcvt.f32.s32 %v2491
      %v2498 = vshll.u32 %v2497, 16
      %v2499 = vadd.s32 %v2498, %v2496
      %v2500 = vsel %vm1900, %v2482, %v2477
      %v2501 = vsel %vm1900, %v2499, %v2478
      %v2502 = vadd.f32 %v2454, %v1906
      %v2503 = vsel %vm1835, %v2502, -inf
      %2504 = vmax.xlane.f32.xlu0 %v2503
      %v2505 = vpop.xlane.xlu0 %2504
      %vm2506 = vcmp.eq.f32.partialorder %v2502, %v2505
      %v2507 = vsel %vm2506, %v458, 5
      %v2508 = vsel %vm1835, %v2507, 2147483647
      %v2509 = vand.u32 %v2508, 65535
      %v2510 = vshra.s32 %v2508, 16
      %v2511 = vcvt.s32.f32 %v2509
      %v2512 = vcvt.s32.f32 %v2510
      %2513 = vmin.xlane.f32.xlu0 %v2512
      %v2514 = vpop.xlane.xlu0 %2513
      %vm2515 = vcmp.eq.f32.partialorder %v2512, %v2514
      %v2516 = vsel %vm2515, %v2511, inf
      %2517 = vmin.xlane.f32.xlu0 %v2516
      %v2518 = vpop.xlane.xlu0 %2517
      %v2519 = vcvt.f32.s32 %v2518
      %v2520 = vcvt.f32.s32 %v2514
      %v2521 = vshll.u32 %v2520, 16
      %v2522 = vadd.s32 %v2521, %v2519
      %v2523 = vsel %vm1928, %v2505, %v2500
      %v2524 = vsel %vm1928, %v2522, %v2501
      %v2525 = vadd.f32 %v2454, %v1934
      %v2526 = vsel %vm1835, %v2525, -inf
      %2527 = vmax.xlane.f32.xlu0 %v2526
      %v2528 = vpop.xlane.xlu0 %2527
      %vm2529 = vcmp.eq.f32.partialorder %v2525, %v2528
      %v2530 = vsel %vm2529, %v458, 5
      %v2531 = vsel %vm1835, %v2530, 2147483647
      %v2532 = vand.u32 %v2531, 65535
      %v2533 = vshra.s32 %v2531, 16
      %v2534 = vcvt.s32.f32 %v2532
      %v2535 = vcvt.s32.f32 %v2533
      %2536 = vmin.xlane.f32.xlu0 %v2535
      %v2537 = vpop.xlane.xlu0 %2536
      %vm2538 = vcmp.eq.f32.partialorder %v2535, %v2537
      %v2539 = vsel %vm2538, %v2534, inf
      %2540 = vmin.xlane.f32.xlu0 %v2539
      %v2541 = vpop.xlane.xlu0 %2540
      %v2542 = vcvt.f32.s32 %v2541
      %v2543 = vcvt.f32.s32 %v2537
      %v2544 = vshll.u32 %v2543, 16
      %v2545 = vadd.s32 %v2544, %v2542
      %v2546 = vsel %vm1845, %v2528, %v2523
      %v2547 = vsel %vm1845, %v2545, %v2524
      %v2548 = vadd.f32 %v2454, %v1961
      %v2549 = vsel %vm1835, %v2548, -inf
      %2550 = vmax.xlane.f32.xlu0 %v2549
      %v2551 = vpop.xlane.xlu0 %2550
      %vm2552 = vcmp.eq.f32.partialorder %v2548, %v2551
      %v2553 = vsel %vm2552, %v458, 5
      %v2554 = vsel %vm1835, %v2553, 2147483647
      %v2555 = vand.u32 %v2554, 65535
      %v2556 = vshra.s32 %v2554, 16
      %v2557 = vcvt.s32.f32 %v2555
      %v2558 = vcvt.s32.f32 %v2556
      %2559 = vmin.xlane.f32.xlu0 %v2558
      %v2560 = vpop.xlane.xlu0 %2559
      %vm2561 = vcmp.eq.f32.partialorder %v2558, %v2560
      %v2562 = vsel %vm2561, %v2557, inf
      %2563 = vmin.xlane.f32.xlu0 %v2562
      %v2564 = vpop.xlane.xlu0 %2563
      %v2565 = vcvt.f32.s32 %v2564
      %v2566 = vcvt.f32.s32 %v2560
      %v2567 = vshll.u32 %v2566, 16
      %v2568 = vadd.s32 %v2567, %v2565
      %v2569 = vsel %vm1983, %v2551, %v2546
      %v2570 = vsel %vm1983, %v2568, %v2547
      %v2571 = vadd.f32 %v2569, %v1822
      %2572 = vst.msk [vmem:[%s452 + $0x28] sm:$0xff] %vm1835, %v2570
      %v2573 = vadd.f32 %v2571, %v1850
      %v2574 = vsel %vm1835, %v2573, -inf
      %2575 = vmax.xlane.f32.xlu0 %v2574
      %v2576 = vpop.xlane.xlu0 %2575
      %vm2577 = vcmp.eq.f32.partialorder %v2573, %v2576
      %v2578 = vsel %vm2577, %v458, 5
      %v2579 = vsel %vm1835, %v2578, 2147483647
      %v2580 = vand.u32 %v2579, 65535
      %v2581 = vshra.s32 %v2579, 16
      %v2582 = vcvt.s32.f32 %v2580
      %v2583 = vcvt.s32.f32 %v2581
      %2584 = vmin.xlane.f32.xlu0 %v2583
      %v2585 = vpop.xlane.xlu0 %2584
      %vm2586 = vcmp.eq.f32.partialorder %v2583, %v2585
      %v2587 = vsel %vm2586, %v2582, inf
      %2588 = vmin.xlane.f32.xlu0 %v2587
      %v2589 = vpop.xlane.xlu0 %2588
      %v2590 = vcvt.f32.s32 %v2589
      %v2591 = vcvt.f32.s32 %v2585
      %v2592 = vshll.u32 %v2591, 16
      %v2593 = vadd.s32 %v2592, %v2590
      %v2594 = vsel %vm1872, %v2576, 0.0
      %v2595 = vsel %vm1872, %v2593, 0
      %v2596 = vadd.f32 %v2571, %v1878
      %v2597 = vsel %vm1835, %v2596, -inf
      %2598 = vmax.xlane.f32.xlu0 %v2597
      %v2599 = vpop.xlane.xlu0 %2598
      %vm2600 = vcmp.eq.f32.partialorder %v2596, %v2599
      %v2601 = vsel %vm2600, %v458, 5
      %v2602 = vsel %vm1835, %v2601, 2147483647
      %v2603 = vand.u32 %v2602, 65535
      %v2604 = vshra.s32 %v2602, 16
      %v2605 = vcvt.s32.f32 %v2603
      %v2606 = vcvt.s32.f32 %v2604
      %2607 = vmin.xlane.f32.xlu0 %v2606
      %v2608 = vpop.xlane.xlu0 %2607
      %vm2609 = vcmp.eq.f32.partialorder %v2606, %v2608
      %v2610 = vsel %vm2609, %v2605, inf
      %2611 = vmin.xlane.f32.xlu0 %v2610
      %v2612 = vpop.xlane.xlu0 %2611
      %v2613 = vcvt.f32.s32 %v2612
      %v2614 = vcvt.f32.s32 %v2608
      %v2615 = vshll.u32 %v2614, 16
      %v2616 = vadd.s32 %v2615, %v2613
      %v2617 = vsel %vm1900, %v2599, %v2594
      %v2618 = vsel %vm1900, %v2616, %v2595
      %v2619 = vadd.f32 %v2571, %v1906
      %v2620 = vsel %vm1835, %v2619, -inf
      %2621 = vmax.xlane.f32.xlu0 %v2620
      %v2622 = vpop.xlane.xlu0 %2621
      %vm2623 = vcmp.eq.f32.partialorder %v2619, %v2622
      %v2624 = vsel %vm2623, %v458, 5
      %v2625 = vsel %vm1835, %v2624, 2147483647
      %v2626 = vand.u32 %v2625, 65535
      %v2627 = vshra.s32 %v2625, 16
      %v2628 = vcvt.s32.f32 %v2626
      %v2629 = vcvt.s32.f32 %v2627
      %2630 = vmin.xlane.f32.xlu0 %v2629
      %v2631 = vpop.xlane.xlu0 %2630
      %vm2632 = vcmp.eq.f32.partialorder %v2629, %v2631
      %v2633 = vsel %vm2632, %v2628, inf
      %2634 = vmin.xlane.f32.xlu0 %v2633
      %v2635 = vpop.xlane.xlu0 %2634
      %v2636 = vcvt.f32.s32 %v2635
      %v2637 = vcvt.f32.s32 %v2631
      %v2638 = vshll.u32 %v2637, 16
      %v2639 = vadd.s32 %v2638, %v2636
      %v2640 = vsel %vm1928, %v2622, %v2617
      %v2641 = vsel %vm1928, %v2639, %v2618
      %v2642 = vadd.f32 %v2571, %v1934
      %v2643 = vsel %vm1835, %v2642, -inf
      %2644 = vmax.xlane.f32.xlu0 %v2643
      %v2645 = vpop.xlane.xlu0 %2644
      %vm2646 = vcmp.eq.f32.partialorder %v2642, %v2645
      %v2647 = vsel %vm2646, %v458, 5
      %v2648 = vsel %vm1835, %v2647, 2147483647
      %v2649 = vand.u32 %v2648, 65535
      %v2650 = vshra.s32 %v2648, 16
      %v2651 = vcvt.s32.f32 %v2649
      %v2652 = vcvt.s32.f32 %v2650
      %2653 = vmin.xlane.f32.xlu0 %v2652
      %v2654 = vpop.xlane.xlu0 %2653
      %vm2655 = vcmp.eq.f32.partialorder %v2652, %v2654
      %v2656 = vsel %vm2655, %v2651, inf
      %2657 = vmin.xlane.f32.xlu0 %v2656
      %v2658 = vpop.xlane.xlu0 %2657
      %v2659 = vcvt.f32.s32 %v2658
      %v2660 = vcvt.f32.s32 %v2654
      %v2661 = vshll.u32 %v2660, 16
      %v2662 = vadd.s32 %v2661, %v2659
      %v2663 = vsel %vm1845, %v2645, %v2640
      %v2664 = vsel %vm1845, %v2662, %v2641
      %v2665 = vadd.f32 %v2571, %v1961
      %v2666 = vsel %vm1835, %v2665, -inf
      %2667 = vmax.xlane.f32.xlu0 %v2666
      %v2668 = vpop.xlane.xlu0 %2667
      %vm2669 = vcmp.eq.f32.partialorder %v2665, %v2668
      %v2670 = vsel %vm2669, %v458, 5
      %v2671 = vsel %vm1835, %v2670, 2147483647
      %v2672 = vand.u32 %v2671, 65535
      %v2673 = vshra.s32 %v2671, 16
      %v2674 = vcvt.s32.f32 %v2672
      %v2675 = vcvt.s32.f32 %v2673
      %2676 = vmin.xlane.f32.xlu0 %v2675
      %v2677 = vpop.xlane.xlu0 %2676
      %vm2678 = vcmp.eq.f32.partialorder %v2675, %v2677
      %v2679 = vsel %vm2678, %v2674, inf
      %2680 = vmin.xlane.f32.xlu0 %v2679
      %v2681 = vpop.xlane.xlu0 %2680
      %v2682 = vcvt.f32.s32 %v2681
      %v2683 = vcvt.f32.s32 %v2677
      %v2684 = vshll.u32 %v2683, 16
      %v2685 = vadd.s32 %v2684, %v2682
      %v2686 = vsel %vm1983, %v2668, %v2663
      %v2687 = vsel %vm1983, %v2685, %v2664
      %v2688 = vadd.f32 %v2686, %v1827
      %2689 = vst.msk [vmem:[%s452 + $0x30] sm:$0xff] %vm1835, %v2687
      %v2690 = vadd.f32 %v2688, %v1850
      %v2691 = vsel %vm1835, %v2690, -inf
      %2692 = vmax.xlane.f32.xlu0 %v2691
      %v2693 = vpop.xlane.xlu0 %2692
      %vm2694 = vcmp.eq.f32.partialorder %v2690, %v2693
      %v2695 = vsel %vm2694, %v458, 5
      %v2696 = vsel %vm1835, %v2695, 2147483647
      %v2697 = vand.u32 %v2696, 65535
      %v2698 = vshra.s32 %v2696, 16
      %v2699 = vcvt.s32.f32 %v2697
      %v2700 = vcvt.s32.f32 %v2698
      %2701 = vmin.xlane.f32.xlu0 %v2700
      %v2702 = vpop.xlane.xlu0 %2701
      %vm2703 = vcmp.eq.f32.partialorder %v2700, %v2702
      %v2704 = vsel %vm2703, %v2699, inf
      %2705 = vmin.xlane.f32.xlu0 %v2704
      %v2706 = vpop.xlane.xlu0 %2705
      %v2707 = vcvt.f32.s32 %v2706
      %v2708 = vcvt.f32.s32 %v2702
      %v2709 = vshll.u32 %v2708, 16
      %v2710 = vadd.s32 %v2709, %v2707
      %v2711 = vsel %vm1872, %v2693, 0.0
      %v2712 = vsel %vm1872, %v2710, 0
      %v2713 = vadd.f32 %v2688, %v1878
      %v2714 = vsel %vm1835, %v2713, -inf
      %2715 = vmax.xlane.f32.xlu0 %v2714
      %v2716 = vpop.xlane.xlu0 %2715
      %vm2717 = vcmp.eq.f32.partialorder %v2713, %v2716
      %v2718 = vsel %vm2717, %v458, 5
      %v2719 = vsel %vm1835, %v2718, 2147483647
      %v2720 = vand.u32 %v2719, 65535
      %v2721 = vshra.s32 %v2719, 16
      %v2722 = vcvt.s32.f32 %v2720
      %v2723 = vcvt.s32.f32 %v2721
      %2724 = vmin.xlane.f32.xlu0 %v2723
      %v2725 = vpop.xlane.xlu0 %2724
      %vm2726 = vcmp.eq.f32.partialorder %v2723, %v2725
      %v2727 = vsel %vm2726, %v2722, inf
      %2728 = vmin.xlane.f32.xlu0 %v2727
      %v2729 = vpop.xlane.xlu0 %2728
      %v2730 = vcvt.f32.s32 %v2729
      %v2731 = vcvt.f32.s32 %v2725
      %v2732 = vshll.u32 %v2731, 16
      %v2733 = vadd.s32 %v2732, %v2730
      %v2734 = vsel %vm1900, %v2716, %v2711
      %v2735 = vsel %vm1900, %v2733, %v2712
      %v2736 = vadd.f32 %v2688, %v1906
      %v2737 = vsel %vm1835, %v2736, -inf
      %2738 = vmax.xlane.f32.xlu0 %v2737
      %v2739 = vpop.xlane.xlu0 %2738
      %vm2740 = vcmp.eq.f32.partialorder %v2736, %v2739
      %v2741 = vsel %vm2740, %v458, 5
      %v2742 = vsel %vm1835, %v2741, 2147483647
      %v2743 = vand.u32 %v2742, 65535
      %v2744 = vshra.s32 %v2742, 16
      %v2745 = vcvt.s32.f32 %v2743
      %v2746 = vcvt.s32.f32 %v2744
      %2747 = vmin.xlane.f32.xlu0 %v2746
      %v2748 = vpop.xlane.xlu0 %2747
      %vm2749 = vcmp.eq.f32.partialorder %v2746, %v2748
      %v2750 = vsel %vm2749, %v2745, inf
      %2751 = vmin.xlane.f32.xlu0 %v2750
      %v2752 = vpop.xlane.xlu0 %2751
      %v2753 = vcvt.f32.s32 %v2752
      %v2754 = vcvt.f32.s32 %v2748
      %v2755 = vshll.u32 %v2754, 16
      %v2756 = vadd.s32 %v2755, %v2753
      %v2757 = vsel %vm1928, %v2739, %v2734
      %v2758 = vsel %vm1928, %v2756, %v2735
      %v2759 = vadd.f32 %v2688, %v1934
      %v2760 = vsel %vm1835, %v2759, -inf
      %2761 = vmax.xlane.f32.xlu0 %v2760
      %v2762 = vpop.xlane.xlu0 %2761
      %vm2763 = vcmp.eq.f32.partialorder %v2759, %v2762
      %v2764 = vsel %vm2763, %v458, 5
      %v2765 = vsel %vm1835, %v2764, 2147483647
      %v2766 = vand.u32 %v2765, 65535
      %v2767 = vshra.s32 %v2765, 16
      %v2768 = vcvt.s32.f32 %v2766
      %v2769 = vcvt.s32.f32 %v2767
      %2770 = vmin.xlane.f32.xlu0 %v2769
      %v2771 = vpop.xlane.xlu0 %2770
      %vm2772 = vcmp.eq.f32.partialorder %v2769, %v2771
      %v2773 = vsel %vm2772, %v2768, inf
      %2774 = vmin.xlane.f32.xlu0 %v2773
      %v2775 = vpop.xlane.xlu0 %2774
      %v2776 = vcvt.f32.s32 %v2775
      %v2777 = vcvt.f32.s32 %v2771
      %v2778 = vshll.u32 %v2777, 16
      %v2779 = vadd.s32 %v2778, %v2776
      %v2780 = vsel %vm1845, %v2762, %v2757
      %v2781 = vsel %vm1845, %v2779, %v2758
      %v2782 = vadd.f32 %v2688, %v1961
      %v2783 = vsel %vm1835, %v2782, -inf
      %2784 = vmax.xlane.f32.xlu0 %v2783
      %v2785 = vpop.xlane.xlu0 %2784
      %vm2786 = vcmp.eq.f32.partialorder %v2782, %v2785
      %v2787 = vsel %vm2786, %v458, 5
      %v2788 = vsel %vm1835, %v2787, 2147483647
      %v2789 = vand.u32 %v2788, 65535
      %v2790 = vshra.s32 %v2788, 16
      %v2791 = vcvt.s32.f32 %v2789
      %v2792 = vcvt.s32.f32 %v2790
      %2793 = vmin.xlane.f32.xlu0 %v2792
      %v2794 = vpop.xlane.xlu0 %2793
      %vm2795 = vcmp.eq.f32.partialorder %v2792, %v2794
      %v2796 = vsel %vm2795, %v2791, inf
      %2797 = vmin.xlane.f32.xlu0 %v2796
      %v2798 = vpop.xlane.xlu0 %2797
      %v2799 = vcvt.f32.s32 %v2798
      %v2800 = vcvt.f32.s32 %v2794
      %v2801 = vshll.u32 %v2800, 16
      %v2802 = vadd.s32 %v2801, %v2799
      %v2803 = vsel %vm1983, %v2785, %v2780
      %v2804 = vsel %vm1983, %v2802, %v2781
      %v2805 = vadd.f32 %v2803, %v1832
      %2806 = vst.msk [vmem:[%s452 + $0x38] sm:$0xff] %vm1835, %v2804
      %v2807 = vadd.f32 %v2805, %v1961
      %2808 = vst.msk [vmem:[%s456] sm:$0xff] %vm1835, %v2807
      %p2809 = scmp.lt.s32.totalorder %s24, 1
      %s2810 = scalar_select %p2809, %s24, 1
      %s2811 = smul.addr %s2810, 8
      %s2812 = smul.addr %s2811, 8
      %s2813 = scalar_lea.vmem %s10, %s2812
      %p2814 = scmp.lt.s32.totalorder %s24, 1
      %s2815 = scalar_select %p2814, %s24, 1
      %s2816 = smul.addr %s2815, 8
      %s2817 = smul.addr %s2816, 8
      %s2818 = scalar_lea.vmem %s11, %s2817
      %p2819 = scmp.lt.s32.totalorder %s24, 1
      %s2820 = scalar_select %p2819, %s24, 1
      %s2821 = smul.addr %s2820, 8
      %s2822 = scalar_lea.vmem %s12, %s2821
      // Predicated region
      $region61: #{_run.1} parent=59 // pred_check
        %p2823 = pneg %p262
      $region62: #{_run.1} parent=59 // pred_check_branch
        %2825 = sbr.rel (%p2823) target = $region64
      $region63: #{_run.1} parent=59 // pred_region
        _
      $region64: #{_run.1} parent=59 // pred_fallthru
        _
      // Predicated region
      $region65: #{_run.1} parent=59 // pred_check
        %p2826 = pneg %p288
      $region66: #{_run.1} parent=59 // pred_check_branch
        %2828 = sbr.rel (%p2826) target = $region68
      $region67: #{_run.1} parent=59 // pred_region
        _
      $region68: #{_run.1} parent=59 // pred_fallthru
        _
      // Predicated region
      $region69: #{_run.1} parent=59 // pred_check
        %p2829 = pneg %p314
      $region70: #{_run.1} parent=59 // pred_check_branch
        %2831 = sbr.rel (%p2829) target = $region72
      $region71: #{_run.1} parent=59 // pred_region
        _
      $region72: #{_run.1} parent=59 // pred_fallthru
        _
    $region60: #{_run.1} parent=5 // pred_fallthru
      _
    %p2832 = scmp.le.s32.totalorder 2, %s19
    // Predicated region
    $region73: #{_run.1} parent=5 // pred_check
      %p2833 = pneg %p2832
    $region74: #{_run.1} parent=5 // pred_check_branch
      %2835 = sbr.rel (%p2833) target = $region76
    $region75: #{_run.1} parent=5 // pred_region
      %s2836 = ssub.s32 %s19, 2
      // Predicated region
      $region77: #{_run.1} parent=75 // pred_check
        %p2837 = pneg %p268
      $region78: #{_run.1} parent=75 // pred_check_branch
        %2839 = sbr.rel (%p2837) target = $region80
      $region79: #{_run.1} parent=75 // pred_region
        %p2840 = scmp.lt.s32.totalorder %s25, 1
        %s2841 = scalar_select %p2840, %s25, 1
        %s2842 = smul.addr %s2841, 8
        %s2843 = smul.addr %s2842, 8
        %s2844 = scalar_lea.vmem %s10, %s2843
      $region80: #{_run.1} parent=75 // pred_fallthru
        _
      // Predicated region
      $region81: #{_run.1} parent=75 // pred_check
        %p2845 = pneg %p294
      $region82: #{_run.1} parent=75 // pred_check_branch
        %2847 = sbr.rel (%p2845) target = $region84
      $region83: #{_run.1} parent=75 // pred_region
        %p2848 = scmp.lt.s32.totalorder %s25, 1
        %s2849 = scalar_select %p2848, %s25, 1
        %s2850 = smul.addr %s2849, 8
        %s2851 = smul.addr %s2850, 8
        %s2852 = scalar_lea.vmem %s11, %s2851
      $region84: #{_run.1} parent=75 // pred_fallthru
        _
      // Predicated region
      $region85: #{_run.1} parent=75 // pred_check
        %p2853 = pneg %p320
      $region86: #{_run.1} parent=75 // pred_check_branch
        %2855 = sbr.rel (%p2853) target = $region88
      $region87: #{_run.1} parent=75 // pred_region
        %p2856 = scmp.lt.s32.totalorder %s25, 1
        %s2857 = scalar_select %p2856, %s25, 1
        %s2858 = smul.addr %s2857, 8
        %s2859 = scalar_lea.vmem %s12, %s2858
      $region88: #{_run.1} parent=75 // pred_fallthru
        _
    $region76: #{_run.1} parent=5 // pred_fallthru
      _
  $region6: #{_run.1} parent=0 // loop_footer
    %s23 = sadd.s32 1, %s19
  $region7: #{_run.1} parent=0 // loop_footer_branch
    %18 = sbr.rel target = $region3
  $region8: #{_run.1} parent=0 // loop_exit
    _

</llo_original>
